<compile_context>
chip_gen: v5e
topology: v5e:2x2
jax: 0.10.0
libtpu: 0.0.40
codegen_flags: <defaults>
</compile_context>

<pallas_src>
import jax
import jax.numpy as jnp
import numpy as np
from jax.experimental import pallas as pl
from jax.experimental.pallas import tpu as pltpu

BN_EPS = 1e-5
LANES = 128                    # vreg lane width: all matmul N (and padded K) dims
TILE_M = 256                   # conv-stage row tile (multiple of 8 and 16)
MXU_DTYPE = jnp.bfloat16       # MXU operand dtype; epilogue / accumulation stay f32


def _round_up(x, m):
    return (x + m - 1) // m * m


# ----------------------------------------------------------------------------
# Pallas kernels
# ----------------------------------------------------------------------------
def _conv_stage_kernel(p_ref, w_ref, scale_ref, shift_ref, o_ref):
    """Fused conv(matmul over patches) + BN(scale/shift) + 2x2 maxpool + ReLU.

    p_ref     : (4, tm, Kp)  im2col patches; leading axis = pool-window member
    w_ref     : (Kp, 128)    conv weight, (c,kh,kw)-flattened, zero-padded
    scale_ref : (1, 128)     gamma / sqrt(var + eps)           (padded lanes = 0)
    shift_ref : (1, 128)     (conv_b - mean) * scale + beta    (padded lanes = 0)
    o_ref     : (tm, 128)    pooled activation rows, channels on lanes (f32)
    """
    w = w_ref[...]
    scale = scale_ref[...]
    shift = shift_ref[...]

    def member(q):  # conv + BN for one member of the 2x2 pooling window
        acc = jnp.dot(p_ref[q], w, preferred_element_type=jnp.float32)
        return acc * scale + shift

    pooled = jnp.maximum(jnp.maximum(member(0), member(1)),
                         jnp.maximum(member(2), member(3)))
    o_ref[...] = jnp.maximum(pooled, 0.0)          # ReLU(max) == max(ReLU)


def _fc_stack_kernel(x_ref, w1_ref, b1_ref, w2_ref, b2_ref, w3_ref, b3_ref, o_ref):
    """fc1+ReLU -> fc2+ReLU -> fc3 fused in one VMEM-resident call (128 lanes)."""
    h = jnp.dot(x_ref[...], w1_ref[...], preferred_element_type=jnp.float32) + b1_ref[...]
    h = jnp.maximum(h, 0.0).astype(MXU_DTYPE)
    h = jnp.dot(h, w2_ref[...], preferred_element_type=jnp.float32) + b2_ref[...]
    h = jnp.maximum(h, 0.0).astype(MXU_DTYPE)
    o_ref[...] = jnp.dot(h, w3_ref[...], preferred_element_type=jnp.float32) + b3_ref[...]


# ----------------------------------------------------------------------------
# XLA glue: pooling-window-grouped im2col
# ----------------------------------------------------------------------------
def im2col_pool_quadrants(x, ksize, pool, k_pad):
    """x: (N,H,W,C) f32 -> (pool*pool, N*PH*PW, k_pad) patches in MXU_DTYPE.

    Leading axis holds the pool*pool members of each pooling window so the conv
    kernel can fuse max-pool as an epilogue over unit-stride slabs.  Columns are
    ordered (c, kh, kw) to match torch weight.reshape(O, -1); zero-padded to k_pad.
    """
    n, h, w, c = x.shape
    ho, wo = h - ksize + 1, w - ksize + 1
    ph, pw = ho // pool, wo // pool
    taps = []
    for di in range(ksize):
        for dj in range(ksize):
            taps.append(x[:, di:di + ho, dj:dj + wo, :])      # (N, Ho, Wo, C)
    p = jnp.stack(taps, axis=-1)                              # (N, Ho, Wo, C, k*k)
    p = p.reshape(n, ho, wo, c * ksize * ksize)               # cols = (c, kh, kw)
    p = p.reshape(n, ph, pool, pw, pool, c * ksize * ksize)
    p = jnp.transpose(p, (2, 4, 0, 1, 3, 5))                  # (pool, pool, N, PH, PW, K)
    p = p.reshape(pool * pool, n * ph * pw, c * ksize * ksize)
    kk = c * ksize * ksize
    if k_pad > kk:
        p = jnp.pad(p, ((0, 0), (0, 0), (0, k_pad - kk)))
    return p.astype(MXU_DTYPE), (n, ph, pw)


# ----------------------------------------------------------------------------
# pallas_call wrappers
# ----------------------------------------------------------------------------
def conv_stage(x_nhwc, stage, *, tile_m=TILE_M):
    """Conv(k=5, valid) + BN(inference) + ReLU + MaxPool(2,2) -> (N*PH*PW, 128)."""
    w_p, scale_p, shift_p = stage["w"], stage["scale"], stage["shift"]
    k_pad = w_p.shape[0]
    p, (n, ph, pw) = im2col_pool_quadrants(x_nhwc, stage["ksize"], 2, k_pad)
    mo = n * ph * pw
    tm = mo if mo <= tile_m else tile_m          # full block, or tiled (mult of 8/16)
    out = pl.pallas_call(
        _conv_stage_kernel,
        out_shape=jax.ShapeDtypeStruct((mo, LANES), jnp.float32),
        grid=(pl.cdiv(mo, tm),),
        in_specs=[
            pl.BlockSpec((4, tm, k_pad), lambda i: (0, i, 0)),
            pl.BlockSpec((k_pad, LANES), lambda i: (0, 0)),
            pl.BlockSpec((1, LANES), lambda i: (0, 0)),
            pl.BlockSpec((1, LANES), lambda i: (0, 0)),
        ],
        out_specs=pl.BlockSpec((tm, LANES), lambda i: (i, 0)),
        compiler_params=pltpu.CompilerParams(dimension_semantics=("parallel",)),
    )(p, w_p, scale_p, shift_p)
    return out, (n, ph, pw)


def fc_stack(x, fc):
    """x: (N, K1) -> (N, 128) logits (first fc['out_dim'] lanes valid)."""
    n, k1 = x.shape
    tb = n if n <= 256 else 256
    return pl.pallas_call(
        _fc_stack_kernel,
        out_shape=jax.ShapeDtypeStruct((n, LANES), jnp.float32),
        grid=(pl.cdiv(n, tb),),
        in_specs=[
            pl.BlockSpec((tb, k1), lambda i: (i, 0)),
            pl.BlockSpec((k1, LANES), lambda i: (0, 0)),
            pl.BlockSpec((1, LANES), lambda i: (0, 0)),
            pl.BlockSpec((LANES, LANES), lambda i: (0, 0)),
            pl.BlockSpec((1, LANES), lambda i: (0, 0)),
            pl.BlockSpec((LANES, LANES), lambda i: (0, 0)),
            pl.BlockSpec((1, LANES), lambda i: (0, 0)),
        ],
        out_specs=pl.BlockSpec((tb, LANES), lambda i: (i, 0)),
        compiler_params=pltpu.CompilerParams(dimension_semantics=("parallel",)),
    )(x, fc["w1"], fc["b1"], fc["w2"], fc["b2"], fc["w3"], fc["b3"])


# ----------------------------------------------------------------------------
# One-time parameter prep: BN folding, K/N padding to 128, fc1 column permutation
# ----------------------------------------------------------------------------
def prepare_lenet_params(p):
    def conv_stage_params(w, b, g, be, m, v):
        o, c, kh, kw = w.shape
        kk = c * kh * kw
        k_pad = _round_up(kk, LANES)
        w2d = w.reshape(o, kk).T.astype(jnp.float32)                  # (kk, O), (c,kh,kw) order
        scale = (g / jnp.sqrt(v + BN_EPS)).astype(jnp.float32)
        shift = ((b - m) * scale + be).astype(jnp.float32)
        w_p = jnp.zeros((k_pad, LANES), jnp.float32).at[:kk, :o].set(w2d)
        s_p = jnp.zeros((1, LANES), jnp.float32).at[0, :o].set(scale)
        sh_p = jnp.zeros((1, LANES), jnp.float32).at[0, :o].set(shift)
        return {"w": w_p.astype(MXU_DTYPE), "scale": s_p, "shift": sh_p,
                "ksize": int(kh), "c_out": int(o)}

    s1 = conv_stage_params(p["conv1_w"], p["conv1_b"], p["bn1_gamma"],
                           p["bn1_beta"], p["bn1_mean"], p["bn1_var"])
    s2 = conv_stage_params(p["conv2_w"], p["conv2_b"], p["bn2_gamma"],
                           p["bn2_beta"], p["bn2_mean"], p["bn2_var"])

    # FC stack: pad every layer to 128 lanes; permute fc1's columns (PyTorch
    # NCHW-flatten order (c,h,w)) so the kernel consumes the pooled activation
    # in its native (h, w, c_pad) layout -- no runtime transpose.
    d1, d2, d3 = p["fc1_w"].shape[0], p["fc2_w"].shape[0], p["fc3_w"].shape[0]
    c2 = s2["c_out"]
    side = int(round((p["fc1_w"].shape[1] // c2) ** 0.5))
    assert side * side * c2 == p["fc1_w"].shape[1]
    spatial = side * side

    fc1 = p["fc1_w"].reshape(d1, c2, side, side)          # (d1, C, H, W)
    fc1 = jnp.transpose(fc1, (2, 3, 1, 0))                # (H, W, C, d1)
    w1 = jnp.zeros((spatial, LANES, LANES), jnp.float32)
    w1 = w1.at[:, :c2, :d1].set(fc1.reshape(spatial, c2, d1))
    w1 = w1.reshape(spatial * LANES, LANES)
    b1 = jnp.zeros((1, LANES), jnp.float32).at[0, :d1].set(p["fc1_b"])

    w2 = jnp.zeros((LANES, LANES), jnp.float32).at[:d1, :d2].set(p["fc2_w"].T)
    b2 = jnp.zeros((1, LANES), jnp.float32).at[0, :d2].set(p["fc2_b"])
    w3 = jnp.zeros((LANES, LANES), jnp.float32).at[:d2, :d3].set(p["fc3_w"].T)
    b3 = jnp.zeros((1, LANES), jnp.float32).at[0, :d3].set(p["fc3_b"])

    fc = {"w1": w1.astype(MXU_DTYPE), "b1": b1,
          "w2": w2.astype(MXU_DTYPE), "b2": b2,
          "w3": w3.astype(MXU_DTYPE), "b3": b3,
          "out_dim": int(d3)}
    return {"s1": s1, "s2": s2, "fc": fc}


# ----------------------------------------------------------------------------
# Full forward
# ----------------------------------------------------------------------------
def lenet_forward(x_nchw, prep):
    x = jnp.transpose(x_nchw, (0, 2, 3, 1)).astype(jnp.float32)      # NCHW -> NHWC

    # Stage 1: conv1 + BN1 + ReLU + pool -> rows (n, 14, 14), 128 lanes (6 valid)
    y1, (n, h1, w1) = conv_stage(x, prep["s1"])
    a1 = y1.reshape(n, h1, w1, LANES)[..., :prep["s1"]["c_out"]]     # (N, 14, 14, 6)

    # Stage 2: conv2 + BN2 + ReLU + pool -> rows (n, 5, 5), 128 lanes (16 valid)
    y2, (n, h2, w2) = conv_stage(a1, prep["s2"])

    # Flatten per sample in (h, w, c_pad) order (pure metadata reshape);
    # fc1 weights were pre-permuted to this order, padded lanes hit zero rows.
    h = y2.reshape(n, h2 * w2 * LANES).astype(MXU_DTYPE)

    logits_p = fc_stack(h, prep["fc"])                               # (N, 128)
    return logits_p[:, :prep["fc"]["out_dim"]]                       # (N, 10)


# ----------------------------------------------------------------------------
# Pure-JAX reference (mirrors the MXU-operand rounding for a tight comparison)
# ----------------------------------------------------------------------------
def lenet_reference(x, p, mxu_dtype=jnp.float32):
    r = lambda a: a.astype(mxu_dtype).astype(jnp.float32)

    def conv(x, w, b):
        y = jax.lax.conv_general_dilated(
            r(x), r(w), window_strides=(1, 1), padding="VALID",
            dimension_numbers=("NCHW", "OIHW", "NCHW"))
        return y + b[None, :, None, None]

    def bn(x, g, be, m, v):
        return (x - m[None, :, None, None]) / jnp.sqrt(v[None, :, None, None] + BN_EPS) \
            * g[None, :, None, None] + be[None, :, None, None]

    def pool(x):
        return jax.lax.reduce_window(x, -jnp.inf, jax.lax.max,
                                     (1, 1, 2, 2), (1, 1, 2, 2), "VALID")

    y = pool(jax.nn.relu(bn(conv(x, p["conv1_w"], p["conv1_b"]),
                            p["bn1_gamma"], p["bn1_beta"], p["bn1_mean"], p["bn1_var"])))
    y = pool(jax.nn.relu(bn(conv(y, p["conv2_w"], p["conv2_b"]),
                            p["bn2_gamma"], p["bn2_beta"], p["bn2_mean"], p["bn2_var"])))
    y = y.reshape(y.shape[0], -1)
    y = jax.nn.relu(r(y) @ r(p["fc1_w"].T) + p["fc1_b"])
    y = jax.nn.relu(r(y) @ r(p["fc2_w"].T) + p["fc2_b"])
    return r(y) @ r(p["fc3_w"].T) + p["fc3_b"]


# ----------------------------------------------------------------------------
# Deterministic synthetic parameters (no checkpoint load)
# ----------------------------------------------------------------------------
def init_params(key):
    ks = jax.random.split(key, 20)
    f32 = jnp.float32

    def nrm(k, shape, s=0.1):
        return (s * jax.random.normal(k, shape)).astype(f32)

    return {
        "conv1_w": nrm(ks[0], (6, 3, 5, 5)), "conv1_b": nrm(ks[1], (6,)),
        "bn1_gamma": (1.0 + nrm(ks[2], (6,))), "bn1_beta": nrm(ks[3], (6,)),
        "bn1_mean": nrm(ks[4], (6,)), "bn1_var": (0.5 + jnp.abs(nrm(ks[5], (6,), 1.0))),
        "conv2_w": nrm(ks[6], (16, 6, 5, 5)), "conv2_b": nrm(ks[7], (16,)),
        "bn2_gamma": (1.0 + nrm(ks[8], (16,))), "bn2_beta": nrm(ks[9], (16,)),
        "bn2_mean": nrm(ks[10], (16,)), "bn2_var": (0.5 + jnp.abs(nrm(ks[11], (16,), 1.0))),
        "fc1_w": nrm(ks[12], (120, 400)), "fc1_b": nrm(ks[13], (120,)),
        "fc2_w": nrm(ks[14], (84, 120)), "fc2_b": nrm(ks[15], (84,)),
        "fc3_w": nrm(ks[16], (10, 84)), "fc3_b": nrm(ks[17], (10,)),
    }


if __name__ == "__main__":
    key = jax.random.PRNGKey(0)
    pkey, xkey = jax.random.split(key)
    params = init_params(pkey)
    prep = prepare_lenet_params(params)    # one-time host-side fold / pad / cast

    # batch=2, CIFAR-10 input implied by the model (3 x 32 x 32), NCHW.
    x = jax.random.normal(xkey, (2, 3, 32, 32), dtype=jnp.float32)

    fwd = jax.jit(lambda inp: lenet_forward(inp, prep))
    out = jax.block_until_ready(fwd(x))
    assert out.shape == (2, 10), out.shape

    ref = jax.block_until_ready(lenet_reference(x, params, MXU_DTYPE))
    np.testing.assert_allclose(np.asarray(out, dtype=np.float32),
                               np.asarray(ref, dtype=np.float32),
                               rtol=1e-2, atol=1e-2)

    print("KERNEL_OK")
</pallas_src>

<mosaic_0001>
module attributes {stable_mosaic.version = 11 : i64} {
  func.func @_conv_stage_kernel(%arg0: i32, %arg1: memref<4x256x128xbf16, #tpu.memory_space<vmem>>, %arg2: memref<128x128xbf16, #tpu.memory_space<vmem>>, %arg3: memref<1x128xf32, #tpu.memory_space<vmem>>, %arg4: memref<1x128xf32, #tpu.memory_space<vmem>>, %arg5: memref<256x128xf32, #tpu.memory_space<vmem>>) attributes {dimension_semantics = [#tpu.dimension_semantics<parallel>], iteration_bounds = array<i64: 2>, scalar_prefetch = 0 : i64, scratch_operands = 0 : i64, tpu.core_type = #tpu.core_type<tc>, window_params = [{transform_indices = @transform_0, window_bounds = array<i64: 4, 256, 128>}, {pipeline_mode = #tpu.pipeline_mode<synchronous>, transform_indices = @transform_1, window_bounds = array<i64: 128, 128>}, {pipeline_mode = #tpu.pipeline_mode<synchronous>, transform_indices = @transform_2, window_bounds = array<i64: 1, 128>}, {pipeline_mode = #tpu.pipeline_mode<synchronous>, transform_indices = @transform_3, window_bounds = array<i64: 1, 128>}, {transform_indices = @transform_4, window_bounds = array<i64: 256, 128>}]} {
    %c0 = arith.constant 0 : index
    %c0_0 = arith.constant 0 : index
    %0 = vector.load %arg2[%c0, %c0_0] : memref<128x128xbf16, #tpu.memory_space<vmem>>, vector<128x128xbf16>
    %c0_1 = arith.constant 0 : index
    %c0_2 = arith.constant 0 : index
    %1 = vector.load %arg3[%c0_1, %c0_2] : memref<1x128xf32, #tpu.memory_space<vmem>>, vector<1x128xf32>
    %c0_3 = arith.constant 0 : index
    %c0_4 = arith.constant 0 : index
    %2 = vector.load %arg4[%c0_3, %c0_4] : memref<1x128xf32, #tpu.memory_space<vmem>>, vector<1x128xf32>
    %c0_5 = arith.constant 0 : index
    %c0_6 = arith.constant 0 : index
    %c0_7 = arith.constant 0 : index
    %3 = vector.load %arg1[%c0_5, %c0_6, %c0_7] : memref<4x256x128xbf16, #tpu.memory_space<vmem>>, vector<1x256x128xbf16>
    %4 = vector.shape_cast %3 : vector<1x256x128xbf16> to vector<256x128xbf16>
    %cst = arith.constant dense<0.000000e+00> : vector<256x128xf32>
    %5 = tpu.matmul %4, %0, %cst {dimension_numbers = #tpu.dot_dimension_numbers<[1], [0], [0], [1], [0, 0, 1, 1], [], []>} : vector<256x128xbf16>, vector<128x128xbf16>, vector<256x128xf32> -> vector<256x128xf32>
    %6 = vector.broadcast %1 : vector<1x128xf32> to vector<256x128xf32>
    %7 = arith.mulf %5, %6 : vector<256x128xf32>
    %8 = vector.broadcast %2 : vector<1x128xf32> to vector<256x128xf32>
    %9 = arith.addf %7, %8 : vector<256x128xf32>
    %c1 = arith.constant 1 : index
    %c0_8 = arith.constant 0 : index
    %c0_9 = arith.constant 0 : index
    %10 = vector.load %arg1[%c1, %c0_8, %c0_9] : memref<4x256x128xbf16, #tpu.memory_space<vmem>>, vector<1x256x128xbf16>
    %11 = vector.shape_cast %10 : vector<1x256x128xbf16> to vector<256x128xbf16>
    %cst_10 = arith.constant dense<0.000000e+00> : vector<256x128xf32>
    %12 = tpu.matmul %11, %0, %cst_10 {dimension_numbers = #tpu.dot_dimension_numbers<[1], [0], [0], [1], [0, 0, 1, 1], [], []>} : vector<256x128xbf16>, vector<128x128xbf16>, vector<256x128xf32> -> vector<256x128xf32>
    %13 = vector.broadcast %1 : vector<1x128xf32> to vector<256x128xf32>
    %14 = arith.mulf %12, %13 : vector<256x128xf32>
    %15 = vector.broadcast %2 : vector<1x128xf32> to vector<256x128xf32>
    %16 = arith.addf %14, %15 : vector<256x128xf32>
    %17 = arith.maximumf %9, %16 : vector<256x128xf32>
    %c2 = arith.constant 2 : index
    %c0_11 = arith.constant 0 : index
    %c0_12 = arith.constant 0 : index
    %18 = vector.load %arg1[%c2, %c0_11, %c0_12] : memref<4x256x128xbf16, #tpu.memory_space<vmem>>, vector<1x256x128xbf16>
    %19 = vector.shape_cast %18 : vector<1x256x128xbf16> to vector<256x128xbf16>
    %cst_13 = arith.constant dense<0.000000e+00> : vector<256x128xf32>
    %20 = tpu.matmul %19, %0, %cst_13 {dimension_numbers = #tpu.dot_dimension_numbers<[1], [0], [0], [1], [0, 0, 1, 1], [], []>} : vector<256x128xbf16>, vector<128x128xbf16>, vector<256x128xf32> -> vector<256x128xf32>
    %21 = vector.broadcast %1 : vector<1x128xf32> to vector<256x128xf32>
    %22 = arith.mulf %20, %21 : vector<256x128xf32>
    %23 = vector.broadcast %2 : vector<1x128xf32> to vector<256x128xf32>
    %24 = arith.addf %22, %23 : vector<256x128xf32>
    %c3 = arith.constant 3 : index
    %c0_14 = arith.constant 0 : index
    %c0_15 = arith.constant 0 : index
    %25 = vector.load %arg1[%c3, %c0_14, %c0_15] : memref<4x256x128xbf16, #tpu.memory_space<vmem>>, vector<1x256x128xbf16>
    %26 = vector.shape_cast %25 : vector<1x256x128xbf16> to vector<256x128xbf16>
    %cst_16 = arith.constant dense<0.000000e+00> : vector<256x128xf32>
    %27 = tpu.matmul %26, %0, %cst_16 {dimension_numbers = #tpu.dot_dimension_numbers<[1], [0], [0], [1], [0, 0, 1, 1], [], []>} : vector<256x128xbf16>, vector<128x128xbf16>, vector<256x128xf32> -> vector<256x128xf32>
    %28 = vector.broadcast %1 : vector<1x128xf32> to vector<256x128xf32>
    %29 = arith.mulf %27, %28 : vector<256x128xf32>
    %30 = vector.broadcast %2 : vector<1x128xf32> to vector<256x128xf32>
    %31 = arith.addf %29, %30 : vector<256x128xf32>
    %32 = arith.maximumf %24, %31 : vector<256x128xf32>
    %33 = arith.maximumf %17, %32 : vector<256x128xf32>
    %cst_17 = arith.constant 0.000000e+00 : f32
    %34 = vector.broadcast %cst_17 : f32 to vector<256x128xf32>
    %35 = arith.maximumf %33, %34 : vector<256x128xf32>
    %c0_18 = arith.constant 0 : index
    %c0_19 = arith.constant 0 : index
    %36 = vector.load %arg5[%c0_18, %c0_19] : memref<256x128xf32, #tpu.memory_space<vmem>>, vector<256x128xf32>
    tpu.vector_store %arg5[%c0_18, %c0_19], %35 {strides = array<i32>} : memref<256x128xf32, #tpu.memory_space<vmem>>, vector<256x128xf32>,
    return
  }
  func.func @transform_0(%arg0: i32) -> (i32, i32, i32) {
    %c0_i32 = arith.constant 0 : i32
    %c0_i32_0 = arith.constant 0 : i32
    %c0_i32_1 = arith.constant 0 : i32
    return %c0_i32, %arg0, %c0_i32_0 : i32, i32, i32
  }
  func.func @transform_1(%arg0: i32) -> (i32, i32) {
    %c0_i32 = arith.constant 0 : i32
    %c0_i32_0 = arith.constant 0 : i32
    %c0_i32_1 = arith.constant 0 : i32
    return %c0_i32, %c0_i32_0 : i32, i32
  }
  func.func @transform_2(%arg0: i32) -> (i32, i32) {
    %c0_i32 = arith.constant 0 : i32
    %c0_i32_0 = arith.constant 0 : i32
    %c0_i32_1 = arith.constant 0 : i32
    return %c0_i32, %c0_i32_0 : i32, i32
  }
  func.func @transform_3(%arg0: i32) -> (i32, i32) {
    %c0_i32 = arith.constant 0 : i32
    %c0_i32_0 = arith.constant 0 : i32
    %c0_i32_1 = arith.constant 0 : i32
    return %c0_i32, %c0_i32_0 : i32, i32
  }
  func.func @transform_4(%arg0: i32) -> (i32, i32) {
    %c0_i32 = arith.constant 0 : i32
    %c0_i32_0 = arith.constant 0 : i32
    return %arg0, %c0_i32 : i32, i32
  }
}

module attributes {stable_mosaic.version = 11 : i64} {
  func.func @_conv_stage_kernel(%arg0: i32, %arg1: memref<4x50x256xbf16, #tpu.memory_space<vmem>>, %arg2: memref<256x128xbf16, #tpu.memory_space<vmem>>, %arg3: memref<1x128xf32, #tpu.memory_space<vmem>>, %arg4: memref<1x128xf32, #tpu.memory_space<vmem>>, %arg5: memref<50x128xf32, #tpu.memory_space<vmem>>) attributes {dimension_semantics = [#tpu.dimension_semantics<parallel>], iteration_bounds = array<i64: 1>, scalar_prefetch = 0 : i64, scratch_operands = 0 : i64, tpu.core_type = #tpu.core_type<tc>, window_params = [{transform_indices = @transform_0, window_bounds = array<i64: 4, 50, 256>}, {pipeline_mode = #tpu.pipeline_mode<synchronous>, transform_indices = @transform_1, window_bounds = array<i64: 256, 128>}, {pipeline_mode = #tpu.pipeline_mode<synchronous>, transform_indices = @transform_2, window_bounds = array<i64: 1, 128>}, {pipeline_mode = #tpu.pipeline_mode<synchronous>, transform_indices = @transform_3, window_bounds = array<i64: 1, 128>}, {transform_indices = @transform_4, window_bounds = array<i64: 50, 128>}]} {
    %c0 = arith.constant 0 : index
    %c0_0 = arith.constant 0 : index
    %0 = vector.load %arg2[%c0, %c0_0] : memref<256x128xbf16, #tpu.memory_space<vmem>>, vector<256x128xbf16>
    %c0_1 = arith.constant 0 : index
    %c0_2 = arith.constant 0 : index
    %1 = vector.load %arg3[%c0_1, %c0_2] : memref<1x128xf32, #tpu.memory_space<vmem>>, vector<1x128xf32>
    %c0_3 = arith.constant 0 : index
    %c0_4 = arith.constant 0 : index
    %2 = vector.load %arg4[%c0_3, %c0_4] : memref<1x128xf32, #tpu.memory_space<vmem>>, vector<1x128xf32>
    %c0_5 = arith.constant 0 : index
    %c0_6 = arith.constant 0 : index
    %c0_7 = arith.constant 0 : index
    %3 = vector.load %arg1[%c0_5, %c0_6, %c0_7] : memref<4x50x256xbf16, #tpu.memory_space<vmem>>, vector<1x50x256xbf16>
    %4 = vector.shape_cast %3 : vector<1x50x256xbf16> to vector<50x256xbf16>
    %cst = arith.constant dense<0.000000e+00> : vector<50x128xf32>
    %5 = tpu.matmul %4, %0, %cst {dimension_numbers = #tpu.dot_dimension_numbers<[1], [0], [0], [1], [0, 0, 1, 1], [], []>} : vector<50x256xbf16>, vector<256x128xbf16>, vector<50x128xf32> -> vector<50x128xf32>
    %6 = vector.broadcast %1 : vector<1x128xf32> to vector<50x128xf32>
    %7 = arith.mulf %5, %6 : vector<50x128xf32>
    %8 = vector.broadcast %2 : vector<1x128xf32> to vector<50x128xf32>
    %9 = arith.addf %7, %8 : vector<50x128xf32>
    %c1 = arith.constant 1 : index
    %c0_8 = arith.constant 0 : index
    %c0_9 = arith.constant 0 : index
    %10 = vector.load %arg1[%c1, %c0_8, %c0_9] : memref<4x50x256xbf16, #tpu.memory_space<vmem>>, vector<1x50x256xbf16>
    %11 = vector.shape_cast %10 : vector<1x50x256xbf16> to vector<50x256xbf16>
    %cst_10 = arith.constant dense<0.000000e+00> : vector<50x128xf32>
    %12 = tpu.matmul %11, %0, %cst_10 {dimension_numbers = #tpu.dot_dimension_numbers<[1], [0], [0], [1], [0, 0, 1, 1], [], []>} : vector<50x256xbf16>, vector<256x128xbf16>, vector<50x128xf32> -> vector<50x128xf32>
    %13 = vector.broadcast %1 : vector<1x128xf32> to vector<50x128xf32>
    %14 = arith.mulf %12, %13 : vector<50x128xf32>
    %15 = vector.broadcast %2 : vector<1x128xf32> to vector<50x128xf32>
    %16 = arith.addf %14, %15 : vector<50x128xf32>
    %17 = arith.maximumf %9, %16 : vector<50x128xf32>
    %c2 = arith.constant 2 : index
    %c0_11 = arith.constant 0 : index
    %c0_12 = arith.constant 0 : index
    %18 = vector.load %arg1[%c2, %c0_11, %c0_12] : memref<4x50x256xbf16, #tpu.memory_space<vmem>>, vector<1x50x256xbf16>
    %19 = vector.shape_cast %18 : vector<1x50x256xbf16> to vector<50x256xbf16>
    %cst_13 = arith.constant dense<0.000000e+00> : vector<50x128xf32>
    %20 = tpu.matmul %19, %0, %cst_13 {dimension_numbers = #tpu.dot_dimension_numbers<[1], [0], [0], [1], [0, 0, 1, 1], [], []>} : vector<50x256xbf16>, vector<256x128xbf16>, vector<50x128xf32> -> vector<50x128xf32>
    %21 = vector.broadcast %1 : vector<1x128xf32> to vector<50x128xf32>
    %22 = arith.mulf %20, %21 : vector<50x128xf32>
    %23 = vector.broadcast %2 : vector<1x128xf32> to vector<50x128xf32>
    %24 = arith.addf %22, %23 : vector<50x128xf32>
    %c3 = arith.constant 3 : index
    %c0_14 = arith.constant 0 : index
    %c0_15 = arith.constant 0 : index
    %25 = vector.load %arg1[%c3, %c0_14, %c0_15] : memref<4x50x256xbf16, #tpu.memory_space<vmem>>, vector<1x50x256xbf16>
    %26 = vector.shape_cast %25 : vector<1x50x256xbf16> to vector<50x256xbf16>
    %cst_16 = arith.constant dense<0.000000e+00> : vector<50x128xf32>
    %27 = tpu.matmul %26, %0, %cst_16 {dimension_numbers = #tpu.dot_dimension_numbers<[1], [0], [0], [1], [0, 0, 1, 1], [], []>} : vector<50x256xbf16>, vector<256x128xbf16>, vector<50x128xf32> -> vector<50x128xf32>
    %28 = vector.broadcast %1 : vector<1x128xf32> to vector<50x128xf32>
    %29 = arith.mulf %27, %28 : vector<50x128xf32>
    %30 = vector.broadcast %2 : vector<1x128xf32> to vector<50x128xf32>
    %31 = arith.addf %29, %30 : vector<50x128xf32>
    %32 = arith.maximumf %24, %31 : vector<50x128xf32>
    %33 = arith.maximumf %17, %32 : vector<50x128xf32>
    %cst_17 = arith.constant 0.000000e+00 : f32
    %34 = vector.broadcast %cst_17 : f32 to vector<50x128xf32>
    %35 = arith.maximumf %33, %34 : vector<50x128xf32>
    %c0_18 = arith.constant 0 : index
    %c0_19 = arith.constant 0 : index
    %36 = vector.load %arg5[%c0_18, %c0_19] : memref<50x128xf32, #tpu.memory_space<vmem>>, vector<50x128xf32>
    tpu.vector_store %arg5[%c0_18, %c0_19], %35 {strides = array<i32>} : memref<50x128xf32, #tpu.memory_space<vmem>>, vector<50x128xf32>,
    return
  }
  func.func @transform_0(%arg0: i32) -> (i32, i32, i32) {
    %c0_i32 = arith.constant 0 : i32
    %c0_i32_0 = arith.constant 0 : i32
    %c0_i32_1 = arith.constant 0 : i32
    return %c0_i32, %arg0, %c0_i32_0 : i32, i32, i32
  }
  func.func @transform_1(%arg0: i32) -> (i32, i32) {
    %c0_i32 = arith.constant 0 : i32
    %c0_i32_0 = arith.constant 0 : i32
    %c0_i32_1 = arith.constant 0 : i32
    return %c0_i32, %c0_i32_0 : i32, i32
  }
  func.func @transform_2(%arg0: i32) -> (i32, i32) {
    %c0_i32 = arith.constant 0 : i32
    %c0_i32_0 = arith.constant 0 : i32
    %c0_i32_1 = arith.constant 0 : i32
    return %c0_i32, %c0_i32_0 : i32, i32
  }
  func.func @transform_3(%arg0: i32) -> (i32, i32) {
    %c0_i32 = arith.constant 0 : i32
    %c0_i32_0 = arith.constant 0 : i32
    %c0_i32_1 = arith.constant 0 : i32
    return %c0_i32, %c0_i32_0 : i32, i32
  }
  func.func @transform_4(%arg0: i32) -> (i32, i32) {
    %c0_i32 = arith.constant 0 : i32
    %c0_i32_0 = arith.constant 0 : i32
    return %arg0, %c0_i32 : i32, i32
  }
}

module attributes {stable_mosaic.version = 11 : i64} {
  func.func @_fc_stack_kernel(%arg0: i32, %arg1: memref<2x3200xbf16, #tpu.memory_space<vmem>>, %arg2: memref<3200x128xbf16, #tpu.memory_space<vmem>>, %arg3: memref<1x128xf32, #tpu.memory_space<vmem>>, %arg4: memref<128x128xbf16, #tpu.memory_space<vmem>>, %arg5: memref<1x128xf32, #tpu.memory_space<vmem>>, %arg6: memref<128x128xbf16, #tpu.memory_space<vmem>>, %arg7: memref<1x128xf32, #tpu.memory_space<vmem>>, %arg8: memref<2x128xf32, #tpu.memory_space<vmem>>) attributes {dimension_semantics = [#tpu.dimension_semantics<parallel>], iteration_bounds = array<i64: 1>, scalar_prefetch = 0 : i64, scratch_operands = 0 : i64, tpu.core_type = #tpu.core_type<tc>, window_params = [{transform_indices = @transform_0, window_bounds = array<i64: 2, 3200>}, {pipeline_mode = #tpu.pipeline_mode<synchronous>, transform_indices = @transform_1, window_bounds = array<i64: 3200, 128>}, {pipeline_mode = #tpu.pipeline_mode<synchronous>, transform_indices = @transform_2, window_bounds = array<i64: 1, 128>}, {pipeline_mode = #tpu.pipeline_mode<synchronous>, transform_indices = @transform_3, window_bounds = array<i64: 128, 128>}, {pipeline_mode = #tpu.pipeline_mode<synchronous>, transform_indices = @transform_4, window_bounds = array<i64: 1, 128>}, {pipeline_mode = #tpu.pipeline_mode<synchronous>, transform_indices = @transform_5, window_bounds = array<i64: 128, 128>}, {pipeline_mode = #tpu.pipeline_mode<synchronous>, transform_indices = @transform_6, window_bounds = array<i64: 1, 128>}, {transform_indices = @transform_7, window_bounds = array<i64: 2, 128>}]} {
    %c0 = arith.constant 0 : index
    %c0_0 = arith.constant 0 : index
    %0 = vector.load %arg1[%c0, %c0_0] : memref<2x3200xbf16, #tpu.memory_space<vmem>>, vector<2x3200xbf16>
    %c0_1 = arith.constant 0 : index
    %c0_2 = arith.constant 0 : index
    %1 = vector.load %arg2[%c0_1, %c0_2] : memref<3200x128xbf16, #tpu.memory_space<vmem>>, vector<3200x128xbf16>
    %cst = arith.constant dense<0.000000e+00> : vector<2x128xf32>
    %2 = tpu.matmul %0, %1, %cst {dimension_numbers = #tpu.dot_dimension_numbers<[1], [0], [0], [1], [0, 0, 1, 1], [], []>} : vector<2x3200xbf16>, vector<3200x128xbf16>, vector<2x128xf32> -> vector<2x128xf32>
    %c0_3 = arith.constant 0 : index
    %c0_4 = arith.constant 0 : index
    %3 = vector.load %arg3[%c0_3, %c0_4] : memref<1x128xf32, #tpu.memory_space<vmem>>, vector<1x128xf32>
    %4 = vector.broadcast %3 : vector<1x128xf32> to vector<2x128xf32>
    %5 = arith.addf %2, %4 : vector<2x128xf32>
    %cst_5 = arith.constant 0.000000e+00 : f32
    %6 = vector.broadcast %cst_5 : f32 to vector<2x128xf32>
    %7 = arith.maximumf %5, %6 : vector<2x128xf32>
    %8 = arith.truncf %7 : vector<2x128xf32> to vector<2x128xbf16>
    %c0_6 = arith.constant 0 : index
    %c0_7 = arith.constant 0 : index
    %9 = vector.load %arg4[%c0_6, %c0_7] : memref<128x128xbf16, #tpu.memory_space<vmem>>, vector<128x128xbf16>
    %cst_8 = arith.constant dense<0.000000e+00> : vector<2x128xf32>
    %10 = tpu.matmul %8, %9, %cst_8 {dimension_numbers = #tpu.dot_dimension_numbers<[1], [0], [0], [1], [0, 0, 1, 1], [], []>} : vector<2x128xbf16>, vector<128x128xbf16>, vector<2x128xf32> -> vector<2x128xf32>
    %c0_9 = arith.constant 0 : index
    %c0_10 = arith.constant 0 : index
    %11 = vector.load %arg5[%c0_9, %c0_10] : memref<1x128xf32, #tpu.memory_space<vmem>>, vector<1x128xf32>
    %12 = vector.broadcast %11 : vector<1x128xf32> to vector<2x128xf32>
    %13 = arith.addf %10, %12 : vector<2x128xf32>
    %cst_11 = arith.constant 0.000000e+00 : f32
    %14 = vector.broadcast %cst_11 : f32 to vector<2x128xf32>
    %15 = arith.maximumf %13, %14 : vector<2x128xf32>
    %16 = arith.truncf %15 : vector<2x128xf32> to vector<2x128xbf16>
    %c0_12 = arith.constant 0 : index
    %c0_13 = arith.constant 0 : index
    %17 = vector.load %arg6[%c0_12, %c0_13] : memref<128x128xbf16, #tpu.memory_space<vmem>>, vector<128x128xbf16>
    %cst_14 = arith.constant dense<0.000000e+00> : vector<2x128xf32>
    %18 = tpu.matmul %16, %17, %cst_14 {dimension_numbers = #tpu.dot_dimension_numbers<[1], [0], [0], [1], [0, 0, 1, 1], [], []>} : vector<2x128xbf16>, vector<128x128xbf16>, vector<2x128xf32> -> vector<2x128xf32>
    %c0_15 = arith.constant 0 : index
    %c0_16 = arith.constant 0 : index
    %19 = vector.load %arg7[%c0_15, %c0_16] : memref<1x128xf32, #tpu.memory_space<vmem>>, vector<1x128xf32>
    %20 = vector.broadcast %19 : vector<1x128xf32> to vector<2x128xf32>
    %21 = arith.addf %18, %20 : vector<2x128xf32>
    %c0_17 = arith.constant 0 : index
    %c0_18 = arith.constant 0 : index
    %22 = vector.load %arg8[%c0_17, %c0_18] : memref<2x128xf32, #tpu.memory_space<vmem>>, vector<2x128xf32>
    tpu.vector_store %arg8[%c0_17, %c0_18], %21 {strides = array<i32>} : memref<2x128xf32, #tpu.memory_space<vmem>>, vector<2x128xf32>,
    return
  }
  func.func @transform_0(%arg0: i32) -> (i32, i32) {
    %c0_i32 = arith.constant 0 : i32
    %c0_i32_0 = arith.constant 0 : i32
    return %arg0, %c0_i32 : i32, i32
  }
  func.func @transform_1(%arg0: i32) -> (i32, i32) {
    %c0_i32 = arith.constant 0 : i32
    %c0_i32_0 = arith.constant 0 : i32
    %c0_i32_1 = arith.constant 0 : i32
    return %c0_i32, %c0_i32_0 : i32, i32
  }
  func.func @transform_2(%arg0: i32) -> (i32, i32) {
    %c0_i32 = arith.constant 0 : i32
    %c0_i32_0 = arith.constant 0 : i32
    %c0_i32_1 = arith.constant 0 : i32
    return %c0_i32, %c0_i32_0 : i32, i32
  }
  func.func @transform_3(%arg0: i32) -> (i32, i32) {
    %c0_i32 = arith.constant 0 : i32
    %c0_i32_0 = arith.constant 0 : i32
    %c0_i32_1 = arith.constant 0 : i32
    return %c0_i32, %c0_i32_0 : i32, i32
  }
  func.func @transform_4(%arg0: i32) -> (i32, i32) {
    %c0_i32 = arith.constant 0 : i32
    %c0_i32_0 = arith.constant 0 : i32
    %c0_i32_1 = arith.constant 0 : i32
    return %c0_i32, %c0_i32_0 : i32, i32
  }
  func.func @transform_5(%arg0: i32) -> (i32, i32) {
    %c0_i32 = arith.constant 0 : i32
    %c0_i32_0 = arith.constant 0 : i32
    %c0_i32_1 = arith.constant 0 : i32
    return %c0_i32, %c0_i32_0 : i32, i32
  }
  func.func @transform_6(%arg0: i32) -> (i32, i32) {
    %c0_i32 = arith.constant 0 : i32
    %c0_i32_0 = arith.constant 0 : i32
    %c0_i32_1 = arith.constant 0 : i32
    return %c0_i32, %c0_i32_0 : i32, i32
  }
  func.func @transform_7(%arg0: i32) -> (i32, i32) {
    %c0_i32 = arith.constant 0 : i32
    %c0_i32_0 = arith.constant 0 : i32
    return %arg0, %c0_i32 : i32, i32
  }
}

</mosaic_0001>

<llo_original>
// kernel: _lambda_.3
$region0: #{_lambda_.3}
  #allocation0 [shape = 'u32[]', space=smem, size = 0x4, offset = 0x4, fixed_abs, tag = 'smem constant byte address 0x4 - core index']
  #allocation1 [shape = 'u32[72,128]{1,0:T(1,128)}', space=vmem, size = 0x9000, scoped, tag = 'internal scratch']
  %s0 = inlined_call_operand.vmem [shape: bf16[4,392,128], index: 0, kind: input, shape index: {}]
  %s1 = inlined_call_operand.vmem [shape: bf16[128,128], index: 1, kind: input, shape index: {}]
  %s2 = inlined_call_operand.vmem [shape: f32[1,128], index: 2, kind: input, shape index: {}]
  %s3 = inlined_call_operand.vmem [shape: f32[1,128], index: 3, kind: input, shape index: {}]
  %s4 = inlined_call_operand.vmem [shape: f32[392,128], index: 4, kind: output, shape index: {}]
  %s5 = sld [smem:[#allocation0]]
  $region159: #{_lambda_.3} parent=0
    _
  %s7 = ssub.s32 1, %s5
  %s8 = scalar_select 0, %s7, %s5
  $region1: #{_lambda_.3} parent=0
    #allocation2 [shape = 'u8[524288]{0}', space=vmem, size = 0x80000, scoped, tag = 'input window, operand 0']
    #allocation3 [shape = 'u8[262144]{0}', space=vmem, size = 0x40000, scoped, tag = 'output window, operand 0']
    loop: start=0, step=1, limit=4
    $region2: #{_lambda_.3} parent=1 // loop_pre_header
      _
    $region3: #{_lambda_.3} parent=1 // loop_header
      %s10 = sphi 0, %s14
      %p11 = scmp.ge.s32.totalorder %s10, 4
      %s20 = sphi 0, %s22
      %s23 = sphi 0, %s20
      %s24 = sphi 0, %s23
      %s40 = sphi 0, %s24
      %s44 = sphi 0, %s44
      %s46 = sphi 0, %s44
      %s47 = sphi 0, %s46
      %s61 = sphi 0, %s47
      %s65 = sphi 0, %s65
      %s67 = sphi 0, %s65
      %s68 = sphi 0, %s67
      %s82 = sphi 0, %s68
      %s86 = sphi 0, %s86
      %s88 = sphi 0, %s86
      %s89 = sphi 0, %s88
      %s103 = sphi 0, %s89
      %s109 = sphi 0, %s111
      %s112 = sphi 0, %s109
      %s113 = sphi 0, %s112
      %s129 = sphi 0, %s113
    $region4: #{_lambda_.3} parent=1 // loop_header_branch
      %13 = sbr.rel (%p11) target = $region8
    $region5: #{_lambda_.3} parent=1 // loop_body
      %s15 = ssub.s32 %s10, 1
      %s16 = ssub.s32 %s10, 2
      %s17 = sadd.s32 %s10, 1
      %s18 = ssub.s32 %s10, %s17
      %p19 = scmp.eq.s32.totalorder %s18, 0
      %s21 = sadd.s32 %s20, 1
      %s22 = scalar_select %p19, %s20, %s21
      %p25 = pneg %p19
      %p26 = scmp.eq.s32.totalorder %s10, 1
      %p27 = por %p25, %p26
      %p28 = scmp.ne.s32.totalorder %s20, %s23
      %p29 = scmp.eq.s32.totalorder %s10, 0
      %p30 = por %p28, %p29
      %p31 = scmp.ne.s32.totalorder %s20, %s23
      %p32 = scmp.eq.s32.totalorder %s15, 1
      %p33 = por %p31, %p32
      %p34 = scmp.ne.s32.totalorder %s23, %s24
      %p35 = scmp.eq.s32.totalorder %s15, 0
      %p36 = por %p34, %p35
      %p37 = scmp.ne.s32.totalorder %s23, %s24
      %p38 = scmp.eq.s32.totalorder %s16, 1
      %p39 = por %p37, %p38
      %p41 = scmp.ne.s32.totalorder %s24, %s40
      %p42 = scmp.eq.s32.totalorder %s16, 0
      %p43 = por %p41, %p42
      %s45 = sadd.s32 %s44, 1
      %p48 = scmp.eq.s32.totalorder %s10, 1
      %p49 = scmp.ne.s32.totalorder %s44, %s46
      %p50 = scmp.eq.s32.totalorder %s10, 0
      %p51 = por %p49, %p50
      %p52 = scmp.ne.s32.totalorder %s44, %s46
      %p53 = scmp.eq.s32.totalorder %s15, 1
      %p54 = por %p52, %p53
      %p55 = scmp.ne.s32.totalorder %s46, %s47
      %p56 = scmp.eq.s32.totalorder %s15, 0
      %p57 = por %p55, %p56
      %p58 = scmp.ne.s32.totalorder %s46, %s47
      %p59 = scmp.eq.s32.totalorder %s16, 1
      %p60 = por %p58, %p59
      %p62 = scmp.ne.s32.totalorder %s47, %s61
      %p63 = scmp.eq.s32.totalorder %s16, 0
      %p64 = por %p62, %p63
      %s66 = sadd.s32 %s65, 1
      %p69 = scmp.eq.s32.totalorder %s10, 1
      %p70 = scmp.ne.s32.totalorder %s65, %s67
      %p71 = scmp.eq.s32.totalorder %s10, 0
      %p72 = por %p70, %p71
      %p73 = scmp.ne.s32.totalorder %s65, %s67
      %p74 = scmp.eq.s32.totalorder %s15, 1
      %p75 = por %p73, %p74
      %p76 = scmp.ne.s32.totalorder %s67, %s68
      %p77 = scmp.eq.s32.totalorder %s15, 0
      %p78 = por %p76, %p77
      %p79 = scmp.ne.s32.totalorder %s67, %s68
      %p80 = scmp.eq.s32.totalorder %s16, 1
      %p81 = por %p79, %p80
      %p83 = scmp.ne.s32.totalorder %s68, %s82
      %p84 = scmp.eq.s32.totalorder %s16, 0
      %p85 = por %p83, %p84
      %s87 = sadd.s32 %s86, 1
      %p90 = scmp.eq.s32.totalorder %s10, 1
      %p91 = scmp.ne.s32.totalorder %s86, %s88
      %p92 = scmp.eq.s32.totalorder %s10, 0
      %p93 = por %p91, %p92
      %p94 = scmp.ne.s32.totalorder %s86, %s88
      %p95 = scmp.eq.s32.totalorder %s15, 1
      %p96 = por %p94, %p95
      %p97 = scmp.ne.s32.totalorder %s88, %s89
      %p98 = scmp.eq.s32.totalorder %s15, 0
      %p99 = por %p97, %p98
      %p100 = scmp.ne.s32.totalorder %s88, %s89
      %p101 = scmp.eq.s32.totalorder %s16, 1
      %p102 = por %p100, %p101
      %p104 = scmp.ne.s32.totalorder %s89, %s103
      %p105 = scmp.eq.s32.totalorder %s16, 0
      %p106 = por %p104, %p105
      %s107 = ssub.s32 %s10, %s17
      %p108 = scmp.eq.s32.totalorder %s107, 0
      %s110 = sadd.s32 %s109, 1
      %s111 = scalar_select %p108, %s109, %s110
      %p114 = pneg %p108
      %p115 = scmp.eq.s32.totalorder %s10, 1
      %p116 = por %p114, %p115
      %p117 = scmp.ne.s32.totalorder %s109, %s112
      %p118 = scmp.eq.s32.totalorder %s10, 0
      %p119 = por %p117, %p118
      %p120 = scmp.ne.s32.totalorder %s109, %s112
      %p121 = scmp.eq.s32.totalorder %s15, 1
      %p122 = por %p120, %p121
      %p123 = scmp.ne.s32.totalorder %s112, %s113
      %p124 = scmp.eq.s32.totalorder %s15, 0
      %p125 = por %p123, %p124
      %p126 = scmp.ne.s32.totalorder %s112, %s113
      %p127 = scmp.eq.s32.totalorder %s16, 1
      %p128 = por %p126, %p127
      %p130 = scmp.ne.s32.totalorder %s113, %s129
      %p131 = scmp.eq.s32.totalorder %s16, 0
      %p132 = por %p130, %p131
      %p133 = scmp.le.s32.totalorder 1, %s10
      %p134 = scmp.lt.s32.totalorder %s10, 3
      %p135 = pnand %p133, %p134
      %p136 = pneg %p135
      // Predicated region
      $region9: #{_lambda_.3} parent=5 // pred_check
        _
      $region10: #{_lambda_.3} parent=5 // pred_check_branch
        %138 = sbr.rel (%p135) target = $region12
      $region11: #{_lambda_.3} parent=5 // pred_region
        %s139 = ssub.s32 %s10, 1
        // Predicated region
        $region13: #{_lambda_.3} parent=11 // pred_check
          %p140 = pneg %p57
        $region14: #{_lambda_.3} parent=11 // pred_check_branch
          %142 = sbr.rel (%p140) target = $region16
        $region15: #{_lambda_.3} parent=11 // pred_region
          _
        $region16: #{_lambda_.3} parent=11 // pred_fallthru
          _
        // Predicated region
        $region17: #{_lambda_.3} parent=11 // pred_check
          %p143 = pneg %p78
        $region18: #{_lambda_.3} parent=11 // pred_check_branch
          %145 = sbr.rel (%p143) target = $region20
        $region19: #{_lambda_.3} parent=11 // pred_region
          _
        $region20: #{_lambda_.3} parent=11 // pred_fallthru
          _
        // Predicated region
        $region21: #{_lambda_.3} parent=11 // pred_check
          %p146 = pneg %p99
        $region22: #{_lambda_.3} parent=11 // pred_check_branch
          %148 = sbr.rel (%p146) target = $region24
        $region23: #{_lambda_.3} parent=11 // pred_region
          _
        $region24: #{_lambda_.3} parent=11 // pred_fallthru
          _
      $region12: #{_lambda_.3} parent=5 // pred_fallthru
        _
      %p149 = scmp.lt.s32.totalorder %s10, 2
      // Predicated region
      $region25: #{_lambda_.3} parent=5 // pred_check
        %p150 = pneg %p149
      $region26: #{_lambda_.3} parent=5 // pred_check_branch
        %152 = sbr.rel (%p150) target = $region28
      $region27: #{_lambda_.3} parent=5 // pred_region
        // Predicated region
        $region29: #{_lambda_.3} parent=27 // pred_check
          %p153 = pneg %p30
        $region30: #{_lambda_.3} parent=27 // pred_check_branch
          %155 = sbr.rel (%p153) target = $region32
        $region31: #{_lambda_.3} parent=27 // pred_region
          %s156 = sand.u32 %s20, 1
          %s157 = sand.u32 %s20, 1
          %s158 = smul.addr %s157, 512
          %s159 = scalar_lea.vmem [#allocation2], %s158
          %s160 = smul.u32 32, %s10
          %s161 = ssub.s32 49, %s160
          %p162 = scmp.lt.s32.totalorder %s161, 32
          %s163 = scalar_select %p162, %s161, 32
          %s164 = smul.u32 16, %s163
          %p165 = scmp.ne.s32.totalorder 0, %s164
          %s166 = smul.addr %s160, 4
          %s167 = scalar_lea.vmem %s0, %s166
          // Predicated region
          $region33: #{_lambda_.3} parent=31 // pred_check
            %p168 = pneg %p165
          $region34: #{_lambda_.3} parent=31 // pred_check_branch
            %170 = sbr.rel (%p168) target = $region36
          $region35: #{_lambda_.3} parent=31 // pred_region
            // Predicated region
            $region37: #{_lambda_.3} parent=35 // pred_check
              _
            $region38: #{_lambda_.3} parent=35 // pred_check_branch
              %172 = sbr.rel target = $region40
            $region39: #{_lambda_.3} parent=35 // pred_region
              // Predicated region
              $region59: #{_lambda_.3} parent=39 // pred_check
                _
              $region60: #{_lambda_.3} parent=39 // pred_check_branch
                %290 = sbr.rel (0) target = $region62
              $region61: #{_lambda_.3} parent=39 // pred_region
                %s291 = sshrl.u32 %s163, 4
                // While loop
                $region63: #{_lambda_.3} parent=61 // loop_pre_header
                  _
                $region64: #{_lambda_.3} parent=61 // loop_header
                  %s293 = sphi 0, %s295
                  %p294 = scmp.ge.s32.totalorder %s293, %s291
                  %s298 = sphi 0, %s303
                  %s299 = sphi %s167, %s306
                  %s300 = sphi %s159, %s307
                $region65: #{_lambda_.3} parent=61 // loop_header_branch
                  %297 = sbr.rel (%p294) target = $region69
                $region66: #{_lambda_.3} parent=61 // loop_body
                  %s301 = sadd.s32 1, %s298
                  %p302 = scmp.ge.s32.totalorder %s301, %s291
                  %s303 = scalar_select %p302, 0, %s301
                  %s304 = smul.u32 %s303, 64
                  %s305 = smul.u32 %s303, 64
                  %s306 = scalar_lea.vmem %s167, %s304
                  %s307 = scalar_lea.vmem %s159, %s305 [#allocation2]
                $region67: #{_lambda_.3} parent=61 // loop_footer
                  %s295 = sadd.s32 %s293, 1
                $region68: #{_lambda_.3} parent=61 // loop_footer_branch
                  %292 = sbr.rel target = $region64
                $region69: #{_lambda_.3} parent=61 // loop_exit
                  _
                %s308 = sshrl.u32 %s163, 4
                %s309 = sand.u32 %s163, 15
                %s310 = smul.u32 %s308, 16
                %s311 = smul.u32 4, %s310
                %s312 = scalar_lea.vmem %s167, %s311
                %s313 = smul.u32 4, %s310
                %s314 = scalar_lea.vmem %s159, %s313 [#allocation2]
                // While loop
                $region70: #{_lambda_.3} parent=61 // loop_pre_header
                  _
                $region71: #{_lambda_.3} parent=61 // loop_header
                  %s316 = sphi 0, %s318
                  %p317 = scmp.ge.s32.totalorder %s316, %s309
                  %s321 = sphi 0, %s326
                  %s322 = sphi %s312, %s329
                  %s323 = sphi %s314, %s330
                $region72: #{_lambda_.3} parent=61 // loop_header_branch
                  %320 = sbr.rel (%p317) target = $region76
                $region73: #{_lambda_.3} parent=61 // loop_body
                  %s324 = sadd.s32 1, %s321
                  %p325 = scmp.ge.s32.totalorder %s324, %s309
                  %s326 = scalar_select %p325, 0, %s324
                  %s327 = smul.u32 %s326, 4
                  %s328 = smul.u32 %s326, 4
                  %s329 = scalar_lea.vmem %s312, %s327
                  %s330 = scalar_lea.vmem %s314, %s328 [#allocation2]
                $region74: #{_lambda_.3} parent=61 // loop_footer
                  %s318 = sadd.s32 %s316, 1
                $region75: #{_lambda_.3} parent=61 // loop_footer_branch
                  %315 = sbr.rel target = $region71
                $region76: #{_lambda_.3} parent=61 // loop_exit
                  _
                %s332 = ssub.s32 16, 1
                %s333 = sshrl.u32 %s163, 3
                // While loop
                $region77: #{_lambda_.3} parent=61 // loop_pre_header
                  _
                $region78: #{_lambda_.3} parent=61 // loop_header
                  %s335 = sphi 0, %s337
                  %p336 = scmp.ge.s32.totalorder %s335, %s333
                  %s340 = sphi 0, %s409
                  %s341 = sphi %s167, %s412
                  %s342 = sphi %s159, %s413
                $region79: #{_lambda_.3} parent=61 // loop_header_branch
                  %339 = sbr.rel (%p336) target = $region83
                $region80: #{_lambda_.3} parent=61 // loop_body
                  %v343 = vld [vmem:[%s341] sm:%s332]
                  %344 = vst [vmem:[%s342] sm:%s332] %v343
                  %v345 = vld [vmem:[%s341 + $0x4] sm:%s332]
                  %346 = vst [vmem:[%s342 + $0x4] sm:%s332] %v345
                  %v347 = vld [vmem:[%s341 + $0x8] sm:%s332]
                  %348 = vst [vmem:[%s342 + $0x8] sm:%s332] %v347
                  %v349 = vld [vmem:[%s341 + $0xc] sm:%s332]
                  %350 = vst [vmem:[%s342 + $0xc] sm:%s332] %v349
                  %v351 = vld [vmem:[%s341 + $0x10] sm:%s332]
                  %352 = vst [vmem:[%s342 + $0x10] sm:%s332] %v351
                  %v353 = vld [vmem:[%s341 + $0x14] sm:%s332]
                  %354 = vst [vmem:[%s342 + $0x14] sm:%s332] %v353
                  %v355 = vld [vmem:[%s341 + $0x18] sm:%s332]
                  %356 = vst [vmem:[%s342 + $0x18] sm:%s332] %v355
                  %v357 = vld [vmem:[%s341 + $0x1c] sm:%s332]
                  %358 = vst [vmem:[%s342 + $0x1c] sm:%s332] %v357
                  %v359 = vld [vmem:[%s341 + $0xc4] sm:%s332]
                  %360 = vst [vmem:[%s342 + $0x80] sm:%s332] %v359
                  %v361 = vld [vmem:[%s341 + $0xc8] sm:%s332]
                  %362 = vst [vmem:[%s342 + $0x84] sm:%s332] %v361
                  %v363 = vld [vmem:[%s341 + $0xcc] sm:%s332]
                  %364 = vst [vmem:[%s342 + $0x88] sm:%s332] %v363
                  %v365 = vld [vmem:[%s341 + $0xd0] sm:%s332]
                  %366 = vst [vmem:[%s342 + $0x8c] sm:%s332] %v365
                  %v367 = vld [vmem:[%s341 + $0xd4] sm:%s332]
                  %368 = vst [vmem:[%s342 + $0x90] sm:%s332] %v367
                  %v369 = vld [vmem:[%s341 + $0xd8] sm:%s332]
                  %370 = vst [vmem:[%s342 + $0x94] sm:%s332] %v369
                  %v371 = vld [vmem:[%s341 + $0xdc] sm:%s332]
                  %372 = vst [vmem:[%s342 + $0x98] sm:%s332] %v371
                  %v373 = vld [vmem:[%s341 + $0xe0] sm:%s332]
                  %374 = vst [vmem:[%s342 + $0x9c] sm:%s332] %v373
                  %v375 = vld [vmem:[%s341 + $0x188] sm:%s332]
                  %376 = vst [vmem:[%s342 + $0x100] sm:%s332] %v375
                  %v377 = vld [vmem:[%s341 + $0x18c] sm:%s332]
                  %378 = vst [vmem:[%s342 + $0x104] sm:%s332] %v377
                  %v379 = vld [vmem:[%s341 + $0x190] sm:%s332]
                  %380 = vst [vmem:[%s342 + $0x108] sm:%s332] %v379
                  %v381 = vld [vmem:[%s341 + $0x194] sm:%s332]
                  %382 = vst [vmem:[%s342 + $0x10c] sm:%s332] %v381
                  %v383 = vld [vmem:[%s341 + $0x198] sm:%s332]
                  %384 = vst [vmem:[%s342 + $0x110] sm:%s332] %v383
                  %v385 = vld [vmem:[%s341 + $0x19c] sm:%s332]
                  %386 = vst [vmem:[%s342 + $0x114] sm:%s332] %v385
                  %v387 = vld [vmem:[%s341 + $0x1a0] sm:%s332]
                  %388 = vst [vmem:[%s342 + $0x118] sm:%s332] %v387
                  %v389 = vld [vmem:[%s341 + $0x1a4] sm:%s332]
                  %390 = vst [vmem:[%s342 + $0x11c] sm:%s332] %v389
                  %v391 = vld [vmem:[%s341 + $0x24c] sm:%s332]
                  %392 = vst [vmem:[%s342 + $0x180] sm:%s332] %v391
                  %v393 = vld [vmem:[%s341 + $0x250] sm:%s332]
                  %394 = vst [vmem:[%s342 + $0x184] sm:%s332] %v393
                  %v395 = vld [vmem:[%s341 + $0x254] sm:%s332]
                  %396 = vst [vmem:[%s342 + $0x188] sm:%s332] %v395
                  %v397 = vld [vmem:[%s341 + $0x258] sm:%s332]
                  %398 = vst [vmem:[%s342 + $0x18c] sm:%s332] %v397
                  %v399 = vld [vmem:[%s341 + $0x25c] sm:%s332]
                  %400 = vst [vmem:[%s342 + $0x190] sm:%s332] %v399
                  %v401 = vld [vmem:[%s341 + $0x260] sm:%s332]
                  %402 = vst [vmem:[%s342 + $0x194] sm:%s332] %v401
                  %v403 = vld [vmem:[%s341 + $0x264] sm:%s332]
                  %404 = vst [vmem:[%s342 + $0x198] sm:%s332] %v403
                  %v405 = vld [vmem:[%s341 + $0x268] sm:%s332]
                  %406 = vst [vmem:[%s342 + $0x19c] sm:%s332] %v405
                  %s407 = sadd.s32 1, %s340
                  %p408 = scmp.ge.s32.totalorder %s407, %s333
                  %s409 = scalar_select %p408, 0, %s407
                  %s410 = smul.u32 %s409, 32
                  %s411 = smul.u32 %s409, 32
                  %s412 = scalar_lea.vmem %s167, %s410
                  %s413 = scalar_lea.vmem %s159, %s411 [#allocation2]
                $region81: #{_lambda_.3} parent=61 // loop_footer
                  %s337 = sadd.s32 %s335, 1
                $region82: #{_lambda_.3} parent=61 // loop_footer_branch
                  %334 = sbr.rel target = $region78
                $region83: #{_lambda_.3} parent=61 // loop_exit
                  _
                %s414 = sshrl.u32 %s163, 3
                %s415 = sand.u32 %s163, 7
                %s416 = smul.u32 %s414, 8
                %s417 = smul.u32 4, %s416
                %s418 = scalar_lea.vmem %s167, %s417
                %s419 = smul.u32 4, %s416
                %s420 = scalar_lea.vmem %s159, %s419 [#allocation2]
                // While loop
                $region84: #{_lambda_.3} parent=61 // loop_pre_header
                  _
                $region85: #{_lambda_.3} parent=61 // loop_header
                  %s422 = sphi 0, %s424
                  %p423 = scmp.ge.s32.totalorder %s422, %s415
                  %s427 = sphi 0, %s440
                  %s428 = sphi %s418, %s443
                  %s429 = sphi %s420, %s444
                $region86: #{_lambda_.3} parent=61 // loop_header_branch
                  %426 = sbr.rel (%p423) target = $region90
                $region87: #{_lambda_.3} parent=61 // loop_body
                  %v430 = vld [vmem:[%s428] sm:%s332]
                  %431 = vst [vmem:[%s429] sm:%s332] %v430
                  %v432 = vld [vmem:[%s428 + $0xc4] sm:%s332]
                  %433 = vst [vmem:[%s429 + $0x80] sm:%s332] %v432
                  %v434 = vld [vmem:[%s428 + $0x188] sm:%s332]
                  %435 = vst [vmem:[%s429 + $0x100] sm:%s332] %v434
                  %v436 = vld [vmem:[%s428 + $0x24c] sm:%s332]
                  %437 = vst [vmem:[%s429 + $0x180] sm:%s332] %v436
                  %s438 = sadd.s32 1, %s427
                  %p439 = scmp.ge.s32.totalorder %s438, %s415
                  %s440 = scalar_select %p439, 0, %s438
                  %s441 = smul.u32 %s440, 4
                  %s442 = smul.u32 %s440, 4
                  %s443 = scalar_lea.vmem %s418, %s441
                  %s444 = scalar_lea.vmem %s420, %s442 [#allocation2]
                $region88: #{_lambda_.3} parent=61 // loop_footer
                  %s424 = sadd.s32 %s422, 1
                $region89: #{_lambda_.3} parent=61 // loop_footer_branch
                  %421 = sbr.rel target = $region85
                $region90: #{_lambda_.3} parent=61 // loop_exit
                  _
              $region62: #{_lambda_.3} parent=39 // pred_fallthru
                _
            $region40: #{_lambda_.3} parent=35 // pred_fallthru
              _
            // Predicated region
            $region41: #{_lambda_.3} parent=35 // pred_check
              _
            $region42: #{_lambda_.3} parent=35 // pred_check_branch
              %174 = sbr.rel (0) target = $region44
            $region43: #{_lambda_.3} parent=35 // pred_region
              %s176 = ssub.s32 16, 1
              %s177 = sshrl.u32 %s163, 3
              // While loop
              $region45: #{_lambda_.3} parent=43 // loop_pre_header
                _
              $region46: #{_lambda_.3} parent=43 // loop_header
                %s179 = sphi 0, %s181
                %p180 = scmp.ge.s32.totalorder %s179, %s177
                %s184 = sphi 0, %s253
                %s185 = sphi %s167, %s256
                %s186 = sphi %s159, %s257
              $region47: #{_lambda_.3} parent=43 // loop_header_branch
                %183 = sbr.rel (%p180) target = $region51
              $region48: #{_lambda_.3} parent=43 // loop_body
                %v187 = vld [vmem:[%s185] sm:%s176]
                %188 = vst [vmem:[%s186] sm:%s176] %v187
                %v189 = vld [vmem:[%s185 + $0x4] sm:%s176]
                %190 = vst [vmem:[%s186 + $0x4] sm:%s176] %v189
                %v191 = vld [vmem:[%s185 + $0x8] sm:%s176]
                %192 = vst [vmem:[%s186 + $0x8] sm:%s176] %v191
                %v193 = vld [vmem:[%s185 + $0xc] sm:%s176]
                %194 = vst [vmem:[%s186 + $0xc] sm:%s176] %v193
                %v195 = vld [vmem:[%s185 + $0x10] sm:%s176]
                %196 = vst [vmem:[%s186 + $0x10] sm:%s176] %v195
                %v197 = vld [vmem:[%s185 + $0x14] sm:%s176]
                %198 = vst [vmem:[%s186 + $0x14] sm:%s176] %v197
                %v199 = vld [vmem:[%s185 + $0x18] sm:%s176]
                %200 = vst [vmem:[%s186 + $0x18] sm:%s176] %v199
                %v201 = vld [vmem:[%s185 + $0x1c] sm:%s176]
                %202 = vst [vmem:[%s186 + $0x1c] sm:%s176] %v201
                %v203 = vld [vmem:[%s185 + $0xc4] sm:%s176]
                %204 = vst [vmem:[%s186 + $0x80] sm:%s176] %v203
                %v205 = vld [vmem:[%s185 + $0xc8] sm:%s176]
                %206 = vst [vmem:[%s186 + $0x84] sm:%s176] %v205
                %v207 = vld [vmem:[%s185 + $0xcc] sm:%s176]
                %208 = vst [vmem:[%s186 + $0x88] sm:%s176] %v207
                %v209 = vld [vmem:[%s185 + $0xd0] sm:%s176]
                %210 = vst [vmem:[%s186 + $0x8c] sm:%s176] %v209
                %v211 = vld [vmem:[%s185 + $0xd4] sm:%s176]
                %212 = vst [vmem:[%s186 + $0x90] sm:%s176] %v211
                %v213 = vld [vmem:[%s185 + $0xd8] sm:%s176]
                %214 = vst [vmem:[%s186 + $0x94] sm:%s176] %v213
                %v215 = vld [vmem:[%s185 + $0xdc] sm:%s176]
                %216 = vst [vmem:[%s186 + $0x98] sm:%s176] %v215
                %v217 = vld [vmem:[%s185 + $0xe0] sm:%s176]
                %218 = vst [vmem:[%s186 + $0x9c] sm:%s176] %v217
                %v219 = vld [vmem:[%s185 + $0x188] sm:%s176]
                %220 = vst [vmem:[%s186 + $0x100] sm:%s176] %v219
                %v221 = vld [vmem:[%s185 + $0x18c] sm:%s176]
                %222 = vst [vmem:[%s186 + $0x104] sm:%s176] %v221
                %v223 = vld [vmem:[%s185 + $0x190] sm:%s176]
                %224 = vst [vmem:[%s186 + $0x108] sm:%s176] %v223
                %v225 = vld [vmem:[%s185 + $0x194] sm:%s176]
                %226 = vst [vmem:[%s186 + $0x10c] sm:%s176] %v225
                %v227 = vld [vmem:[%s185 + $0x198] sm:%s176]
                %228 = vst [vmem:[%s186 + $0x110] sm:%s176] %v227
                %v229 = vld [vmem:[%s185 + $0x19c] sm:%s176]
                %230 = vst [vmem:[%s186 + $0x114] sm:%s176] %v229
                %v231 = vld [vmem:[%s185 + $0x1a0] sm:%s176]
                %232 = vst [vmem:[%s186 + $0x118] sm:%s176] %v231
                %v233 = vld [vmem:[%s185 + $0x1a4] sm:%s176]
                %234 = vst [vmem:[%s186 + $0x11c] sm:%s176] %v233
                %v235 = vld [vmem:[%s185 + $0x24c] sm:%s176]
                %236 = vst [vmem:[%s186 + $0x180] sm:%s176] %v235
                %v237 = vld [vmem:[%s185 + $0x250] sm:%s176]
                %238 = vst [vmem:[%s186 + $0x184] sm:%s176] %v237
                %v239 = vld [vmem:[%s185 + $0x254] sm:%s176]
                %240 = vst [vmem:[%s186 + $0x188] sm:%s176] %v239
                %v241 = vld [vmem:[%s185 + $0x258] sm:%s176]
                %242 = vst [vmem:[%s186 + $0x18c] sm:%s176] %v241
                %v243 = vld [vmem:[%s185 + $0x25c] sm:%s176]
                %244 = vst [vmem:[%s186 + $0x190] sm:%s176] %v243
                %v245 = vld [vmem:[%s185 + $0x260] sm:%s176]
                %246 = vst [vmem:[%s186 + $0x194] sm:%s176] %v245
                %v247 = vld [vmem:[%s185 + $0x264] sm:%s176]
                %248 = vst [vmem:[%s186 + $0x198] sm:%s176] %v247
                %v249 = vld [vmem:[%s185 + $0x268] sm:%s176]
                %250 = vst [vmem:[%s186 + $0x19c] sm:%s176] %v249
                %s251 = sadd.s32 1, %s184
                %p252 = scmp.ge.s32.totalorder %s251, %s177
                %s253 = scalar_select %p252, 0, %s251
                %s254 = smul.u32 %s253, 32
                %s255 = smul.u32 %s253, 32
                %s256 = scalar_lea.vmem %s167, %s254
                %s257 = scalar_lea.vmem %s159, %s255 [#allocation2]
              $region49: #{_lambda_.3} parent=43 // loop_footer
                %s181 = sadd.s32 %s179, 1
              $region50: #{_lambda_.3} parent=43 // loop_footer_branch
                %178 = sbr.rel target = $region46
              $region51: #{_lambda_.3} parent=43 // loop_exit
                _
              %s258 = sshrl.u32 %s163, 3
              %s259 = sand.u32 %s163, 7
              %s260 = smul.u32 %s258, 8
              %s261 = smul.u32 4, %s260
              %s262 = scalar_lea.vmem %s167, %s261
              %s263 = smul.u32 4, %s260
              %s264 = scalar_lea.vmem %s159, %s263 [#allocation2]
              // While loop
              $region52: #{_lambda_.3} parent=43 // loop_pre_header
                _
              $region53: #{_lambda_.3} parent=43 // loop_header
                %s266 = sphi 0, %s268
                %p267 = scmp.ge.s32.totalorder %s266, %s259
                %s271 = sphi 0, %s284
                %s272 = sphi %s262, %s287
                %s273 = sphi %s264, %s288
              $region54: #{_lambda_.3} parent=43 // loop_header_branch
                %270 = sbr.rel (%p267) target = $region58
              $region55: #{_lambda_.3} parent=43 // loop_body
                %v274 = vld [vmem:[%s272] sm:%s176]
                %275 = vst [vmem:[%s273] sm:%s176] %v274
                %v276 = vld [vmem:[%s272 + $0xc4] sm:%s176]
                %277 = vst [vmem:[%s273 + $0x80] sm:%s176] %v276
                %v278 = vld [vmem:[%s272 + $0x188] sm:%s176]
                %279 = vst [vmem:[%s273 + $0x100] sm:%s176] %v278
                %v280 = vld [vmem:[%s272 + $0x24c] sm:%s176]
                %281 = vst [vmem:[%s273 + $0x180] sm:%s176] %v280
                %s282 = sadd.s32 1, %s271
                %p283 = scmp.ge.s32.totalorder %s282, %s259
                %s284 = scalar_select %p283, 0, %s282
                %s285 = smul.u32 %s284, 4
                %s286 = smul.u32 %s284, 4
                %s287 = scalar_lea.vmem %s262, %s285
                %s288 = scalar_lea.vmem %s264, %s286 [#allocation2]
              $region56: #{_lambda_.3} parent=43 // loop_footer
                %s268 = sadd.s32 %s266, 1
              $region57: #{_lambda_.3} parent=43 // loop_footer_branch
                %265 = sbr.rel target = $region53
              $region58: #{_lambda_.3} parent=43 // loop_exit
                _
            $region44: #{_lambda_.3} parent=35 // pred_fallthru
              _
          $region36: #{_lambda_.3} parent=31 // pred_fallthru
            _
          %445 = vnop
        $region32: #{_lambda_.3} parent=27 // pred_fallthru
          _
      $region28: #{_lambda_.3} parent=5 // pred_fallthru
        _
      %p446 = scmp.le.s32.totalorder 1, %s10
      %p447 = scmp.lt.s32.totalorder %s10, 3
      %p448 = pnand %p446, %p447
      %p449 = pneg %p448
      // Predicated region
      $region91: #{_lambda_.3} parent=5 // pred_check
        _
      $region92: #{_lambda_.3} parent=5 // pred_check_branch
        %451 = sbr.rel (%p448) target = $region94
      $region93: #{_lambda_.3} parent=5 // pred_region
        %s452 = ssub.s32 %s10, 1
        %s453 = sand.u32 %s23, 1
        %s454 = sand.u32 %s23, 1
        %s455 = smul.addr %s454, 512
        %s456 = scalar_lea.vmem [#allocation2], %s455
        // Predicated region
        $region95: #{_lambda_.3} parent=93 // pred_check
          %p457 = pneg %p36
        $region96: #{_lambda_.3} parent=93 // pred_check_branch
          %459 = sbr.rel (%p457) target = $region98
        $region97: #{_lambda_.3} parent=93 // pred_region
          _
        $region98: #{_lambda_.3} parent=93 // pred_fallthru
          _
        %s460 = sand.u32 %s23, 1
        %s461 = sand.u32 %s23, 1
        %s462 = smul.addr %s461, 512
        %s463 = scalar_lea.vmem [#allocation2], %s462
        %p464 = pneg %p36
        %p465 = pneg %p33
        %p466 = pneg %p57
        %p467 = pneg %p54
        %p468 = pneg %p78
        %p469 = pneg %p75
        %p470 = pneg %p99
        %p471 = pneg %p96
        %p472 = pneg %p125
        %p473 = pneg %p122
        %s474 = sand.u32 %s112, 1
        %s475 = sand.u32 %s112, 1
        %s476 = smul.addr %s475, 256
        %s477 = scalar_lea.vmem [#allocation3], %s476
        %s478 = smul.u32 32, %s15
        %s479 = ssub.s32 49, %s478
        %p480 = scmp.lt.s32.totalorder %s479, 32
        %s481 = scalar_select %p480, %s479, 32
        %s482 = smul.u32 16, %s481
        %s483 = smul.u32 32, %s15
        %s484 = ssub.s32 49, %s483
        %p485 = scmp.lt.s32.totalorder %s484, 32
        %s486 = scalar_select %p485, %s484, 32
        %s487 = smul.u32 8, %s486
        %v488 = vld [vmem:[%s1] sm:$0xf]
        %v489 = vld [vmem:[%s1 + $0x4] sm:$0xf]
        %v490 = vld [vmem:[%s1 + $0x8] sm:$0xf]
        %v491 = vld [vmem:[%s1 + $0xc] sm:$0xf]
        %v492 = vld [vmem:[%s1 + $0x10] sm:$0xf]
        %v493 = vld [vmem:[%s1 + $0x14] sm:$0xf]
        %v494 = vld [vmem:[%s1 + $0x18] sm:$0xf]
        %v495 = vld [vmem:[%s1 + $0x1c] sm:$0xf]
        %v496 = vld [vmem:[%s1 + $0x20] sm:$0xf]
        %v497 = vld [vmem:[%s1 + $0x24] sm:$0xf]
        %v498 = vld [vmem:[%s1 + $0x28] sm:$0xf]
        %v499 = vld [vmem:[%s1 + $0x2c] sm:$0xf]
        %v500 = vld [vmem:[%s1 + $0x30] sm:$0xf]
        %v501 = vld [vmem:[%s1 + $0x34] sm:$0xf]
        %v502 = vld [vmem:[%s1 + $0x38] sm:$0xf]
        %v503 = vld [vmem:[%s1 + $0x3c] sm:$0xf]
        %v504 = vld [vmem:[%s2] sm:$0x1]
        %v505 = vld [vmem:[%s3] sm:$0x1]
        %v506 = vld [vmem:[%s456] sm:$0xf]
        %v507 = vld [vmem:[%s456 + $0x4] sm:$0xf]
        %v508 = vld [vmem:[%s456 + $0x8] sm:$0xf]
        %v509 = vld [vmem:[%s456 + $0xc] sm:$0xf]
        %v510 = vld [vmem:[%s456 + $0x10] sm:$0xf]
        %v511 = vld [vmem:[%s456 + $0x14] sm:$0xf]
        %v512 = vld [vmem:[%s456 + $0x18] sm:$0xf]
        %v513 = vld [vmem:[%s456 + $0x1c] sm:$0xf]
        %v514 = vld [vmem:[%s456 + $0x20] sm:$0xf]
        %v515 = vld [vmem:[%s456 + $0x24] sm:$0xf]
        %v516 = vld [vmem:[%s456 + $0x28] sm:$0xf]
        %v517 = vld [vmem:[%s456 + $0x2c] sm:$0xf]
        %v518 = vld [vmem:[%s456 + $0x30] sm:$0xf]
        %v519 = vld [vmem:[%s456 + $0x34] sm:$0xf]
        %v520 = vld [vmem:[%s456 + $0x38] sm:$0xf]
        %v521 = vld [vmem:[%s456 + $0x3c] sm:$0xf]
        %v522 = vld [vmem:[%s456 + $0x40] sm:$0xf]
        %v523 = vld [vmem:[%s456 + $0x44] sm:$0xf]
        %v524 = vld [vmem:[%s456 + $0x48] sm:$0xf]
        %v525 = vld [vmem:[%s456 + $0x4c] sm:$0xf]
        %v526 = vld [vmem:[%s456 + $0x50] sm:$0xf]
        %v527 = vld [vmem:[%s456 + $0x54] sm:$0xf]
        %v528 = vld [vmem:[%s456 + $0x58] sm:$0xf]
        %v529 = vld [vmem:[%s456 + $0x5c] sm:$0xf]
        %v530 = vld [vmem:[%s456 + $0x60] sm:$0xf]
        %v531 = vld [vmem:[%s456 + $0x64] sm:$0xf]
        %v532 = vld [vmem:[%s456 + $0x68] sm:$0xf]
        %v533 = vld [vmem:[%s456 + $0x6c] sm:$0xf]
        %v534 = vld [vmem:[%s456 + $0x70] sm:$0xf]
        %v535 = vld [vmem:[%s456 + $0x74] sm:$0xf]
        %v536 = vld [vmem:[%s456 + $0x78] sm:$0xf]
        %v537 = vld [vmem:[%s456 + $0x7c] sm:$0xf]
        %v570 = vunpack.c.l.b16 %v506
        %v571 = vunpack.c.l.b16 %v507
        %v572 = vunpack.c.l.b16 %v508
        %v573 = vunpack.c.l.b16 %v509
        %v574 = vunpack.c.l.b16 %v510
        %v575 = vunpack.c.l.b16 %v511
        %v576 = vunpack.c.l.b16 %v512
        %v577 = vunpack.c.l.b16 %v513
        %v578 = vunpack.c.l.b16 %v514
        %v579 = vunpack.c.l.b16 %v515
        %v580 = vunpack.c.l.b16 %v516
        %v581 = vunpack.c.l.b16 %v517
        %v582 = vunpack.c.l.b16 %v518
        %v583 = vunpack.c.l.b16 %v519
        %v584 = vunpack.c.l.b16 %v520
        %v585 = vunpack.c.l.b16 %v521
        %v586 = vunpack.c.l.b16 %v522
        %v587 = vunpack.c.l.b16 %v523
        %v588 = vunpack.c.l.b16 %v524
        %v589 = vunpack.c.l.b16 %v525
        %v590 = vunpack.c.l.b16 %v526
        %v591 = vunpack.c.l.b16 %v527
        %v592 = vunpack.c.l.b16 %v528
        %v593 = vunpack.c.l.b16 %v529
        %v594 = vunpack.c.l.b16 %v530
        %v595 = vunpack.c.l.b16 %v531
        %v596 = vunpack.c.l.b16 %v532
        %v597 = vunpack.c.l.b16 %v533
        %v598 = vunpack.c.l.b16 %v534
        %v599 = vunpack.c.l.b16 %v535
        %v600 = vunpack.c.l.b16 %v536
        %v601 = vunpack.c.l.b16 %v537
        %v602 = vpack.c.b16 %v571, %v570
        %v603 = vpack.c.b16 %v573, %v572
        %v604 = vpack.c.b16 %v575, %v574
        %v605 = vpack.c.b16 %v577, %v576
        %v606 = vpack.c.b16 %v579, %v578
        %v607 = vpack.c.b16 %v581, %v580
        %v608 = vpack.c.b16 %v583, %v582
        %v609 = vpack.c.b16 %v585, %v584
        %v610 = vpack.c.b16 %v587, %v586
        %v611 = vpack.c.b16 %v589, %v588
        %v612 = vpack.c.b16 %v591, %v590
        %v613 = vpack.c.b16 %v593, %v592
        %v614 = vpack.c.b16 %v595, %v594
        %v615 = vpack.c.b16 %v597, %v596
        %v616 = vpack.c.b16 %v599, %v598
        %v617 = vpack.c.b16 %v601, %v600
        %v650 = vunpack.c.l.b16 %v488
        %v651 = vunpack.c.l.b16 %v489
        %v652 = vunpack.c.l.b16 %v490
        %v653 = vunpack.c.l.b16 %v491
        %v654 = vunpack.c.l.b16 %v492
        %v655 = vunpack.c.l.b16 %v493
        %v656 = vunpack.c.l.b16 %v494
        %v657 = vunpack.c.l.b16 %v495
        %v658 = vunpack.c.l.b16 %v496
        %v659 = vunpack.c.l.b16 %v497
        %v660 = vunpack.c.l.b16 %v498
        %v661 = vunpack.c.l.b16 %v499
        %v662 = vunpack.c.l.b16 %v500
        %v663 = vunpack.c.l.b16 %v501
        %v664 = vunpack.c.l.b16 %v502
        %v665 = vunpack.c.l.b16 %v503
        %v666 = vpack.c.b16 %v651, %v650
        %v667 = vpack.c.b16 %v653, %v652
        %v668 = vpack.c.b16 %v655, %v654
        %v669 = vpack.c.b16 %v657, %v656
        %v670 = vpack.c.b16 %v659, %v658
        %v671 = vpack.c.b16 %v661, %v660
        %v672 = vpack.c.b16 %v663, %v662
        %v673 = vpack.c.b16 %v665, %v664
        %682 = vmatpush.bf16.msra.mxu0 %v673
        %683 = vmatpush.bf16.msra.mxu0 %v672
        %684 = vmatpush.bf16.msra.mxu0 %v671
        %685 = vmatpush.bf16.msra.mxu0 %v670
        %686 = vmatpush.bf16.msra.mxu0 %v669
        %687 = vmatpush.bf16.msra.mxu0 %v668
        %688 = vmatpush.bf16.msra.mxu0 %v667
        %689 = vmatpush.bf16.msra.mxu0 %v666
        %690 = vmatmul.bf16.gmra.mxu0 %v602
        %v691 = vpop.f32.mrf.mxu0
        %v692 = vadd.f32 0.0, %v691
        %v693 = vpop.f32.mrf.mxu0
        %v694 = vadd.f32 0.0, %v693
        %695 = vmatmul.bf16.gmra.mxu0 %v603
        %v696 = vpop.f32.mrf.mxu0
        %v697 = vadd.f32 0.0, %v696
        %v698 = vpop.f32.mrf.mxu0
        %v699 = vadd.f32 0.0, %v698
        %700 = vmatmul.bf16.gmra.mxu0 %v604
        %v701 = vpop.f32.mrf.mxu0
        %v702 = vadd.f32 0.0, %v701
        %v703 = vpop.f32.mrf.mxu0
        %v704 = vadd.f32 0.0, %v703
        %705 = vmatmul.bf16.gmra.mxu0 %v605
        %v706 = vpop.f32.mrf.mxu0
        %v707 = vadd.f32 0.0, %v706
        %v708 = vpop.f32.mrf.mxu0
        %v709 = vadd.f32 0.0, %v708
        %710 = vmatmul.bf16.gmra.mxu0 %v606
        %v711 = vpop.f32.mrf.mxu0
        %v712 = vadd.f32 0.0, %v711
        %v713 = vpop.f32.mrf.mxu0
        %v714 = vadd.f32 0.0, %v713
        %715 = vmatmul.bf16.gmra.mxu0 %v607
        %v716 = vpop.f32.mrf.mxu0
        %v717 = vadd.f32 0.0, %v716
        %v718 = vpop.f32.mrf.mxu0
        %v719 = vadd.f32 0.0, %v718
        %720 = vmatmul.bf16.gmra.mxu0 %v608
        %v721 = vpop.f32.mrf.mxu0
        %v722 = vadd.f32 0.0, %v721
        %v723 = vpop.f32.mrf.mxu0
        %v724 = vadd.f32 0.0, %v723
        %725 = vmatmul.bf16.gmra.mxu0 %v609
        %v726 = vpop.f32.mrf.mxu0
        %v727 = vadd.f32 0.0, %v726
        %v728 = vpop.f32.mrf.mxu0
        %v729 = vadd.f32 0.0, %v728
        %730 = vmatmul.bf16.gmra.mxu0 %v610
        %v731 = vpop.f32.mrf.mxu0
        %v732 = vadd.f32 0.0, %v731
        %v733 = vpop.f32.mrf.mxu0
        %v734 = vadd.f32 0.0, %v733
        %735 = vmatmul.bf16.gmra.mxu0 %v611
        %v736 = vpop.f32.mrf.mxu0
        %v737 = vadd.f32 0.0, %v736
        %v738 = vpop.f32.mrf.mxu0
        %v739 = vadd.f32 0.0, %v738
        %740 = vmatmul.bf16.gmra.mxu0 %v612
        %v741 = vpop.f32.mrf.mxu0
        %v742 = vadd.f32 0.0, %v741
        %v743 = vpop.f32.mrf.mxu0
        %v744 = vadd.f32 0.0, %v743
        %745 = vmatmul.bf16.gmra.mxu0 %v613
        %v746 = vpop.f32.mrf.mxu0
        %v747 = vadd.f32 0.0, %v746
        %v748 = vpop.f32.mrf.mxu0
        %v749 = vadd.f32 0.0, %v748
        %750 = vmatmul.bf16.gmra.mxu0 %v614
        %v751 = vpop.f32.mrf.mxu0
        %v752 = vadd.f32 0.0, %v751
        %v753 = vpop.f32.mrf.mxu0
        %v754 = vadd.f32 0.0, %v753
        %755 = vmatmul.bf16.gmra.mxu0 %v615
        %v756 = vpop.f32.mrf.mxu0
        %v757 = vadd.f32 0.0, %v756
        %v758 = vpop.f32.mrf.mxu0
        %v759 = vadd.f32 0.0, %v758
        %760 = vmatmul.bf16.gmra.mxu0 %v616
        %v761 = vpop.f32.mrf.mxu0
        %v762 = vadd.f32 0.0, %v761
        %v763 = vpop.f32.mrf.mxu0
        %v764 = vadd.f32 0.0, %v763
        %765 = vmatmul.bf16.gmra.mxu0 %v617
        %v766 = vpop.f32.mrf.mxu0
        %v767 = vadd.f32 0.0, %v766
        %v768 = vpop.f32.mrf.mxu0
        %v769 = vadd.f32 0.0, %v768
        %770 = vdwg.mxu0
        %v772 = vperm.slane %v504, 0
        %v774 = vmul.f32 %v692, %v772
        %v775 = vmul.f32 %v694, %v772
        %v776 = vmul.f32 %v697, %v772
        %v777 = vmul.f32 %v699, %v772
        %v778 = vmul.f32 %v702, %v772
        %v779 = vmul.f32 %v704, %v772
        %v780 = vmul.f32 %v707, %v772
        %v781 = vmul.f32 %v709, %v772
        %v782 = vmul.f32 %v712, %v772
        %v783 = vmul.f32 %v714, %v772
        %v784 = vmul.f32 %v717, %v772
        %v785 = vmul.f32 %v719, %v772
        %v786 = vmul.f32 %v722, %v772
        %v787 = vmul.f32 %v724, %v772
        %v788 = vmul.f32 %v727, %v772
        %v789 = vmul.f32 %v729, %v772
        %v790 = vmul.f32 %v732, %v772
        %v791 = vmul.f32 %v734, %v772
        %v792 = vmul.f32 %v737, %v772
        %v793 = vmul.f32 %v739, %v772
        %v794 = vmul.f32 %v742, %v772
        %v795 = vmul.f32 %v744, %v772
        %v796 = vmul.f32 %v747, %v772
        %v797 = vmul.f32 %v749, %v772
        %v798 = vmul.f32 %v752, %v772
        %v799 = vmul.f32 %v754, %v772
        %v800 = vmul.f32 %v757, %v772
        %v801 = vmul.f32 %v759, %v772
        %v802 = vmul.f32 %v762, %v772
        %v803 = vmul.f32 %v764, %v772
        %v804 = vmul.f32 %v767, %v772
        %v805 = vmul.f32 %v769, %v772
        %v807 = vperm.slane %v505, 0
        %v809 = vadd.f32 %v774, %v807
        %v810 = vadd.f32 %v775, %v807
        %v811 = vadd.f32 %v776, %v807
        %v812 = vadd.f32 %v777, %v807
        %v813 = vadd.f32 %v778, %v807
        %v814 = vadd.f32 %v779, %v807
        %v815 = vadd.f32 %v780, %v807
        %v816 = vadd.f32 %v781, %v807
        %v817 = vadd.f32 %v782, %v807
        %v818 = vadd.f32 %v783, %v807
        %v819 = vadd.f32 %v784, %v807
        %v820 = vadd.f32 %v785, %v807
        %v821 = vadd.f32 %v786, %v807
        %v822 = vadd.f32 %v787, %v807
        %v823 = vadd.f32 %v788, %v807
        %v824 = vadd.f32 %v789, %v807
        %v825 = vadd.f32 %v790, %v807
        %v826 = vadd.f32 %v791, %v807
        %v827 = vadd.f32 %v792, %v807
        %v828 = vadd.f32 %v793, %v807
        %v829 = vadd.f32 %v794, %v807
        %v830 = vadd.f32 %v795, %v807
        %v831 = vadd.f32 %v796, %v807
        %v832 = vadd.f32 %v797, %v807
        %v833 = vadd.f32 %v798, %v807
        %v834 = vadd.f32 %v799, %v807
        %v835 = vadd.f32 %v800, %v807
        %v836 = vadd.f32 %v801, %v807
        %v837 = vadd.f32 %v802, %v807
        %v838 = vadd.f32 %v803, %v807
        %v839 = vadd.f32 %v804, %v807
        %v840 = vadd.f32 %v805, %v807
        %s841 = scalar_lea.vmem %s456, 128 [#allocation2]
        %v842 = vld [vmem:[%s841] sm:$0xf]
        %v843 = vld [vmem:[%s841 + $0x4] sm:$0xf]
        %v844 = vld [vmem:[%s841 + $0x8] sm:$0xf]
        %v845 = vld [vmem:[%s841 + $0xc] sm:$0xf]
        %v846 = vld [vmem:[%s841 + $0x10] sm:$0xf]
        %v847 = vld [vmem:[%s841 + $0x14] sm:$0xf]
        %v848 = vld [vmem:[%s841 + $0x18] sm:$0xf]
        %v849 = vld [vmem:[%s841 + $0x1c] sm:$0xf]
        %v850 = vld [vmem:[%s841 + $0x20] sm:$0xf]
        %v851 = vld [vmem:[%s841 + $0x24] sm:$0xf]
        %v852 = vld [vmem:[%s841 + $0x28] sm:$0xf]
        %v853 = vld [vmem:[%s841 + $0x2c] sm:$0xf]
        %v854 = vld [vmem:[%s841 + $0x30] sm:$0xf]
        %v855 = vld [vmem:[%s841 + $0x34] sm:$0xf]
        %v856 = vld [vmem:[%s841 + $0x38] sm:$0xf]
        %v857 = vld [vmem:[%s841 + $0x3c] sm:$0xf]
        %v858 = vld [vmem:[%s841 + $0x40] sm:$0xf]
        %v859 = vld [vmem:[%s841 + $0x44] sm:$0xf]
        %v860 = vld [vmem:[%s841 + $0x48] sm:$0xf]
        %v861 = vld [vmem:[%s841 + $0x4c] sm:$0xf]
        %v862 = vld [vmem:[%s841 + $0x50] sm:$0xf]
        %v863 = vld [vmem:[%s841 + $0x54] sm:$0xf]
        %v864 = vld [vmem:[%s841 + $0x58] sm:$0xf]
        %v865 = vld [vmem:[%s841 + $0x5c] sm:$0xf]
        %v866 = vld [vmem:[%s841 + $0x60] sm:$0xf]
        %v867 = vld [vmem:[%s841 + $0x64] sm:$0xf]
        %v868 = vld [vmem:[%s841 + $0x68] sm:$0xf]
        %v869 = vld [vmem:[%s841 + $0x6c] sm:$0xf]
        %v870 = vld [vmem:[%s841 + $0x70] sm:$0xf]
        %v871 = vld [vmem:[%s841 + $0x74] sm:$0xf]
        %v872 = vld [vmem:[%s841 + $0x78] sm:$0xf]
        %v873 = vld [vmem:[%s841 + $0x7c] sm:$0xf]
        %v906 = vunpack.c.l.b16 %v842
        %v907 = vunpack.c.l.b16 %v843
        %v908 = vunpack.c.l.b16 %v844
        %v909 = vunpack.c.l.b16 %v845
        %v910 = vunpack.c.l.b16 %v846
        %v911 = vunpack.c.l.b16 %v847
        %v912 = vunpack.c.l.b16 %v848
        %v913 = vunpack.c.l.b16 %v849
        %v914 = vunpack.c.l.b16 %v850
        %v915 = vunpack.c.l.b16 %v851
        %v916 = vunpack.c.l.b16 %v852
        %v917 = vunpack.c.l.b16 %v853
        %v918 = vunpack.c.l.b16 %v854
        %v919 = vunpack.c.l.b16 %v855
        %v920 = vunpack.c.l.b16 %v856
        %v921 = vunpack.c.l.b16 %v857
        %v922 = vunpack.c.l.b16 %v858
        %v923 = vunpack.c.l.b16 %v859
        %v924 = vunpack.c.l.b16 %v860
        %v925 = vunpack.c.l.b16 %v861
        %v926 = vunpack.c.l.b16 %v862
        %v927 = vunpack.c.l.b16 %v863
        %v928 = vunpack.c.l.b16 %v864
        %v929 = vunpack.c.l.b16 %v865
        %v930 = vunpack.c.l.b16 %v866
        %v931 = vunpack.c.l.b16 %v867
        %v932 = vunpack.c.l.b16 %v868
        %v933 = vunpack.c.l.b16 %v869
        %v934 = vunpack.c.l.b16 %v870
        %v935 = vunpack.c.l.b16 %v871
        %v936 = vunpack.c.l.b16 %v872
        %v937 = vunpack.c.l.b16 %v873
        %v938 = vpack.c.b16 %v907, %v906
        %v939 = vpack.c.b16 %v909, %v908
        %v940 = vpack.c.b16 %v911, %v910
        %v941 = vpack.c.b16 %v913, %v912
        %v942 = vpack.c.b16 %v915, %v914
        %v943 = vpack.c.b16 %v917, %v916
        %v944 = vpack.c.b16 %v919, %v918
        %v945 = vpack.c.b16 %v921, %v920
        %v946 = vpack.c.b16 %v923, %v922
        %v947 = vpack.c.b16 %v925, %v924
        %v948 = vpack.c.b16 %v927, %v926
        %v949 = vpack.c.b16 %v929, %v928
        %v950 = vpack.c.b16 %v931, %v930
        %v951 = vpack.c.b16 %v933, %v932
        %v952 = vpack.c.b16 %v935, %v934
        %v953 = vpack.c.b16 %v937, %v936
        %970 = vmatpush.bf16.msra.mxu0 %v673
        %971 = vmatpush.bf16.msra.mxu0 %v672
        %972 = vmatpush.bf16.msra.mxu0 %v671
        %973 = vmatpush.bf16.msra.mxu0 %v670
        %974 = vmatpush.bf16.msra.mxu0 %v669
        %975 = vmatpush.bf16.msra.mxu0 %v668
        %976 = vmatpush.bf16.msra.mxu0 %v667
        %977 = vmatpush.bf16.msra.mxu0 %v666
        %978 = vmatmul.bf16.gmra.mxu0 %v938
        %v979 = vpop.f32.mrf.mxu0
        %v980 = vadd.f32 0.0, %v979
        %v981 = vpop.f32.mrf.mxu0
        %v982 = vadd.f32 0.0, %v981
        %983 = vmatmul.bf16.gmra.mxu0 %v939
        %v984 = vpop.f32.mrf.mxu0
        %v985 = vadd.f32 0.0, %v984
        %v986 = vpop.f32.mrf.mxu0
        %v987 = vadd.f32 0.0, %v986
        %988 = vmatmul.bf16.gmra.mxu0 %v940
        %v989 = vpop.f32.mrf.mxu0
        %v990 = vadd.f32 0.0, %v989
        %v991 = vpop.f32.mrf.mxu0
        %v992 = vadd.f32 0.0, %v991
        %993 = vmatmul.bf16.gmra.mxu0 %v941
        %v994 = vpop.f32.mrf.mxu0
        %v995 = vadd.f32 0.0, %v994
        %v996 = vpop.f32.mrf.mxu0
        %v997 = vadd.f32 0.0, %v996
        %998 = vmatmul.bf16.gmra.mxu0 %v942
        %v999 = vpop.f32.mrf.mxu0
        %v1000 = vadd.f32 0.0, %v999
        %v1001 = vpop.f32.mrf.mxu0
        %v1002 = vadd.f32 0.0, %v1001
        %1003 = vmatmul.bf16.gmra.mxu0 %v943
        %v1004 = vpop.f32.mrf.mxu0
        %v1005 = vadd.f32 0.0, %v1004
        %v1006 = vpop.f32.mrf.mxu0
        %v1007 = vadd.f32 0.0, %v1006
        %1008 = vmatmul.bf16.gmra.mxu0 %v944
        %v1009 = vpop.f32.mrf.mxu0
        %v1010 = vadd.f32 0.0, %v1009
        %v1011 = vpop.f32.mrf.mxu0
        %v1012 = vadd.f32 0.0, %v1011
        %1013 = vmatmul.bf16.gmra.mxu0 %v945
        %v1014 = vpop.f32.mrf.mxu0
        %v1015 = vadd.f32 0.0, %v1014
        %v1016 = vpop.f32.mrf.mxu0
        %v1017 = vadd.f32 0.0, %v1016
        %1018 = vmatmul.bf16.gmra.mxu0 %v946
        %v1019 = vpop.f32.mrf.mxu0
        %v1020 = vadd.f32 0.0, %v1019
        %v1021 = vpop.f32.mrf.mxu0
        %v1022 = vadd.f32 0.0, %v1021
        %1023 = vmatmul.bf16.gmra.mxu0 %v947
        %v1024 = vpop.f32.mrf.mxu0
        %v1025 = vadd.f32 0.0, %v1024
        %v1026 = vpop.f32.mrf.mxu0
        %v1027 = vadd.f32 0.0, %v1026
        %1028 = vmatmul.bf16.gmra.mxu0 %v948
        %v1029 = vpop.f32.mrf.mxu0
        %v1030 = vadd.f32 0.0, %v1029
        %v1031 = vpop.f32.mrf.mxu0
        %v1032 = vadd.f32 0.0, %v1031
        %1033 = vmatmul.bf16.gmra.mxu0 %v949
        %v1034 = vpop.f32.mrf.mxu0
        %v1035 = vadd.f32 0.0, %v1034
        %v1036 = vpop.f32.mrf.mxu0
        %v1037 = vadd.f32 0.0, %v1036
        %1038 = vmatmul.bf16.gmra.mxu0 %v950
        %v1039 = vpop.f32.mrf.mxu0
        %v1040 = vadd.f32 0.0, %v1039
        %v1041 = vpop.f32.mrf.mxu0
        %v1042 = vadd.f32 0.0, %v1041
        %1043 = vmatmul.bf16.gmra.mxu0 %v951
        %v1044 = vpop.f32.mrf.mxu0
        %v1045 = vadd.f32 0.0, %v1044
        %v1046 = vpop.f32.mrf.mxu0
        %v1047 = vadd.f32 0.0, %v1046
        %1048 = vmatmul.bf16.gmra.mxu0 %v952
        %v1049 = vpop.f32.mrf.mxu0
        %v1050 = vadd.f32 0.0, %v1049
        %v1051 = vpop.f32.mrf.mxu0
        %v1052 = vadd.f32 0.0, %v1051
        %1053 = vmatmul.bf16.gmra.mxu0 %v953
        %v1054 = vpop.f32.mrf.mxu0
        %v1055 = vadd.f32 0.0, %v1054
        %v1056 = vpop.f32.mrf.mxu0
        %v1057 = vadd.f32 0.0, %v1056
        %1058 = vdwg.mxu0
        %v1059 = vmul.f32 %v980, %v772
        %v1060 = vmul.f32 %v982, %v772
        %v1061 = vmul.f32 %v985, %v772
        %v1062 = vmul.f32 %v987, %v772
        %v1063 = vmul.f32 %v990, %v772
        %v1064 = vmul.f32 %v992, %v772
        %v1065 = vmul.f32 %v995, %v772
        %v1066 = vmul.f32 %v997, %v772
        %v1067 = vmul.f32 %v1000, %v772
        %v1068 = vmul.f32 %v1002, %v772
        %v1069 = vmul.f32 %v1005, %v772
        %v1070 = vmul.f32 %v1007, %v772
        %v1071 = vmul.f32 %v1010, %v772
        %v1072 = vmul.f32 %v1012, %v772
        %v1073 = vmul.f32 %v1015, %v772
        %v1074 = vmul.f32 %v1017, %v772
        %v1075 = vmul.f32 %v1020, %v772
        %v1076 = vmul.f32 %v1022, %v772
        %v1077 = vmul.f32 %v1025, %v772
        %v1078 = vmul.f32 %v1027, %v772
        %v1079 = vmul.f32 %v1030, %v772
        %v1080 = vmul.f32 %v1032, %v772
        %v1081 = vmul.f32 %v1035, %v772
        %v1082 = vmul.f32 %v1037, %v772
        %v1083 = vmul.f32 %v1040, %v772
        %v1084 = vmul.f32 %v1042, %v772
        %v1085 = vmul.f32 %v1045, %v772
        %v1086 = vmul.f32 %v1047, %v772
        %v1087 = vmul.f32 %v1050, %v772
        %v1088 = vmul.f32 %v1052, %v772
        %v1089 = vmul.f32 %v1055, %v772
        %v1090 = vmul.f32 %v1057, %v772
        %v1091 = vadd.f32 %v1059, %v807
        %v1092 = vadd.f32 %v1060, %v807
        %v1093 = vadd.f32 %v1061, %v807
        %v1094 = vadd.f32 %v1062, %v807
        %v1095 = vadd.f32 %v1063, %v807
        %v1096 = vadd.f32 %v1064, %v807
        %v1097 = vadd.f32 %v1065, %v807
        %v1098 = vadd.f32 %v1066, %v807
        %v1099 = vadd.f32 %v1067, %v807
        %v1100 = vadd.f32 %v1068, %v807
        %v1101 = vadd.f32 %v1069, %v807
        %v1102 = vadd.f32 %v1070, %v807
        %v1103 = vadd.f32 %v1071, %v807
        %v1104 = vadd.f32 %v1072, %v807
        %v1105 = vadd.f32 %v1073, %v807
        %v1106 = vadd.f32 %v1074, %v807
        %v1107 = vadd.f32 %v1075, %v807
        %v1108 = vadd.f32 %v1076, %v807
        %v1109 = vadd.f32 %v1077, %v807
        %v1110 = vadd.f32 %v1078, %v807
        %v1111 = vadd.f32 %v1079, %v807
        %v1112 = vadd.f32 %v1080, %v807
        %v1113 = vadd.f32 %v1081, %v807
        %v1114 = vadd.f32 %v1082, %v807
        %v1115 = vadd.f32 %v1083, %v807
        %v1116 = vadd.f32 %v1084, %v807
        %v1117 = vadd.f32 %v1085, %v807
        %v1118 = vadd.f32 %v1086, %v807
        %v1119 = vadd.f32 %v1087, %v807
        %v1120 = vadd.f32 %v1088, %v807
        %v1121 = vadd.f32 %v1089, %v807
        %v1122 = vadd.f32 %v1090, %v807
        %v1123 = vmax.f32 %v809, %v1091
        %v1124 = vmax.f32 %v810, %v1092
        %v1125 = vmax.f32 %v811, %v1093
        %v1126 = vmax.f32 %v812, %v1094
        %v1127 = vmax.f32 %v813, %v1095
        %v1128 = vmax.f32 %v814, %v1096
        %v1129 = vmax.f32 %v815, %v1097
        %v1130 = vmax.f32 %v816, %v1098
        %v1131 = vmax.f32 %v817, %v1099
        %v1132 = vmax.f32 %v818, %v1100
        %v1133 = vmax.f32 %v819, %v1101
        %v1134 = vmax.f32 %v820, %v1102
        %v1135 = vmax.f32 %v821, %v1103
        %v1136 = vmax.f32 %v822, %v1104
        %v1137 = vmax.f32 %v823, %v1105
        %v1138 = vmax.f32 %v824, %v1106
        %v1139 = vmax.f32 %v825, %v1107
        %v1140 = vmax.f32 %v826, %v1108
        %v1141 = vmax.f32 %v827, %v1109
        %v1142 = vmax.f32 %v828, %v1110
        %v1143 = vmax.f32 %v829, %v1111
        %v1144 = vmax.f32 %v830, %v1112
        %v1145 = vmax.f32 %v831, %v1113
        %v1146 = vmax.f32 %v832, %v1114
        %v1147 = vmax.f32 %v833, %v1115
        %v1148 = vmax.f32 %v834, %v1116
        %v1149 = vmax.f32 %v835, %v1117
        %v1150 = vmax.f32 %v836, %v1118
        %v1151 = vmax.f32 %v837, %v1119
        %v1152 = vmax.f32 %v838, %v1120
        %v1153 = vmax.f32 %v839, %v1121
        %v1154 = vmax.f32 %v840, %v1122
        %s1155 = scalar_lea.vmem %s456, 256 [#allocation2]
        %v1156 = vld [vmem:[%s1155] sm:$0xf]
        %v1157 = vld [vmem:[%s1155 + $0x4] sm:$0xf]
        %v1158 = vld [vmem:[%s1155 + $0x8] sm:$0xf]
        %v1159 = vld [vmem:[%s1155 + $0xc] sm:$0xf]
        %v1160 = vld [vmem:[%s1155 + $0x10] sm:$0xf]
        %v1161 = vld [vmem:[%s1155 + $0x14] sm:$0xf]
        %v1162 = vld [vmem:[%s1155 + $0x18] sm:$0xf]
        %v1163 = vld [vmem:[%s1155 + $0x1c] sm:$0xf]
        %v1164 = vld [vmem:[%s1155 + $0x20] sm:$0xf]
        %v1165 = vld [vmem:[%s1155 + $0x24] sm:$0xf]
        %v1166 = vld [vmem:[%s1155 + $0x28] sm:$0xf]
        %v1167 = vld [vmem:[%s1155 + $0x2c] sm:$0xf]
        %v1168 = vld [vmem:[%s1155 + $0x30] sm:$0xf]
        %v1169 = vld [vmem:[%s1155 + $0x34] sm:$0xf]
        %v1170 = vld [vmem:[%s1155 + $0x38] sm:$0xf]
        %v1171 = vld [vmem:[%s1155 + $0x3c] sm:$0xf]
        %v1172 = vld [vmem:[%s1155 + $0x40] sm:$0xf]
        %v1173 = vld [vmem:[%s1155 + $0x44] sm:$0xf]
        %v1174 = vld [vmem:[%s1155 + $0x48] sm:$0xf]
        %v1175 = vld [vmem:[%s1155 + $0x4c] sm:$0xf]
        %v1176 = vld [vmem:[%s1155 + $0x50] sm:$0xf]
        %v1177 = vld [vmem:[%s1155 + $0x54] sm:$0xf]
        %v1178 = vld [vmem:[%s1155 + $0x58] sm:$0xf]
        %v1179 = vld [vmem:[%s1155 + $0x5c] sm:$0xf]
        %v1180 = vld [vmem:[%s1155 + $0x60] sm:$0xf]
        %v1181 = vld [vmem:[%s1155 + $0x64] sm:$0xf]
        %v1182 = vld [vmem:[%s1155 + $0x68] sm:$0xf]
        %v1183 = vld [vmem:[%s1155 + $0x6c] sm:$0xf]
        %v1184 = vld [vmem:[%s1155 + $0x70] sm:$0xf]
        %v1185 = vld [vmem:[%s1155 + $0x74] sm:$0xf]
        %v1186 = vld [vmem:[%s1155 + $0x78] sm:$0xf]
        %v1187 = vld [vmem:[%s1155 + $0x7c] sm:$0xf]
        %v1220 = vunpack.c.l.b16 %v1156
        %v1221 = vunpack.c.l.b16 %v1157
        %v1222 = vunpack.c.l.b16 %v1158
        %v1223 = vunpack.c.l.b16 %v1159
        %v1224 = vunpack.c.l.b16 %v1160
        %v1225 = vunpack.c.l.b16 %v1161
        %v1226 = vunpack.c.l.b16 %v1162
        %v1227 = vunpack.c.l.b16 %v1163
        %v1228 = vunpack.c.l.b16 %v1164
        %v1229 = vunpack.c.l.b16 %v1165
        %v1230 = vunpack.c.l.b16 %v1166
        %v1231 = vunpack.c.l.b16 %v1167
        %v1232 = vunpack.c.l.b16 %v1168
        %v1233 = vunpack.c.l.b16 %v1169
        %v1234 = vunpack.c.l.b16 %v1170
        %v1235 = vunpack.c.l.b16 %v1171
        %v1236 = vunpack.c.l.b16 %v1172
        %v1237 = vunpack.c.l.b16 %v1173
        %v1238 = vunpack.c.l.b16 %v1174
        %v1239 = vunpack.c.l.b16 %v1175
        %v1240 = vunpack.c.l.b16 %v1176
        %v1241 = vunpack.c.l.b16 %v1177
        %v1242 = vunpack.c.l.b16 %v1178
        %v1243 = vunpack.c.l.b16 %v1179
        %v1244 = vunpack.c.l.b16 %v1180
        %v1245 = vunpack.c.l.b16 %v1181
        %v1246 = vunpack.c.l.b16 %v1182
        %v1247 = vunpack.c.l.b16 %v1183
        %v1248 = vunpack.c.l.b16 %v1184
        %v1249 = vunpack.c.l.b16 %v1185
        %v1250 = vunpack.c.l.b16 %v1186
        %v1251 = vunpack.c.l.b16 %v1187
        %v1252 = vpack.c.b16 %v1221, %v1220
        %v1253 = vpack.c.b16 %v1223, %v1222
        %v1254 = vpack.c.b16 %v1225, %v1224
        %v1255 = vpack.c.b16 %v1227, %v1226
        %v1256 = vpack.c.b16 %v1229, %v1228
        %v1257 = vpack.c.b16 %v1231, %v1230
        %v1258 = vpack.c.b16 %v1233, %v1232
        %v1259 = vpack.c.b16 %v1235, %v1234
        %v1260 = vpack.c.b16 %v1237, %v1236
        %v1261 = vpack.c.b16 %v1239, %v1238
        %v1262 = vpack.c.b16 %v1241, %v1240
        %v1263 = vpack.c.b16 %v1243, %v1242
        %v1264 = vpack.c.b16 %v1245, %v1244
        %v1265 = vpack.c.b16 %v1247, %v1246
        %v1266 = vpack.c.b16 %v1249, %v1248
        %v1267 = vpack.c.b16 %v1251, %v1250
        %1284 = vmatpush.bf16.msra.mxu0 %v673
        %1285 = vmatpush.bf16.msra.mxu0 %v672
        %1286 = vmatpush.bf16.msra.mxu0 %v671
        %1287 = vmatpush.bf16.msra.mxu0 %v670
        %1288 = vmatpush.bf16.msra.mxu0 %v669
        %1289 = vmatpush.bf16.msra.mxu0 %v668
        %1290 = vmatpush.bf16.msra.mxu0 %v667
        %1291 = vmatpush.bf16.msra.mxu0 %v666
        %1292 = vmatmul.bf16.gmra.mxu0 %v1252
        %v1293 = vpop.f32.mrf.mxu0
        %v1294 = vadd.f32 0.0, %v1293
        %v1295 = vpop.f32.mrf.mxu0
        %v1296 = vadd.f32 0.0, %v1295
        %1297 = vmatmul.bf16.gmra.mxu0 %v1253
        %v1298 = vpop.f32.mrf.mxu0
        %v1299 = vadd.f32 0.0, %v1298
        %v1300 = vpop.f32.mrf.mxu0
        %v1301 = vadd.f32 0.0, %v1300
        %1302 = vmatmul.bf16.gmra.mxu0 %v1254
        %v1303 = vpop.f32.mrf.mxu0
        %v1304 = vadd.f32 0.0, %v1303
        %v1305 = vpop.f32.mrf.mxu0
        %v1306 = vadd.f32 0.0, %v1305
        %1307 = vmatmul.bf16.gmra.mxu0 %v1255
        %v1308 = vpop.f32.mrf.mxu0
        %v1309 = vadd.f32 0.0, %v1308
        %v1310 = vpop.f32.mrf.mxu0
        %v1311 = vadd.f32 0.0, %v1310
        %1312 = vmatmul.bf16.gmra.mxu0 %v1256
        %v1313 = vpop.f32.mrf.mxu0
        %v1314 = vadd.f32 0.0, %v1313
        %v1315 = vpop.f32.mrf.mxu0
        %v1316 = vadd.f32 0.0, %v1315
        %1317 = vmatmul.bf16.gmra.mxu0 %v1257
        %v1318 = vpop.f32.mrf.mxu0
        %v1319 = vadd.f32 0.0, %v1318
        %v1320 = vpop.f32.mrf.mxu0
        %v1321 = vadd.f32 0.0, %v1320
        %1322 = vmatmul.bf16.gmra.mxu0 %v1258
        %v1323 = vpop.f32.mrf.mxu0
        %v1324 = vadd.f32 0.0, %v1323
        %v1325 = vpop.f32.mrf.mxu0
        %v1326 = vadd.f32 0.0, %v1325
        %1327 = vmatmul.bf16.gmra.mxu0 %v1259
        %v1328 = vpop.f32.mrf.mxu0
        %v1329 = vadd.f32 0.0, %v1328
        %v1330 = vpop.f32.mrf.mxu0
        %v1331 = vadd.f32 0.0, %v1330
        %1332 = vmatmul.bf16.gmra.mxu0 %v1260
        %v1333 = vpop.f32.mrf.mxu0
        %v1334 = vadd.f32 0.0, %v1333
        %v1335 = vpop.f32.mrf.mxu0
        %v1336 = vadd.f32 0.0, %v1335
        %1337 = vmatmul.bf16.gmra.mxu0 %v1261
        %v1338 = vpop.f32.mrf.mxu0
        %v1339 = vadd.f32 0.0, %v1338
        %v1340 = vpop.f32.mrf.mxu0
        %v1341 = vadd.f32 0.0, %v1340
        %1342 = vmatmul.bf16.gmra.mxu0 %v1262
        %v1343 = vpop.f32.mrf.mxu0
        %v1344 = vadd.f32 0.0, %v1343
        %v1345 = vpop.f32.mrf.mxu0
        %v1346 = vadd.f32 0.0, %v1345
        %1347 = vmatmul.bf16.gmra.mxu0 %v1263
        %v1348 = vpop.f32.mrf.mxu0
        %v1349 = vadd.f32 0.0, %v1348
        %v1350 = vpop.f32.mrf.mxu0
        %v1351 = vadd.f32 0.0, %v1350
        %1352 = vmatmul.bf16.gmra.mxu0 %v1264
        %v1353 = vpop.f32.mrf.mxu0
        %v1354 = vadd.f32 0.0, %v1353
        %v1355 = vpop.f32.mrf.mxu0
        %v1356 = vadd.f32 0.0, %v1355
        %1357 = vmatmul.bf16.gmra.mxu0 %v1265
        %v1358 = vpop.f32.mrf.mxu0
        %v1359 = vadd.f32 0.0, %v1358
        %v1360 = vpop.f32.mrf.mxu0
        %v1361 = vadd.f32 0.0, %v1360
        %1362 = vmatmul.bf16.gmra.mxu0 %v1266
        %v1363 = vpop.f32.mrf.mxu0
        %v1364 = vadd.f32 0.0, %v1363
        %v1365 = vpop.f32.mrf.mxu0
        %v1366 = vadd.f32 0.0, %v1365
        %1367 = vmatmul.bf16.gmra.mxu0 %v1267
        %v1368 = vpop.f32.mrf.mxu0
        %v1369 = vadd.f32 0.0, %v1368
        %v1370 = vpop.f32.mrf.mxu0
        %v1371 = vadd.f32 0.0, %v1370
        %1372 = vdwg.mxu0
        %v1373 = vmul.f32 %v1294, %v772
        %v1374 = vmul.f32 %v1296, %v772
        %v1375 = vmul.f32 %v1299, %v772
        %v1376 = vmul.f32 %v1301, %v772
        %v1377 = vmul.f32 %v1304, %v772
        %v1378 = vmul.f32 %v1306, %v772
        %v1379 = vmul.f32 %v1309, %v772
        %v1380 = vmul.f32 %v1311, %v772
        %v1381 = vmul.f32 %v1314, %v772
        %v1382 = vmul.f32 %v1316, %v772
        %v1383 = vmul.f32 %v1319, %v772
        %v1384 = vmul.f32 %v1321, %v772
        %v1385 = vmul.f32 %v1324, %v772
        %v1386 = vmul.f32 %v1326, %v772
        %v1387 = vmul.f32 %v1329, %v772
        %v1388 = vmul.f32 %v1331, %v772
        %v1389 = vmul.f32 %v1334, %v772
        %v1390 = vmul.f32 %v1336, %v772
        %v1391 = vmul.f32 %v1339, %v772
        %v1392 = vmul.f32 %v1341, %v772
        %v1393 = vmul.f32 %v1344, %v772
        %v1394 = vmul.f32 %v1346, %v772
        %v1395 = vmul.f32 %v1349, %v772
        %v1396 = vmul.f32 %v1351, %v772
        %v1397 = vmul.f32 %v1354, %v772
        %v1398 = vmul.f32 %v1356, %v772
        %v1399 = vmul.f32 %v1359, %v772
        %v1400 = vmul.f32 %v1361, %v772
        %v1401 = vmul.f32 %v1364, %v772
        %v1402 = vmul.f32 %v1366, %v772
        %v1403 = vmul.f32 %v1369, %v772
        %v1404 = vmul.f32 %v1371, %v772
        %v1405 = vadd.f32 %v1373, %v807
        %v1406 = vadd.f32 %v1374, %v807
        %v1407 = vadd.f32 %v1375, %v807
        %v1408 = vadd.f32 %v1376, %v807
        %v1409 = vadd.f32 %v1377, %v807
        %v1410 = vadd.f32 %v1378, %v807
        %v1411 = vadd.f32 %v1379, %v807
        %v1412 = vadd.f32 %v1380, %v807
        %v1413 = vadd.f32 %v1381, %v807
        %v1414 = vadd.f32 %v1382, %v807
        %v1415 = vadd.f32 %v1383, %v807
        %v1416 = vadd.f32 %v1384, %v807
        %v1417 = vadd.f32 %v1385, %v807
        %v1418 = vadd.f32 %v1386, %v807
        %v1419 = vadd.f32 %v1387, %v807
        %v1420 = vadd.f32 %v1388, %v807
        %v1421 = vadd.f32 %v1389, %v807
        %v1422 = vadd.f32 %v1390, %v807
        %v1423 = vadd.f32 %v1391, %v807
        %v1424 = vadd.f32 %v1392, %v807
        %v1425 = vadd.f32 %v1393, %v807
        %v1426 = vadd.f32 %v1394, %v807
        %v1427 = vadd.f32 %v1395, %v807
        %v1428 = vadd.f32 %v1396, %v807
        %v1429 = vadd.f32 %v1397, %v807
        %v1430 = vadd.f32 %v1398, %v807
        %v1431 = vadd.f32 %v1399, %v807
        %v1432 = vadd.f32 %v1400, %v807
        %v1433 = vadd.f32 %v1401, %v807
        %v1434 = vadd.f32 %v1402, %v807
        %v1435 = vadd.f32 %v1403, %v807
        %v1436 = vadd.f32 %v1404, %v807
        %s1437 = scalar_lea.vmem %s456, 384 [#allocation2]
        %v1438 = vld [vmem:[%s1437] sm:$0xf]
        %v1439 = vld [vmem:[%s1437 + $0x4] sm:$0xf]
        %v1440 = vld [vmem:[%s1437 + $0x8] sm:$0xf]
        %v1441 = vld [vmem:[%s1437 + $0xc] sm:$0xf]
        %v1442 = vld [vmem:[%s1437 + $0x10] sm:$0xf]
        %v1443 = vld [vmem:[%s1437 + $0x14] sm:$0xf]
        %v1444 = vld [vmem:[%s1437 + $0x18] sm:$0xf]
        %v1445 = vld [vmem:[%s1437 + $0x1c] sm:$0xf]
        %v1446 = vld [vmem:[%s1437 + $0x20] sm:$0xf]
        %v1447 = vld [vmem:[%s1437 + $0x24] sm:$0xf]
        %v1448 = vld [vmem:[%s1437 + $0x28] sm:$0xf]
        %v1449 = vld [vmem:[%s1437 + $0x2c] sm:$0xf]
        %v1450 = vld [vmem:[%s1437 + $0x30] sm:$0xf]
        %v1451 = vld [vmem:[%s1437 + $0x34] sm:$0xf]
        %v1452 = vld [vmem:[%s1437 + $0x38] sm:$0xf]
        %v1453 = vld [vmem:[%s1437 + $0x3c] sm:$0xf]
        %v1454 = vld [vmem:[%s1437 + $0x40] sm:$0xf]
        %v1455 = vld [vmem:[%s1437 + $0x44] sm:$0xf]
        %v1456 = vld [vmem:[%s1437 + $0x48] sm:$0xf]
        %v1457 = vld [vmem:[%s1437 + $0x4c] sm:$0xf]
        %v1458 = vld [vmem:[%s1437 + $0x50] sm:$0xf]
        %v1459 = vld [vmem:[%s1437 + $0x54] sm:$0xf]
        %v1460 = vld [vmem:[%s1437 + $0x58] sm:$0xf]
        %v1461 = vld [vmem:[%s1437 + $0x5c] sm:$0xf]
        %v1462 = vld [vmem:[%s1437 + $0x60] sm:$0xf]
        %v1463 = vld [vmem:[%s1437 + $0x64] sm:$0xf]
        %v1464 = vld [vmem:[%s1437 + $0x68] sm:$0xf]
        %v1465 = vld [vmem:[%s1437 + $0x6c] sm:$0xf]
        %v1466 = vld [vmem:[%s1437 + $0x70] sm:$0xf]
        %v1467 = vld [vmem:[%s1437 + $0x74] sm:$0xf]
        %v1468 = vld [vmem:[%s1437 + $0x78] sm:$0xf]
        %v1469 = vld [vmem:[%s1437 + $0x7c] sm:$0xf]
        %v1502 = vunpack.c.l.b16 %v1438
        %v1503 = vunpack.c.l.b16 %v1439
        %v1504 = vunpack.c.l.b16 %v1440
        %v1505 = vunpack.c.l.b16 %v1441
        %v1506 = vunpack.c.l.b16 %v1442
        %v1507 = vunpack.c.l.b16 %v1443
        %v1508 = vunpack.c.l.b16 %v1444
        %v1509 = vunpack.c.l.b16 %v1445
        %v1510 = vunpack.c.l.b16 %v1446
        %v1511 = vunpack.c.l.b16 %v1447
        %v1512 = vunpack.c.l.b16 %v1448
        %v1513 = vunpack.c.l.b16 %v1449
        %v1514 = vunpack.c.l.b16 %v1450
        %v1515 = vunpack.c.l.b16 %v1451
        %v1516 = vunpack.c.l.b16 %v1452
        %v1517 = vunpack.c.l.b16 %v1453
        %v1518 = vunpack.c.l.b16 %v1454
        %v1519 = vunpack.c.l.b16 %v1455
        %v1520 = vunpack.c.l.b16 %v1456
        %v1521 = vunpack.c.l.b16 %v1457
        %v1522 = vunpack.c.l.b16 %v1458
        %v1523 = vunpack.c.l.b16 %v1459
        %v1524 = vunpack.c.l.b16 %v1460
        %v1525 = vunpack.c.l.b16 %v1461
        %v1526 = vunpack.c.l.b16 %v1462
        %v1527 = vunpack.c.l.b16 %v1463
        %v1528 = vunpack.c.l.b16 %v1464
        %v1529 = vunpack.c.l.b16 %v1465
        %v1530 = vunpack.c.l.b16 %v1466
        %v1531 = vunpack.c.l.b16 %v1467
        %v1532 = vunpack.c.l.b16 %v1468
        %v1533 = vunpack.c.l.b16 %v1469
        %v1534 = vpack.c.b16 %v1503, %v1502
        %v1535 = vpack.c.b16 %v1505, %v1504
        %v1536 = vpack.c.b16 %v1507, %v1506
        %v1537 = vpack.c.b16 %v1509, %v1508
        %v1538 = vpack.c.b16 %v1511, %v1510
        %v1539 = vpack.c.b16 %v1513, %v1512
        %v1540 = vpack.c.b16 %v1515, %v1514
        %v1541 = vpack.c.b16 %v1517, %v1516
        %v1542 = vpack.c.b16 %v1519, %v1518
        %v1543 = vpack.c.b16 %v1521, %v1520
        %v1544 = vpack.c.b16 %v1523, %v1522
        %v1545 = vpack.c.b16 %v1525, %v1524
        %v1546 = vpack.c.b16 %v1527, %v1526
        %v1547 = vpack.c.b16 %v1529, %v1528
        %v1548 = vpack.c.b16 %v1531, %v1530
        %v1549 = vpack.c.b16 %v1533, %v1532
        %1566 = vmatpush.bf16.msra.mxu0 %v673
        %1567 = vmatpush.bf16.msra.mxu0 %v672
        %1568 = vmatpush.bf16.msra.mxu0 %v671
        %1569 = vmatpush.bf16.msra.mxu0 %v670
        %1570 = vmatpush.bf16.msra.mxu0 %v669
        %1571 = vmatpush.bf16.msra.mxu0 %v668
        %1572 = vmatpush.bf16.msra.mxu0 %v667
        %1573 = vmatpush.bf16.msra.mxu0 %v666
        %1574 = vmatmul.bf16.gmra.mxu0 %v1534
        %v1575 = vpop.f32.mrf.mxu0
        %v1576 = vadd.f32 0.0, %v1575
        %v1577 = vpop.f32.mrf.mxu0
        %v1578 = vadd.f32 0.0, %v1577
        %1579 = vmatmul.bf16.gmra.mxu0 %v1535
        %v1580 = vpop.f32.mrf.mxu0
        %v1581 = vadd.f32 0.0, %v1580
        %v1582 = vpop.f32.mrf.mxu0
        %v1583 = vadd.f32 0.0, %v1582
        %1584 = vmatmul.bf16.gmra.mxu0 %v1536
        %v1585 = vpop.f32.mrf.mxu0
        %v1586 = vadd.f32 0.0, %v1585
        %v1587 = vpop.f32.mrf.mxu0
        %v1588 = vadd.f32 0.0, %v1587
        %1589 = vmatmul.bf16.gmra.mxu0 %v1537
        %v1590 = vpop.f32.mrf.mxu0
        %v1591 = vadd.f32 0.0, %v1590
        %v1592 = vpop.f32.mrf.mxu0
        %v1593 = vadd.f32 0.0, %v1592
        %1594 = vmatmul.bf16.gmra.mxu0 %v1538
        %v1595 = vpop.f32.mrf.mxu0
        %v1596 = vadd.f32 0.0, %v1595
        %v1597 = vpop.f32.mrf.mxu0
        %v1598 = vadd.f32 0.0, %v1597
        %1599 = vmatmul.bf16.gmra.mxu0 %v1539
        %v1600 = vpop.f32.mrf.mxu0
        %v1601 = vadd.f32 0.0, %v1600
        %v1602 = vpop.f32.mrf.mxu0
        %v1603 = vadd.f32 0.0, %v1602
        %1604 = vmatmul.bf16.gmra.mxu0 %v1540
        %v1605 = vpop.f32.mrf.mxu0
        %v1606 = vadd.f32 0.0, %v1605
        %v1607 = vpop.f32.mrf.mxu0
        %v1608 = vadd.f32 0.0, %v1607
        %1609 = vmatmul.bf16.gmra.mxu0 %v1541
        %v1610 = vpop.f32.mrf.mxu0
        %v1611 = vadd.f32 0.0, %v1610
        %v1612 = vpop.f32.mrf.mxu0
        %v1613 = vadd.f32 0.0, %v1612
        %1614 = vmatmul.bf16.gmra.mxu0 %v1542
        %v1615 = vpop.f32.mrf.mxu0
        %v1616 = vadd.f32 0.0, %v1615
        %v1617 = vpop.f32.mrf.mxu0
        %v1618 = vadd.f32 0.0, %v1617
        %1619 = vmatmul.bf16.gmra.mxu0 %v1543
        %v1620 = vpop.f32.mrf.mxu0
        %v1621 = vadd.f32 0.0, %v1620
        %v1622 = vpop.f32.mrf.mxu0
        %v1623 = vadd.f32 0.0, %v1622
        %1624 = vmatmul.bf16.gmra.mxu0 %v1544
        %v1625 = vpop.f32.mrf.mxu0
        %v1626 = vadd.f32 0.0, %v1625
        %v1627 = vpop.f32.mrf.mxu0
        %v1628 = vadd.f32 0.0, %v1627
        %1629 = vmatmul.bf16.gmra.mxu0 %v1545
        %v1630 = vpop.f32.mrf.mxu0
        %v1631 = vadd.f32 0.0, %v1630
        %v1632 = vpop.f32.mrf.mxu0
        %v1633 = vadd.f32 0.0, %v1632
        %1634 = vmatmul.bf16.gmra.mxu0 %v1546
        %v1635 = vpop.f32.mrf.mxu0
        %v1636 = vadd.f32 0.0, %v1635
        %v1637 = vpop.f32.mrf.mxu0
        %v1638 = vadd.f32 0.0, %v1637
        %1639 = vmatmul.bf16.gmra.mxu0 %v1547
        %v1640 = vpop.f32.mrf.mxu0
        %v1641 = vadd.f32 0.0, %v1640
        %v1642 = vpop.f32.mrf.mxu0
        %v1643 = vadd.f32 0.0, %v1642
        %1644 = vmatmul.bf16.gmra.mxu0 %v1548
        %v1645 = vpop.f32.mrf.mxu0
        %v1646 = vadd.f32 0.0, %v1645
        %v1647 = vpop.f32.mrf.mxu0
        %v1648 = vadd.f32 0.0, %v1647
        %1649 = vmatmul.bf16.gmra.mxu0 %v1549
        %v1650 = vpop.f32.mrf.mxu0
        %v1651 = vadd.f32 0.0, %v1650
        %v1652 = vpop.f32.mrf.mxu0
        %v1653 = vadd.f32 0.0, %v1652
        %1654 = vdwg.mxu0
        %v1655 = vmul.f32 %v1576, %v772
        %v1656 = vmul.f32 %v1578, %v772
        %v1657 = vmul.f32 %v1581, %v772
        %v1658 = vmul.f32 %v1583, %v772
        %v1659 = vmul.f32 %v1586, %v772
        %v1660 = vmul.f32 %v1588, %v772
        %v1661 = vmul.f32 %v1591, %v772
        %v1662 = vmul.f32 %v1593, %v772
        %v1663 = vmul.f32 %v1596, %v772
        %v1664 = vmul.f32 %v1598, %v772
        %v1665 = vmul.f32 %v1601, %v772
        %v1666 = vmul.f32 %v1603, %v772
        %v1667 = vmul.f32 %v1606, %v772
        %v1668 = vmul.f32 %v1608, %v772
        %v1669 = vmul.f32 %v1611, %v772
        %v1670 = vmul.f32 %v1613, %v772
        %v1671 = vmul.f32 %v1616, %v772
        %v1672 = vmul.f32 %v1618, %v772
        %v1673 = vmul.f32 %v1621, %v772
        %v1674 = vmul.f32 %v1623, %v772
        %v1675 = vmul.f32 %v1626, %v772
        %v1676 = vmul.f32 %v1628, %v772
        %v1677 = vmul.f32 %v1631, %v772
        %v1678 = vmul.f32 %v1633, %v772
        %v1679 = vmul.f32 %v1636, %v772
        %v1680 = vmul.f32 %v1638, %v772
        %v1681 = vmul.f32 %v1641, %v772
        %v1682 = vmul.f32 %v1643, %v772
        %v1683 = vmul.f32 %v1646, %v772
        %v1684 = vmul.f32 %v1648, %v772
        %v1685 = vmul.f32 %v1651, %v772
        %v1686 = vmul.f32 %v1653, %v772
        %v1687 = vadd.f32 %v1655, %v807
        %v1688 = vadd.f32 %v1656, %v807
        %v1689 = vadd.f32 %v1657, %v807
        %v1690 = vadd.f32 %v1658, %v807
        %v1691 = vadd.f32 %v1659, %v807
        %v1692 = vadd.f32 %v1660, %v807
        %v1693 = vadd.f32 %v1661, %v807
        %v1694 = vadd.f32 %v1662, %v807
        %v1695 = vadd.f32 %v1663, %v807
        %v1696 = vadd.f32 %v1664, %v807
        %v1697 = vadd.f32 %v1665, %v807
        %v1698 = vadd.f32 %v1666, %v807
        %v1699 = vadd.f32 %v1667, %v807
        %v1700 = vadd.f32 %v1668, %v807
        %v1701 = vadd.f32 %v1669, %v807
        %v1702 = vadd.f32 %v1670, %v807
        %v1703 = vadd.f32 %v1671, %v807
        %v1704 = vadd.f32 %v1672, %v807
        %v1705 = vadd.f32 %v1673, %v807
        %v1706 = vadd.f32 %v1674, %v807
        %v1707 = vadd.f32 %v1675, %v807
        %v1708 = vadd.f32 %v1676, %v807
        %v1709 = vadd.f32 %v1677, %v807
        %v1710 = vadd.f32 %v1678, %v807
        %v1711 = vadd.f32 %v1679, %v807
        %v1712 = vadd.f32 %v1680, %v807
        %v1713 = vadd.f32 %v1681, %v807
        %v1714 = vadd.f32 %v1682, %v807
        %v1715 = vadd.f32 %v1683, %v807
        %v1716 = vadd.f32 %v1684, %v807
        %v1717 = vadd.f32 %v1685, %v807
        %v1718 = vadd.f32 %v1686, %v807
        %v1719 = vmax.f32 %v1405, %v1687
        %v1720 = vmax.f32 %v1406, %v1688
        %v1721 = vmax.f32 %v1407, %v1689
        %v1722 = vmax.f32 %v1408, %v1690
        %v1723 = vmax.f32 %v1409, %v1691
        %v1724 = vmax.f32 %v1410, %v1692
        %v1725 = vmax.f32 %v1411, %v1693
        %v1726 = vmax.f32 %v1412, %v1694
        %v1727 = vmax.f32 %v1413, %v1695
        %v1728 = vmax.f32 %v1414, %v1696
        %v1729 = vmax.f32 %v1415, %v1697
        %v1730 = vmax.f32 %v1416, %v1698
        %v1731 = vmax.f32 %v1417, %v1699
        %v1732 = vmax.f32 %v1418, %v1700
        %v1733 = vmax.f32 %v1419, %v1701
        %v1734 = vmax.f32 %v1420, %v1702
        %v1735 = vmax.f32 %v1421, %v1703
        %v1736 = vmax.f32 %v1422, %v1704
        %v1737 = vmax.f32 %v1423, %v1705
        %v1738 = vmax.f32 %v1424, %v1706
        %v1739 = vmax.f32 %v1425, %v1707
        %v1740 = vmax.f32 %v1426, %v1708
        %v1741 = vmax.f32 %v1427, %v1709
        %v1742 = vmax.f32 %v1428, %v1710
        %v1743 = vmax.f32 %v1429, %v1711
        %v1744 = vmax.f32 %v1430, %v1712
        %v1745 = vmax.f32 %v1431, %v1713
        %v1746 = vmax.f32 %v1432, %v1714
        %v1747 = vmax.f32 %v1433, %v1715
        %v1748 = vmax.f32 %v1434, %v1716
        %v1749 = vmax.f32 %v1435, %v1717
        %v1750 = vmax.f32 %v1436, %v1718
        %v1751 = vmax.f32 %v1123, %v1719
        %v1752 = vmax.f32 %v1124, %v1720
        %v1753 = vmax.f32 %v1125, %v1721
        %v1754 = vmax.f32 %v1126, %v1722
        %v1755 = vmax.f32 %v1127, %v1723
        %v1756 = vmax.f32 %v1128, %v1724
        %v1757 = vmax.f32 %v1129, %v1725
        %v1758 = vmax.f32 %v1130, %v1726
        %v1759 = vmax.f32 %v1131, %v1727
        %v1760 = vmax.f32 %v1132, %v1728
        %v1761 = vmax.f32 %v1133, %v1729
        %v1762 = vmax.f32 %v1134, %v1730
        %v1763 = vmax.f32 %v1135, %v1731
        %v1764 = vmax.f32 %v1136, %v1732
        %v1765 = vmax.f32 %v1137, %v1733
        %v1766 = vmax.f32 %v1138, %v1734
        %v1767 = vmax.f32 %v1139, %v1735
        %v1768 = vmax.f32 %v1140, %v1736
        %v1769 = vmax.f32 %v1141, %v1737
        %v1770 = vmax.f32 %v1142, %v1738
        %v1771 = vmax.f32 %v1143, %v1739
        %v1772 = vmax.f32 %v1144, %v1740
        %v1773 = vmax.f32 %v1145, %v1741
        %v1774 = vmax.f32 %v1146, %v1742
        %v1775 = vmax.f32 %v1147, %v1743
        %v1776 = vmax.f32 %v1148, %v1744
        %v1777 = vmax.f32 %v1149, %v1745
        %v1778 = vmax.f32 %v1150, %v1746
        %v1779 = vmax.f32 %v1151, %v1747
        %v1780 = vmax.f32 %v1152, %v1748
        %v1781 = vmax.f32 %v1153, %v1749
        %v1782 = vmax.f32 %v1154, %v1750
        %v1783 = vmax.f32 %v1751, 0.0
        %v1784 = vmax.f32 %v1752, 0.0
        %v1785 = vmax.f32 %v1753, 0.0
        %v1786 = vmax.f32 %v1754, 0.0
        %v1787 = vmax.f32 %v1755, 0.0
        %v1788 = vmax.f32 %v1756, 0.0
        %v1789 = vmax.f32 %v1757, 0.0
        %v1790 = vmax.f32 %v1758, 0.0
        %v1791 = vmax.f32 %v1759, 0.0
        %v1792 = vmax.f32 %v1760, 0.0
        %v1793 = vmax.f32 %v1761, 0.0
        %v1794 = vmax.f32 %v1762, 0.0
        %v1795 = vmax.f32 %v1763, 0.0
        %v1796 = vmax.f32 %v1764, 0.0
        %v1797 = vmax.f32 %v1765, 0.0
        %v1798 = vmax.f32 %v1766, 0.0
        %v1799 = vmax.f32 %v1767, 0.0
        %v1800 = vmax.f32 %v1768, 0.0
        %v1801 = vmax.f32 %v1769, 0.0
        %v1802 = vmax.f32 %v1770, 0.0
        %v1803 = vmax.f32 %v1771, 0.0
        %v1804 = vmax.f32 %v1772, 0.0
        %v1805 = vmax.f32 %v1773, 0.0
        %v1806 = vmax.f32 %v1774, 0.0
        %v1807 = vmax.f32 %v1775, 0.0
        %v1808 = vmax.f32 %v1776, 0.0
        %v1809 = vmax.f32 %v1777, 0.0
        %v1810 = vmax.f32 %v1778, 0.0
        %v1811 = vmax.f32 %v1779, 0.0
        %v1812 = vmax.f32 %v1780, 0.0
        %v1813 = vmax.f32 %v1781, 0.0
        %v1814 = vmax.f32 %v1782, 0.0
        %1815 = vst [vmem:[%s477] sm:$0xff] %v1783
        %1816 = vst [vmem:[%s477 + $0x8] sm:$0xff] %v1784
        %1817 = vst [vmem:[%s477 + $0x10] sm:$0xff] %v1785
        %1818 = vst [vmem:[%s477 + $0x18] sm:$0xff] %v1786
        %1819 = vst [vmem:[%s477 + $0x20] sm:$0xff] %v1787
        %1820 = vst [vmem:[%s477 + $0x28] sm:$0xff] %v1788
        %1821 = vst [vmem:[%s477 + $0x30] sm:$0xff] %v1789
        %1822 = vst [vmem:[%s477 + $0x38] sm:$0xff] %v1790
        %1823 = vst [vmem:[%s477 + $0x40] sm:$0xff] %v1791
        %1824 = vst [vmem:[%s477 + $0x48] sm:$0xff] %v1792
        %1825 = vst [vmem:[%s477 + $0x50] sm:$0xff] %v1793
        %1826 = vst [vmem:[%s477 + $0x58] sm:$0xff] %v1794
        %1827 = vst [vmem:[%s477 + $0x60] sm:$0xff] %v1795
        %1828 = vst [vmem:[%s477 + $0x68] sm:$0xff] %v1796
        %1829 = vst [vmem:[%s477 + $0x70] sm:$0xff] %v1797
        %1830 = vst [vmem:[%s477 + $0x78] sm:$0xff] %v1798
        %1831 = vst [vmem:[%s477 + $0x80] sm:$0xff] %v1799
        %1832 = vst [vmem:[%s477 + $0x88] sm:$0xff] %v1800
        %1833 = vst [vmem:[%s477 + $0x90] sm:$0xff] %v1801
        %1834 = vst [vmem:[%s477 + $0x98] sm:$0xff] %v1802
        %1835 = vst [vmem:[%s477 + $0xa0] sm:$0xff] %v1803
        %1836 = vst [vmem:[%s477 + $0xa8] sm:$0xff] %v1804
        %1837 = vst [vmem:[%s477 + $0xb0] sm:$0xff] %v1805
        %1838 = vst [vmem:[%s477 + $0xb8] sm:$0xff] %v1806
        %1839 = vst [vmem:[%s477 + $0xc0] sm:$0xff] %v1807
        %1840 = vst [vmem:[%s477 + $0xc8] sm:$0xff] %v1808
        %1841 = vst [vmem:[%s477 + $0xd0] sm:$0xff] %v1809
        %1842 = vst [vmem:[%s477 + $0xd8] sm:$0xff] %v1810
        %1843 = vst [vmem:[%s477 + $0xe0] sm:$0xff] %v1811
        %1844 = vst [vmem:[%s477 + $0xe8] sm:$0xff] %v1812
        %1845 = vst [vmem:[%s477 + $0xf0] sm:$0xff] %v1813
        %1846 = vst [vmem:[%s477 + $0xf8] sm:$0xff] %v1814
        %s1847 = sand.u32 %s112, 1
        %s1848 = sand.u32 %s112, 1
        %s1849 = smul.addr %s1848, 256
        %s1850 = scalar_lea.vmem [#allocation3], %s1849
        // Predicated region
        $region99: #{_lambda_.3} parent=93 // pred_check
          %p1851 = pneg %p122
        $region100: #{_lambda_.3} parent=93 // pred_check_branch
          %1853 = sbr.rel (%p1851) target = $region102
        $region101: #{_lambda_.3} parent=93 // pred_region
          %s1854 = smul.u32 32, %s15
          %s1855 = ssub.s32 49, %s1854
          %p1856 = scmp.lt.s32.totalorder %s1855, 32
          %s1857 = scalar_select %p1856, %s1855, 32
          %s1858 = smul.u32 8, %s1857
          %p1859 = scmp.ne.s32.totalorder 0, %s1858
          %s1860 = smul.addr %s1854, 8
          %s1861 = scalar_lea.vmem %s4, %s1860
          // Predicated region
          $region103: #{_lambda_.3} parent=101 // pred_check
            %p1862 = pneg %p1859
          $region104: #{_lambda_.3} parent=101 // pred_check_branch
            %1864 = sbr.rel (%p1862) target = $region106
          $region105: #{_lambda_.3} parent=101 // pred_region
            // Predicated region
            $region107: #{_lambda_.3} parent=105 // pred_check
              _
            $region108: #{_lambda_.3} parent=105 // pred_check_branch
              %1866 = sbr.rel (0) target = $region110
            $region109: #{_lambda_.3} parent=105 // pred_region
              // Predicated region
              $region129: #{_lambda_.3} parent=109 // pred_check
                _
              $region130: #{_lambda_.3} parent=109 // pred_check_branch
                %1978 = sbr.rel (0) target = $region132
              $region131: #{_lambda_.3} parent=109 // pred_region
                %s1979 = sshrl.u32 %s1857, 5
                // While loop
                $region133: #{_lambda_.3} parent=131 // loop_pre_header
                  _
                $region134: #{_lambda_.3} parent=131 // loop_header
                  %s1981 = sphi 0, %s1983
                  %p1982 = scmp.ge.s32.totalorder %s1981, %s1979
                  %s1986 = sphi 0, %s2055
                  %s1987 = sphi %s1850, %s2058
                  %s1988 = sphi %s1861, %s2059
                $region135: #{_lambda_.3} parent=131 // loop_header_branch
                  %1985 = sbr.rel (%p1982) target = $region139
                $region136: #{_lambda_.3} parent=131 // loop_body
                  %v1989 = vld [vmem:[%s1987] sm:$0xff]
                  %1990 = vst [vmem:[%s1988] sm:$0xff] %v1989
                  %v1991 = vld [vmem:[%s1987 + $0x8] sm:$0xff]
                  %1992 = vst [vmem:[%s1988 + $0x8] sm:$0xff] %v1991
                  %v1993 = vld [vmem:[%s1987 + $0x10] sm:$0xff]
                  %1994 = vst [vmem:[%s1988 + $0x10] sm:$0xff] %v1993
                  %v1995 = vld [vmem:[%s1987 + $0x18] sm:$0xff]
                  %1996 = vst [vmem:[%s1988 + $0x18] sm:$0xff] %v1995
                  %v1997 = vld [vmem:[%s1987 + $0x20] sm:$0xff]
                  %1998 = vst [vmem:[%s1988 + $0x20] sm:$0xff] %v1997
                  %v1999 = vld [vmem:[%s1987 + $0x28] sm:$0xff]
                  %2000 = vst [vmem:[%s1988 + $0x28] sm:$0xff] %v1999
                  %v2001 = vld [vmem:[%s1987 + $0x30] sm:$0xff]
                  %2002 = vst [vmem:[%s1988 + $0x30] sm:$0xff] %v2001
                  %v2003 = vld [vmem:[%s1987 + $0x38] sm:$0xff]
                  %2004 = vst [vmem:[%s1988 + $0x38] sm:$0xff] %v2003
                  %v2005 = vld [vmem:[%s1987 + $0x40] sm:$0xff]
                  %2006 = vst [vmem:[%s1988 + $0x40] sm:$0xff] %v2005
                  %v2007 = vld [vmem:[%s1987 + $0x48] sm:$0xff]
                  %2008 = vst [vmem:[%s1988 + $0x48] sm:$0xff] %v2007
                  %v2009 = vld [vmem:[%s1987 + $0x50] sm:$0xff]
                  %2010 = vst [vmem:[%s1988 + $0x50] sm:$0xff] %v2009
                  %v2011 = vld [vmem:[%s1987 + $0x58] sm:$0xff]
                  %2012 = vst [vmem:[%s1988 + $0x58] sm:$0xff] %v2011
                  %v2013 = vld [vmem:[%s1987 + $0x60] sm:$0xff]
                  %2014 = vst [vmem:[%s1988 + $0x60] sm:$0xff] %v2013
                  %v2015 = vld [vmem:[%s1987 + $0x68] sm:$0xff]
                  %2016 = vst [vmem:[%s1988 + $0x68] sm:$0xff] %v2015
                  %v2017 = vld [vmem:[%s1987 + $0x70] sm:$0xff]
                  %2018 = vst [vmem:[%s1988 + $0x70] sm:$0xff] %v2017
                  %v2019 = vld [vmem:[%s1987 + $0x78] sm:$0xff]
                  %2020 = vst [vmem:[%s1988 + $0x78] sm:$0xff] %v2019
                  %v2021 = vld [vmem:[%s1987 + $0x80] sm:$0xff]
                  %2022 = vst [vmem:[%s1988 + $0x80] sm:$0xff] %v2021
                  %v2023 = vld [vmem:[%s1987 + $0x88] sm:$0xff]
                  %2024 = vst [vmem:[%s1988 + $0x88] sm:$0xff] %v2023
                  %v2025 = vld [vmem:[%s1987 + $0x90] sm:$0xff]
                  %2026 = vst [vmem:[%s1988 + $0x90] sm:$0xff] %v2025
                  %v2027 = vld [vmem:[%s1987 + $0x98] sm:$0xff]
                  %2028 = vst [vmem:[%s1988 + $0x98] sm:$0xff] %v2027
                  %v2029 = vld [vmem:[%s1987 + $0xa0] sm:$0xff]
                  %2030 = vst [vmem:[%s1988 + $0xa0] sm:$0xff] %v2029
                  %v2031 = vld [vmem:[%s1987 + $0xa8] sm:$0xff]
                  %2032 = vst [vmem:[%s1988 + $0xa8] sm:$0xff] %v2031
                  %v2033 = vld [vmem:[%s1987 + $0xb0] sm:$0xff]
                  %2034 = vst [vmem:[%s1988 + $0xb0] sm:$0xff] %v2033
                  %v2035 = vld [vmem:[%s1987 + $0xb8] sm:$0xff]
                  %2036 = vst [vmem:[%s1988 + $0xb8] sm:$0xff] %v2035
                  %v2037 = vld [vmem:[%s1987 + $0xc0] sm:$0xff]
                  %2038 = vst [vmem:[%s1988 + $0xc0] sm:$0xff] %v2037
                  %v2039 = vld [vmem:[%s1987 + $0xc8] sm:$0xff]
                  %2040 = vst [vmem:[%s1988 + $0xc8] sm:$0xff] %v2039
                  %v2041 = vld [vmem:[%s1987 + $0xd0] sm:$0xff]
                  %2042 = vst [vmem:[%s1988 + $0xd0] sm:$0xff] %v2041
                  %v2043 = vld [vmem:[%s1987 + $0xd8] sm:$0xff]
                  %2044 = vst [vmem:[%s1988 + $0xd8] sm:$0xff] %v2043
                  %v2045 = vld [vmem:[%s1987 + $0xe0] sm:$0xff]
                  %2046 = vst [vmem:[%s1988 + $0xe0] sm:$0xff] %v2045
                  %v2047 = vld [vmem:[%s1987 + $0xe8] sm:$0xff]
                  %2048 = vst [vmem:[%s1988 + $0xe8] sm:$0xff] %v2047
                  %v2049 = vld [vmem:[%s1987 + $0xf0] sm:$0xff]
                  %2050 = vst [vmem:[%s1988 + $0xf0] sm:$0xff] %v2049
                  %v2051 = vld [vmem:[%s1987 + $0xf8] sm:$0xff]
                  %2052 = vst [vmem:[%s1988 + $0xf8] sm:$0xff] %v2051
                  %s2053 = sadd.s32 1, %s1986
                  %p2054 = scmp.ge.s32.totalorder %s2053, %s1979
                  %s2055 = scalar_select %p2054, 0, %s2053
                  %s2056 = smul.u32 %s2055, 256
                  %s2057 = smul.u32 %s2055, 256
                  %s2058 = scalar_lea.vmem %s1850, %s2056 [#allocation3]
                  %s2059 = scalar_lea.vmem %s1861, %s2057
                $region137: #{_lambda_.3} parent=131 // loop_footer
                  %s1983 = sadd.s32 %s1981, 1
                $region138: #{_lambda_.3} parent=131 // loop_footer_branch
                  %1980 = sbr.rel target = $region134
                $region139: #{_lambda_.3} parent=131 // loop_exit
                  _
                %s2060 = sshrl.u32 %s1857, 5
                %s2061 = sand.u32 %s1857, 31
                %s2062 = smul.u32 %s2060, 32
                %s2063 = smul.u32 8, %s2062
                %s2064 = scalar_lea.vmem %s1850, %s2063 [#allocation3]
                %s2065 = smul.u32 8, %s2062
                %s2066 = scalar_lea.vmem %s1861, %s2065
                // While loop
                $region140: #{_lambda_.3} parent=131 // loop_pre_header
                  _
                $region141: #{_lambda_.3} parent=131 // loop_header
                  %s2068 = sphi 0, %s2070
                  %p2069 = scmp.ge.s32.totalorder %s2068, %s2061
                  %s2073 = sphi 0, %s2080
                  %s2074 = sphi %s2064, %s2083
                  %s2075 = sphi %s2066, %s2084
                $region142: #{_lambda_.3} parent=131 // loop_header_branch
                  %2072 = sbr.rel (%p2069) target = $region146
                $region143: #{_lambda_.3} parent=131 // loop_body
                  %v2076 = vld [vmem:[%s2074] sm:$0xff]
                  %2077 = vst [vmem:[%s2075] sm:$0xff] %v2076
                  %s2078 = sadd.s32 1, %s2073
                  %p2079 = scmp.ge.s32.totalorder %s2078, %s2061
                  %s2080 = scalar_select %p2079, 0, %s2078
                  %s2081 = smul.u32 %s2080, 8
                  %s2082 = smul.u32 %s2080, 8
                  %s2083 = scalar_lea.vmem %s2064, %s2081 [#allocation3]
                  %s2084 = scalar_lea.vmem %s2066, %s2082
                $region144: #{_lambda_.3} parent=131 // loop_footer
                  %s2070 = sadd.s32 %s2068, 1
                $region145: #{_lambda_.3} parent=131 // loop_footer_branch
                  %2067 = sbr.rel target = $region141
                $region146: #{_lambda_.3} parent=131 // loop_exit
                  _
              $region132: #{_lambda_.3} parent=109 // pred_fallthru
                _
              // Predicated region
              $region147: #{_lambda_.3} parent=109 // pred_check
                _
              $region148: #{_lambda_.3} parent=109 // pred_check_branch
                %2086 = sbr.rel target = $region150
              $region149: #{_lambda_.3} parent=109 // pred_region
                _
              $region150: #{_lambda_.3} parent=109 // pred_fallthru
                _
            $region110: #{_lambda_.3} parent=105 // pred_fallthru
              _
            // Predicated region
            $region111: #{_lambda_.3} parent=105 // pred_check
              _
            $region112: #{_lambda_.3} parent=105 // pred_check_branch
              %1868 = sbr.rel target = $region114
            $region113: #{_lambda_.3} parent=105 // pred_region
              %s1870 = ssub.s32 256, 1
              %s1871 = sshrl.u32 %s1857, 5
              // While loop
              $region115: #{_lambda_.3} parent=113 // loop_pre_header
                _
              $region116: #{_lambda_.3} parent=113 // loop_header
                %s1873 = sphi 0, %s1875
                %p1874 = scmp.ge.s32.totalorder %s1873, %s1871
                %s1878 = sphi 0, %s1947
                %s1879 = sphi %s1850, %s1950
                %s1880 = sphi %s1861, %s1951
              $region117: #{_lambda_.3} parent=113 // loop_header_branch
                %1877 = sbr.rel (%p1874) target = $region121
              $region118: #{_lambda_.3} parent=113 // loop_body
                %v1881 = vld [vmem:[%s1879] sm:%s1870]
                %1882 = vst [vmem:[%s1880] sm:%s1870] %v1881
                %v1883 = vld [vmem:[%s1879 + $0x8] sm:%s1870]
                %1884 = vst [vmem:[%s1880 + $0x8] sm:%s1870] %v1883
                %v1885 = vld [vmem:[%s1879 + $0x10] sm:%s1870]
                %1886 = vst [vmem:[%s1880 + $0x10] sm:%s1870] %v1885
                %v1887 = vld [vmem:[%s1879 + $0x18] sm:%s1870]
                %1888 = vst [vmem:[%s1880 + $0x18] sm:%s1870] %v1887
                %v1889 = vld [vmem:[%s1879 + $0x20] sm:%s1870]
                %1890 = vst [vmem:[%s1880 + $0x20] sm:%s1870] %v1889
                %v1891 = vld [vmem:[%s1879 + $0x28] sm:%s1870]
                %1892 = vst [vmem:[%s1880 + $0x28] sm:%s1870] %v1891
                %v1893 = vld [vmem:[%s1879 + $0x30] sm:%s1870]
                %1894 = vst [vmem:[%s1880 + $0x30] sm:%s1870] %v1893
                %v1895 = vld [vmem:[%s1879 + $0x38] sm:%s1870]
                %1896 = vst [vmem:[%s1880 + $0x38] sm:%s1870] %v1895
                %v1897 = vld [vmem:[%s1879 + $0x40] sm:%s1870]
                %1898 = vst [vmem:[%s1880 + $0x40] sm:%s1870] %v1897
                %v1899 = vld [vmem:[%s1879 + $0x48] sm:%s1870]
                %1900 = vst [vmem:[%s1880 + $0x48] sm:%s1870] %v1899
                %v1901 = vld [vmem:[%s1879 + $0x50] sm:%s1870]
                %1902 = vst [vmem:[%s1880 + $0x50] sm:%s1870] %v1901
                %v1903 = vld [vmem:[%s1879 + $0x58] sm:%s1870]
                %1904 = vst [vmem:[%s1880 + $0x58] sm:%s1870] %v1903
                %v1905 = vld [vmem:[%s1879 + $0x60] sm:%s1870]
                %1906 = vst [vmem:[%s1880 + $0x60] sm:%s1870] %v1905
                %v1907 = vld [vmem:[%s1879 + $0x68] sm:%s1870]
                %1908 = vst [vmem:[%s1880 + $0x68] sm:%s1870] %v1907
                %v1909 = vld [vmem:[%s1879 + $0x70] sm:%s1870]
                %1910 = vst [vmem:[%s1880 + $0x70] sm:%s1870] %v1909
                %v1911 = vld [vmem:[%s1879 + $0x78] sm:%s1870]
                %1912 = vst [vmem:[%s1880 + $0x78] sm:%s1870] %v1911
                %v1913 = vld [vmem:[%s1879 + $0x80] sm:%s1870]
                %1914 = vst [vmem:[%s1880 + $0x80] sm:%s1870] %v1913
                %v1915 = vld [vmem:[%s1879 + $0x88] sm:%s1870]
                %1916 = vst [vmem:[%s1880 + $0x88] sm:%s1870] %v1915
                %v1917 = vld [vmem:[%s1879 + $0x90] sm:%s1870]
                %1918 = vst [vmem:[%s1880 + $0x90] sm:%s1870] %v1917
                %v1919 = vld [vmem:[%s1879 + $0x98] sm:%s1870]
                %1920 = vst [vmem:[%s1880 + $0x98] sm:%s1870] %v1919
                %v1921 = vld [vmem:[%s1879 + $0xa0] sm:%s1870]
                %1922 = vst [vmem:[%s1880 + $0xa0] sm:%s1870] %v1921
                %v1923 = vld [vmem:[%s1879 + $0xa8] sm:%s1870]
                %1924 = vst [vmem:[%s1880 + $0xa8] sm:%s1870] %v1923
                %v1925 = vld [vmem:[%s1879 + $0xb0] sm:%s1870]
                %1926 = vst [vmem:[%s1880 + $0xb0] sm:%s1870] %v1925
                %v1927 = vld [vmem:[%s1879 + $0xb8] sm:%s1870]
                %1928 = vst [vmem:[%s1880 + $0xb8] sm:%s1870] %v1927
                %v1929 = vld [vmem:[%s1879 + $0xc0] sm:%s1870]
                %1930 = vst [vmem:[%s1880 + $0xc0] sm:%s1870] %v1929
                %v1931 = vld [vmem:[%s1879 + $0xc8] sm:%s1870]
                %1932 = vst [vmem:[%s1880 + $0xc8] sm:%s1870] %v1931
                %v1933 = vld [vmem:[%s1879 + $0xd0] sm:%s1870]
                %1934 = vst [vmem:[%s1880 + $0xd0] sm:%s1870] %v1933
                %v1935 = vld [vmem:[%s1879 + $0xd8] sm:%s1870]
                %1936 = vst [vmem:[%s1880 + $0xd8] sm:%s1870] %v1935
                %v1937 = vld [vmem:[%s1879 + $0xe0] sm:%s1870]
                %1938 = vst [vmem:[%s1880 + $0xe0] sm:%s1870] %v1937
                %v1939 = vld [vmem:[%s1879 + $0xe8] sm:%s1870]
                %1940 = vst [vmem:[%s1880 + $0xe8] sm:%s1870] %v1939
                %v1941 = vld [vmem:[%s1879 + $0xf0] sm:%s1870]
                %1942 = vst [vmem:[%s1880 + $0xf0] sm:%s1870] %v1941
                %v1943 = vld [vmem:[%s1879 + $0xf8] sm:%s1870]
                %1944 = vst [vmem:[%s1880 + $0xf8] sm:%s1870] %v1943
                %s1945 = sadd.s32 1, %s1878
                %p1946 = scmp.ge.s32.totalorder %s1945, %s1871
                %s1947 = scalar_select %p1946, 0, %s1945
                %s1948 = smul.u32 %s1947, 256
                %s1949 = smul.u32 %s1947, 256
                %s1950 = scalar_lea.vmem %s1850, %s1948 [#allocation3]
                %s1951 = scalar_lea.vmem %s1861, %s1949
              $region119: #{_lambda_.3} parent=113 // loop_footer
                %s1875 = sadd.s32 %s1873, 1
              $region120: #{_lambda_.3} parent=113 // loop_footer_branch
                %1872 = sbr.rel target = $region116
              $region121: #{_lambda_.3} parent=113 // loop_exit
                _
              %s1952 = sshrl.u32 %s1857, 5
              %s1953 = sand.u32 %s1857, 31
              %s1954 = smul.u32 %s1952, 32
              %s1955 = smul.u32 8, %s1954
              %s1956 = scalar_lea.vmem %s1850, %s1955 [#allocation3]
              %s1957 = smul.u32 8, %s1954
              %s1958 = scalar_lea.vmem %s1861, %s1957
              // While loop
              $region122: #{_lambda_.3} parent=113 // loop_pre_header
                _
              $region123: #{_lambda_.3} parent=113 // loop_header
                %s1960 = sphi 0, %s1962
                %p1961 = scmp.ge.s32.totalorder %s1960, %s1953
                %s1965 = sphi 0, %s1972
                %s1966 = sphi %s1956, %s1975
                %s1967 = sphi %s1958, %s1976
              $region124: #{_lambda_.3} parent=113 // loop_header_branch
                %1964 = sbr.rel (%p1961) target = $region128
              $region125: #{_lambda_.3} parent=113 // loop_body
                %v1968 = vld [vmem:[%s1966] sm:%s1870]
                %1969 = vst [vmem:[%s1967] sm:%s1870] %v1968
                %s1970 = sadd.s32 1, %s1965
                %p1971 = scmp.ge.s32.totalorder %s1970, %s1953
                %s1972 = scalar_select %p1971, 0, %s1970
                %s1973 = smul.u32 %s1972, 8
                %s1974 = smul.u32 %s1972, 8
                %s1975 = scalar_lea.vmem %s1956, %s1973 [#allocation3]
                %s1976 = scalar_lea.vmem %s1958, %s1974
              $region126: #{_lambda_.3} parent=113 // loop_footer
                %s1962 = sadd.s32 %s1960, 1
              $region127: #{_lambda_.3} parent=113 // loop_footer_branch
                %1959 = sbr.rel target = $region123
              $region128: #{_lambda_.3} parent=113 // loop_exit
                _
            $region114: #{_lambda_.3} parent=105 // pred_fallthru
              _
          $region106: #{_lambda_.3} parent=101 // pred_fallthru
            _
          %2087 = vnop
        $region102: #{_lambda_.3} parent=93 // pred_fallthru
          _
      $region94: #{_lambda_.3} parent=5 // pred_fallthru
        _
      %p2088 = scmp.le.s32.totalorder 2, %s10
      // Predicated region
      $region151: #{_lambda_.3} parent=5 // pred_check
        %p2089 = pneg %p2088
      $region152: #{_lambda_.3} parent=5 // pred_check_branch
        %2091 = sbr.rel (%p2089) target = $region154
      $region153: #{_lambda_.3} parent=5 // pred_region
        %s2092 = ssub.s32 %s10, 2
        // Predicated region
        $region155: #{_lambda_.3} parent=153 // pred_check
          %p2093 = pneg %p128
        $region156: #{_lambda_.3} parent=153 // pred_check_branch
          %2095 = sbr.rel (%p2093) target = $region158
        $region157: #{_lambda_.3} parent=153 // pred_region
          %s2096 = sand.u32 %s113, 1
          %s2097 = sand.u32 %s113, 1
          %s2098 = smul.addr %s2097, 256
          %s2099 = scalar_lea.vmem [#allocation3], %s2098
        $region158: #{_lambda_.3} parent=153 // pred_fallthru
          _
      $region154: #{_lambda_.3} parent=5 // pred_fallthru
        _
    $region6: #{_lambda_.3} parent=1 // loop_footer
      %s14 = sadd.s32 1, %s10
    $region7: #{_lambda_.3} parent=1 // loop_footer_branch
      %9 = sbr.rel target = $region3
    $region8: #{_lambda_.3} parent=1 // loop_exit
      _

// kernel: _lambda_.4
$region0: #{_lambda_.4}
  #allocation0 [shape = 'u32[]', space=smem, size = 0x4, offset = 0x4, fixed_abs, tag = 'smem constant byte address 0x4 - core index']
  #allocation1 [shape = 'u32[72,128]{1,0:T(1,128)}', space=vmem, size = 0x9000, scoped, tag = 'internal scratch']
  %s0 = inlined_call_operand.vmem [shape: bf16[4,50,256], index: 0, kind: input, shape index: {}]
  %s1 = inlined_call_operand.vmem [shape: bf16[256,128], index: 1, kind: input, shape index: {}]
  %s2 = inlined_call_operand.vmem [shape: f32[1,128], index: 2, kind: input, shape index: {}]
  %s3 = inlined_call_operand.vmem [shape: f32[1,128], index: 3, kind: input, shape index: {}]
  %s4 = inlined_call_operand.vmem [shape: f32[50,128], index: 4, kind: output, shape index: {}]
  %s5 = sld [smem:[#allocation0]]
  $region26: #{_lambda_.4} parent=0
    _
  %s7 = ssub.s32 1, %s5
  %s8 = scalar_select 0, %s7, %s5
  // Predicated region
  $region2: #{_lambda_.4} parent=0 // pred_check
    _
  $region3: #{_lambda_.4} parent=0 // pred_check_branch
    %10 = sbr.rel (0) target = $region5
  $region4: #{_lambda_.4} parent=0 // pred_region
    _
  $region5: #{_lambda_.4} parent=0 // pred_fallthru
    _
  // Predicated region
  $region6: #{_lambda_.4} parent=0 // pred_check
    _
  $region7: #{_lambda_.4} parent=0 // pred_check_branch
    %12 = sbr.rel (0) target = $region9
  $region8: #{_lambda_.4} parent=0 // pred_region
    _
  $region9: #{_lambda_.4} parent=0 // pred_fallthru
    _
  // Predicated region
  $region10: #{_lambda_.4} parent=0 // pred_check
    _
  $region11: #{_lambda_.4} parent=0 // pred_check_branch
    %14 = sbr.rel (0) target = $region13
  $region12: #{_lambda_.4} parent=0 // pred_region
    _
  $region13: #{_lambda_.4} parent=0 // pred_fallthru
    _
  // Predicated region
  $region14: #{_lambda_.4} parent=0 // pred_check
    _
  $region15: #{_lambda_.4} parent=0 // pred_check_branch
    %16 = sbr.rel (0) target = $region17
  $region16: #{_lambda_.4} parent=0 // pred_region
    _
  $region17: #{_lambda_.4} parent=0 // pred_fallthru
    _
  %v17 = vld [vmem:[%s1] sm:$0xf]
  %v18 = vld [vmem:[%s1 + $0x4] sm:$0xf]
  %v19 = vld [vmem:[%s1 + $0x8] sm:$0xf]
  %v20 = vld [vmem:[%s1 + $0xc] sm:$0xf]
  %v21 = vld [vmem:[%s1 + $0x10] sm:$0xf]
  %v22 = vld [vmem:[%s1 + $0x14] sm:$0xf]
  %v23 = vld [vmem:[%s1 + $0x18] sm:$0xf]
  %v24 = vld [vmem:[%s1 + $0x1c] sm:$0xf]
  %v25 = vld [vmem:[%s1 + $0x20] sm:$0xf]
  %v26 = vld [vmem:[%s1 + $0x24] sm:$0xf]
  %v27 = vld [vmem:[%s1 + $0x28] sm:$0xf]
  %v28 = vld [vmem:[%s1 + $0x2c] sm:$0xf]
  %v29 = vld [vmem:[%s1 + $0x30] sm:$0xf]
  %v30 = vld [vmem:[%s1 + $0x34] sm:$0xf]
  %v31 = vld [vmem:[%s1 + $0x38] sm:$0xf]
  %v32 = vld [vmem:[%s1 + $0x3c] sm:$0xf]
  %v33 = vld [vmem:[%s1 + $0x40] sm:$0xf]
  %v34 = vld [vmem:[%s1 + $0x44] sm:$0xf]
  %v35 = vld [vmem:[%s1 + $0x48] sm:$0xf]
  %v36 = vld [vmem:[%s1 + $0x4c] sm:$0xf]
  %v37 = vld [vmem:[%s1 + $0x50] sm:$0xf]
  %v38 = vld [vmem:[%s1 + $0x54] sm:$0xf]
  %v39 = vld [vmem:[%s1 + $0x58] sm:$0xf]
  %v40 = vld [vmem:[%s1 + $0x5c] sm:$0xf]
  %v41 = vld [vmem:[%s1 + $0x60] sm:$0xf]
  %v42 = vld [vmem:[%s1 + $0x64] sm:$0xf]
  %v43 = vld [vmem:[%s1 + $0x68] sm:$0xf]
  %v44 = vld [vmem:[%s1 + $0x6c] sm:$0xf]
  %v45 = vld [vmem:[%s1 + $0x70] sm:$0xf]
  %v46 = vld [vmem:[%s1 + $0x74] sm:$0xf]
  %v47 = vld [vmem:[%s1 + $0x78] sm:$0xf]
  %v48 = vld [vmem:[%s1 + $0x7c] sm:$0xf]
  %v49 = vld [vmem:[%s2] sm:$0x1]
  %v50 = vld [vmem:[%s3] sm:$0x1]
  %v51 = vld [vmem:[%s0] sm:$0xff]
  %v52 = vld [vmem:[%s0 + $0x8] sm:$0xff]
  %v53 = vld [vmem:[%s0 + $0x10] sm:$0xff]
  %v54 = vld [vmem:[%s0 + $0x18] sm:$0xff]
  %v55 = vld [vmem:[%s0 + $0x20] sm:$0xff]
  %v56 = vld [vmem:[%s0 + $0x28] sm:$0xff]
  %v57 = vld [vmem:[%s0 + $0x30] sm:$0x11]
  %v65 = vunpack.c.l.b16 %v51
  %v66 = vunpack.c.h.b16 %v51
  %v67 = vunpack.c.l.b16 %v52
  %v68 = vunpack.c.h.b16 %v52
  %v69 = vunpack.c.l.b16 %v53
  %v70 = vunpack.c.h.b16 %v53
  %v71 = vunpack.c.l.b16 %v54
  %v72 = vunpack.c.h.b16 %v54
  %v73 = vunpack.c.l.b16 %v55
  %v74 = vunpack.c.h.b16 %v55
  %v75 = vunpack.c.l.b16 %v56
  %v76 = vunpack.c.h.b16 %v56
  %v77 = vunpack.c.l.b16 %v57
  %v78 = vunpack.c.h.b16 %v57
  %v79 = vpack.c.b16 %v67, %v65
  %v80 = vpack.c.b16 %v68, %v66
  %v81 = vpack.c.b16 %v71, %v69
  %v82 = vpack.c.b16 %v72, %v70
  %v83 = vpack.c.b16 %v75, %v73
  %v84 = vpack.c.b16 %v76, %v74
  %v85 = vpack.c.b16 %v77, %v77
  %v86 = vpack.c.b16 %v78, %v78
  %v127 = vunpack.c.l.b16 %v17
  %v128 = vunpack.c.l.b16 %v18
  %v129 = vunpack.c.l.b16 %v19
  %v130 = vunpack.c.l.b16 %v20
  %v131 = vunpack.c.l.b16 %v21
  %v132 = vunpack.c.l.b16 %v22
  %v133 = vunpack.c.l.b16 %v23
  %v134 = vunpack.c.l.b16 %v24
  %v135 = vunpack.c.l.b16 %v25
  %v136 = vunpack.c.l.b16 %v26
  %v137 = vunpack.c.l.b16 %v27
  %v138 = vunpack.c.l.b16 %v28
  %v139 = vunpack.c.l.b16 %v29
  %v140 = vunpack.c.l.b16 %v30
  %v141 = vunpack.c.l.b16 %v31
  %v142 = vunpack.c.l.b16 %v32
  %v143 = vunpack.c.l.b16 %v33
  %v144 = vunpack.c.l.b16 %v34
  %v145 = vunpack.c.l.b16 %v35
  %v146 = vunpack.c.l.b16 %v36
  %v147 = vunpack.c.l.b16 %v37
  %v148 = vunpack.c.l.b16 %v38
  %v149 = vunpack.c.l.b16 %v39
  %v150 = vunpack.c.l.b16 %v40
  %v151 = vunpack.c.l.b16 %v41
  %v152 = vunpack.c.l.b16 %v42
  %v153 = vunpack.c.l.b16 %v43
  %v154 = vunpack.c.l.b16 %v44
  %v155 = vunpack.c.l.b16 %v45
  %v156 = vunpack.c.l.b16 %v46
  %v157 = vunpack.c.l.b16 %v47
  %v158 = vunpack.c.l.b16 %v48
  %v159 = vpack.c.b16 %v128, %v127
  %v160 = vpack.c.b16 %v130, %v129
  %v161 = vpack.c.b16 %v132, %v131
  %v162 = vpack.c.b16 %v134, %v133
  %v163 = vpack.c.b16 %v136, %v135
  %v164 = vpack.c.b16 %v138, %v137
  %v165 = vpack.c.b16 %v140, %v139
  %v166 = vpack.c.b16 %v142, %v141
  %v167 = vpack.c.b16 %v144, %v143
  %v168 = vpack.c.b16 %v146, %v145
  %v169 = vpack.c.b16 %v148, %v147
  %v170 = vpack.c.b16 %v150, %v149
  %v171 = vpack.c.b16 %v152, %v151
  %v172 = vpack.c.b16 %v154, %v153
  %v173 = vpack.c.b16 %v156, %v155
  %v174 = vpack.c.b16 %v158, %v157
  %191 = vmatpush.bf16.msra.mxu0 %v166
  %192 = vmatpush.bf16.msra.mxu0 %v165
  %193 = vmatpush.bf16.msra.mxu0 %v164
  %194 = vmatpush.bf16.msra.mxu0 %v163
  %195 = vmatpush.bf16.msra.mxu0 %v162
  %196 = vmatpush.bf16.msra.mxu0 %v161
  %197 = vmatpush.bf16.msra.mxu0 %v160
  %198 = vmatpush.bf16.msra.mxu0 %v159
  %199 = vmatmul.bf16.gmra.mxu0 %v79
  %v200 = vpop.f32.mrf.mxu0
  %v201 = vadd.f32 0.0, %v200
  %v202 = vpop.f32.mrf.mxu0
  %v203 = vadd.f32 0.0, %v202
  %204 = vmatmul.bf16.gmra.mxu0 %v81
  %v205 = vpop.f32.mrf.mxu0
  %v206 = vadd.f32 0.0, %v205
  %v207 = vpop.f32.mrf.mxu0
  %v208 = vadd.f32 0.0, %v207
  %209 = vmatmul.bf16.gmra.mxu0 %v83
  %v210 = vpop.f32.mrf.mxu0
  %v211 = vadd.f32 0.0, %v210
  %v212 = vpop.f32.mrf.mxu0
  %v213 = vadd.f32 0.0, %v212
  %214 = vmatmul.bf16.gmra.mxu0 %v85
  %v215 = vpop.f32.mrf.mxu0
  %v216 = vadd.f32 0.0, %v215
  %v217 = vpop.f32.mrf.mxu0
  %218 = vdwg.mxu0
  %219 = vmatpush.bf16.msra.mxu0 %v174
  %220 = vmatpush.bf16.msra.mxu0 %v173
  %221 = vmatpush.bf16.msra.mxu0 %v172
  %222 = vmatpush.bf16.msra.mxu0 %v171
  %223 = vmatpush.bf16.msra.mxu0 %v170
  %224 = vmatpush.bf16.msra.mxu0 %v169
  %225 = vmatpush.bf16.msra.mxu0 %v168
  %226 = vmatpush.bf16.msra.mxu0 %v167
  %227 = vmatmul.bf16.gmra.mxu0 %v80
  %v228 = vpop.f32.mrf.mxu0
  %v229 = vadd.f32 %v201, %v228
  %v230 = vpop.f32.mrf.mxu0
  %v231 = vadd.f32 %v203, %v230
  %232 = vmatmul.bf16.gmra.mxu0 %v82
  %v233 = vpop.f32.mrf.mxu0
  %v234 = vadd.f32 %v206, %v233
  %v235 = vpop.f32.mrf.mxu0
  %v236 = vadd.f32 %v208, %v235
  %237 = vmatmul.bf16.gmra.mxu0 %v84
  %v238 = vpop.f32.mrf.mxu0
  %v239 = vadd.f32 %v211, %v238
  %v240 = vpop.f32.mrf.mxu0
  %v241 = vadd.f32 %v213, %v240
  %242 = vmatmul.bf16.gmra.mxu0 %v86
  %v243 = vpop.f32.mrf.mxu0
  %v244 = vadd.f32 %v216, %v243
  %v245 = vpop.f32.mrf.mxu0
  %246 = vdwg.mxu0
  %v248 = vperm.slane %v49, 0
  %v250 = vmul.f32 %v229, %v248
  %v251 = vmul.f32 %v231, %v248
  %v252 = vmul.f32 %v234, %v248
  %v253 = vmul.f32 %v236, %v248
  %v254 = vmul.f32 %v239, %v248
  %v255 = vmul.f32 %v241, %v248
  %v256 = vmul.f32 %v244, %v248
  %v258 = vperm.slane %v50, 0
  %v260 = vadd.f32 %v250, %v258
  %v261 = vadd.f32 %v251, %v258
  %v262 = vadd.f32 %v252, %v258
  %v263 = vadd.f32 %v253, %v258
  %v264 = vadd.f32 %v254, %v258
  %v265 = vadd.f32 %v255, %v258
  %v266 = vadd.f32 %v256, %v258
  %s267 = scalar_lea.vmem %s0, 56
  %v268 = vld [vmem:[%s267] sm:$0xff]
  %v269 = vld [vmem:[%s267 + $0x8] sm:$0xff]
  %v270 = vld [vmem:[%s267 + $0x10] sm:$0xff]
  %v271 = vld [vmem:[%s267 + $0x18] sm:$0xff]
  %v272 = vld [vmem:[%s267 + $0x20] sm:$0xff]
  %v273 = vld [vmem:[%s267 + $0x28] sm:$0xff]
  %v274 = vld [vmem:[%s267 + $0x30] sm:$0x11]
  %v282 = vunpack.c.l.b16 %v268
  %v283 = vunpack.c.h.b16 %v268
  %v284 = vunpack.c.l.b16 %v269
  %v285 = vunpack.c.h.b16 %v269
  %v286 = vunpack.c.l.b16 %v270
  %v287 = vunpack.c.h.b16 %v270
  %v288 = vunpack.c.l.b16 %v271
  %v289 = vunpack.c.h.b16 %v271
  %v290 = vunpack.c.l.b16 %v272
  %v291 = vunpack.c.h.b16 %v272
  %v292 = vunpack.c.l.b16 %v273
  %v293 = vunpack.c.h.b16 %v273
  %v294 = vunpack.c.l.b16 %v274
  %v295 = vunpack.c.h.b16 %v274
  %v296 = vpack.c.b16 %v284, %v282
  %v297 = vpack.c.b16 %v285, %v283
  %v298 = vpack.c.b16 %v288, %v286
  %v299 = vpack.c.b16 %v289, %v287
  %v300 = vpack.c.b16 %v292, %v290
  %v301 = vpack.c.b16 %v293, %v291
  %v302 = vpack.c.b16 %v294, %v294
  %v303 = vpack.c.b16 %v295, %v295
  %312 = vmatpush.bf16.msra.mxu0 %v166
  %313 = vmatpush.bf16.msra.mxu0 %v165
  %314 = vmatpush.bf16.msra.mxu0 %v164
  %315 = vmatpush.bf16.msra.mxu0 %v163
  %316 = vmatpush.bf16.msra.mxu0 %v162
  %317 = vmatpush.bf16.msra.mxu0 %v161
  %318 = vmatpush.bf16.msra.mxu0 %v160
  %319 = vmatpush.bf16.msra.mxu0 %v159
  %320 = vmatmul.bf16.gmra.mxu0 %v296
  %v321 = vpop.f32.mrf.mxu0
  %v322 = vadd.f32 0.0, %v321
  %v323 = vpop.f32.mrf.mxu0
  %v324 = vadd.f32 0.0, %v323
  %325 = vmatmul.bf16.gmra.mxu0 %v298
  %v326 = vpop.f32.mrf.mxu0
  %v327 = vadd.f32 0.0, %v326
  %v328 = vpop.f32.mrf.mxu0
  %v329 = vadd.f32 0.0, %v328
  %330 = vmatmul.bf16.gmra.mxu0 %v300
  %v331 = vpop.f32.mrf.mxu0
  %v332 = vadd.f32 0.0, %v331
  %v333 = vpop.f32.mrf.mxu0
  %v334 = vadd.f32 0.0, %v333
  %335 = vmatmul.bf16.gmra.mxu0 %v302
  %v336 = vpop.f32.mrf.mxu0
  %v337 = vadd.f32 0.0, %v336
  %v338 = vpop.f32.mrf.mxu0
  %339 = vdwg.mxu0
  %340 = vmatpush.bf16.msra.mxu0 %v174
  %341 = vmatpush.bf16.msra.mxu0 %v173
  %342 = vmatpush.bf16.msra.mxu0 %v172
  %343 = vmatpush.bf16.msra.mxu0 %v171
  %344 = vmatpush.bf16.msra.mxu0 %v170
  %345 = vmatpush.bf16.msra.mxu0 %v169
  %346 = vmatpush.bf16.msra.mxu0 %v168
  %347 = vmatpush.bf16.msra.mxu0 %v167
  %348 = vmatmul.bf16.gmra.mxu0 %v297
  %v349 = vpop.f32.mrf.mxu0
  %v350 = vadd.f32 %v322, %v349
  %v351 = vpop.f32.mrf.mxu0
  %v352 = vadd.f32 %v324, %v351
  %353 = vmatmul.bf16.gmra.mxu0 %v299
  %v354 = vpop.f32.mrf.mxu0
  %v355 = vadd.f32 %v327, %v354
  %v356 = vpop.f32.mrf.mxu0
  %v357 = vadd.f32 %v329, %v356
  %358 = vmatmul.bf16.gmra.mxu0 %v301
  %v359 = vpop.f32.mrf.mxu0
  %v360 = vadd.f32 %v332, %v359
  %v361 = vpop.f32.mrf.mxu0
  %v362 = vadd.f32 %v334, %v361
  %363 = vmatmul.bf16.gmra.mxu0 %v303
  %v364 = vpop.f32.mrf.mxu0
  %v365 = vadd.f32 %v337, %v364
  %v366 = vpop.f32.mrf.mxu0
  %367 = vdwg.mxu0
  %v368 = vmul.f32 %v350, %v248
  %v369 = vmul.f32 %v352, %v248
  %v370 = vmul.f32 %v355, %v248
  %v371 = vmul.f32 %v357, %v248
  %v372 = vmul.f32 %v360, %v248
  %v373 = vmul.f32 %v362, %v248
  %v374 = vmul.f32 %v365, %v248
  %v375 = vadd.f32 %v368, %v258
  %v376 = vadd.f32 %v369, %v258
  %v377 = vadd.f32 %v370, %v258
  %v378 = vadd.f32 %v371, %v258
  %v379 = vadd.f32 %v372, %v258
  %v380 = vadd.f32 %v373, %v258
  %v381 = vadd.f32 %v374, %v258
  %v382 = vmax.f32 %v260, %v375
  %v383 = vmax.f32 %v261, %v376
  %v384 = vmax.f32 %v262, %v377
  %v385 = vmax.f32 %v263, %v378
  %v386 = vmax.f32 %v264, %v379
  %v387 = vmax.f32 %v265, %v380
  %v388 = vmax.f32 %v266, %v381
  %s389 = scalar_lea.vmem %s0, 112
  %v390 = vld [vmem:[%s389] sm:$0xff]
  %v391 = vld [vmem:[%s389 + $0x8] sm:$0xff]
  %v392 = vld [vmem:[%s389 + $0x10] sm:$0xff]
  %v393 = vld [vmem:[%s389 + $0x18] sm:$0xff]
  %v394 = vld [vmem:[%s389 + $0x20] sm:$0xff]
  %v395 = vld [vmem:[%s389 + $0x28] sm:$0xff]
  %v396 = vld [vmem:[%s389 + $0x30] sm:$0x11]
  %v404 = vunpack.c.l.b16 %v390
  %v405 = vunpack.c.h.b16 %v390
  %v406 = vunpack.c.l.b16 %v391
  %v407 = vunpack.c.h.b16 %v391
  %v408 = vunpack.c.l.b16 %v392
  %v409 = vunpack.c.h.b16 %v392
  %v410 = vunpack.c.l.b16 %v393
  %v411 = vunpack.c.h.b16 %v393
  %v412 = vunpack.c.l.b16 %v394
  %v413 = vunpack.c.h.b16 %v394
  %v414 = vunpack.c.l.b16 %v395
  %v415 = vunpack.c.h.b16 %v395
  %v416 = vunpack.c.l.b16 %v396
  %v417 = vunpack.c.h.b16 %v396
  %v418 = vpack.c.b16 %v406, %v404
  %v419 = vpack.c.b16 %v407, %v405
  %v420 = vpack.c.b16 %v410, %v408
  %v421 = vpack.c.b16 %v411, %v409
  %v422 = vpack.c.b16 %v414, %v412
  %v423 = vpack.c.b16 %v415, %v413
  %v424 = vpack.c.b16 %v416, %v416
  %v425 = vpack.c.b16 %v417, %v417
  %434 = vmatpush.bf16.msra.mxu0 %v166
  %435 = vmatpush.bf16.msra.mxu0 %v165
  %436 = vmatpush.bf16.msra.mxu0 %v164
  %437 = vmatpush.bf16.msra.mxu0 %v163
  %438 = vmatpush.bf16.msra.mxu0 %v162
  %439 = vmatpush.bf16.msra.mxu0 %v161
  %440 = vmatpush.bf16.msra.mxu0 %v160
  %441 = vmatpush.bf16.msra.mxu0 %v159
  %442 = vmatmul.bf16.gmra.mxu0 %v418
  %v443 = vpop.f32.mrf.mxu0
  %v444 = vadd.f32 0.0, %v443
  %v445 = vpop.f32.mrf.mxu0
  %v446 = vadd.f32 0.0, %v445
  %447 = vmatmul.bf16.gmra.mxu0 %v420
  %v448 = vpop.f32.mrf.mxu0
  %v449 = vadd.f32 0.0, %v448
  %v450 = vpop.f32.mrf.mxu0
  %v451 = vadd.f32 0.0, %v450
  %452 = vmatmul.bf16.gmra.mxu0 %v422
  %v453 = vpop.f32.mrf.mxu0
  %v454 = vadd.f32 0.0, %v453
  %v455 = vpop.f32.mrf.mxu0
  %v456 = vadd.f32 0.0, %v455
  %457 = vmatmul.bf16.gmra.mxu0 %v424
  %v458 = vpop.f32.mrf.mxu0
  %v459 = vadd.f32 0.0, %v458
  %v460 = vpop.f32.mrf.mxu0
  %461 = vdwg.mxu0
  %462 = vmatpush.bf16.msra.mxu0 %v174
  %463 = vmatpush.bf16.msra.mxu0 %v173
  %464 = vmatpush.bf16.msra.mxu0 %v172
  %465 = vmatpush.bf16.msra.mxu0 %v171
  %466 = vmatpush.bf16.msra.mxu0 %v170
  %467 = vmatpush.bf16.msra.mxu0 %v169
  %468 = vmatpush.bf16.msra.mxu0 %v168
  %469 = vmatpush.bf16.msra.mxu0 %v167
  %470 = vmatmul.bf16.gmra.mxu0 %v419
  %v471 = vpop.f32.mrf.mxu0
  %v472 = vadd.f32 %v444, %v471
  %v473 = vpop.f32.mrf.mxu0
  %v474 = vadd.f32 %v446, %v473
  %475 = vmatmul.bf16.gmra.mxu0 %v421
  %v476 = vpop.f32.mrf.mxu0
  %v477 = vadd.f32 %v449, %v476
  %v478 = vpop.f32.mrf.mxu0
  %v479 = vadd.f32 %v451, %v478
  %480 = vmatmul.bf16.gmra.mxu0 %v423
  %v481 = vpop.f32.mrf.mxu0
  %v482 = vadd.f32 %v454, %v481
  %v483 = vpop.f32.mrf.mxu0
  %v484 = vadd.f32 %v456, %v483
  %485 = vmatmul.bf16.gmra.mxu0 %v425
  %v486 = vpop.f32.mrf.mxu0
  %v487 = vadd.f32 %v459, %v486
  %v488 = vpop.f32.mrf.mxu0
  %489 = vdwg.mxu0
  %v490 = vmul.f32 %v472, %v248
  %v491 = vmul.f32 %v474, %v248
  %v492 = vmul.f32 %v477, %v248
  %v493 = vmul.f32 %v479, %v248
  %v494 = vmul.f32 %v482, %v248
  %v495 = vmul.f32 %v484, %v248
  %v496 = vmul.f32 %v487, %v248
  %v497 = vadd.f32 %v490, %v258
  %v498 = vadd.f32 %v491, %v258
  %v499 = vadd.f32 %v492, %v258
  %v500 = vadd.f32 %v493, %v258
  %v501 = vadd.f32 %v494, %v258
  %v502 = vadd.f32 %v495, %v258
  %v503 = vadd.f32 %v496, %v258
  %s504 = scalar_lea.vmem %s0, 168
  %v505 = vld [vmem:[%s504] sm:$0xff]
  %v506 = vld [vmem:[%s504 + $0x8] sm:$0xff]
  %v507 = vld [vmem:[%s504 + $0x10] sm:$0xff]
  %v508 = vld [vmem:[%s504 + $0x18] sm:$0xff]
  %v509 = vld [vmem:[%s504 + $0x20] sm:$0xff]
  %v510 = vld [vmem:[%s504 + $0x28] sm:$0xff]
  %v511 = vld [vmem:[%s504 + $0x30] sm:$0x11]
  %v519 = vunpack.c.l.b16 %v505
  %v520 = vunpack.c.h.b16 %v505
  %v521 = vunpack.c.l.b16 %v506
  %v522 = vunpack.c.h.b16 %v506
  %v523 = vunpack.c.l.b16 %v507
  %v524 = vunpack.c.h.b16 %v507
  %v525 = vunpack.c.l.b16 %v508
  %v526 = vunpack.c.h.b16 %v508
  %v527 = vunpack.c.l.b16 %v509
  %v528 = vunpack.c.h.b16 %v509
  %v529 = vunpack.c.l.b16 %v510
  %v530 = vunpack.c.h.b16 %v510
  %v531 = vunpack.c.l.b16 %v511
  %v532 = vunpack.c.h.b16 %v511
  %v533 = vpack.c.b16 %v521, %v519
  %v534 = vpack.c.b16 %v522, %v520
  %v535 = vpack.c.b16 %v525, %v523
  %v536 = vpack.c.b16 %v526, %v524
  %v537 = vpack.c.b16 %v529, %v527
  %v538 = vpack.c.b16 %v530, %v528
  %v539 = vpack.c.b16 %v531, %v531
  %v540 = vpack.c.b16 %v532, %v532
  %549 = vmatpush.bf16.msra.mxu0 %v166
  %550 = vmatpush.bf16.msra.mxu0 %v165
  %551 = vmatpush.bf16.msra.mxu0 %v164
  %552 = vmatpush.bf16.msra.mxu0 %v163
  %553 = vmatpush.bf16.msra.mxu0 %v162
  %554 = vmatpush.bf16.msra.mxu0 %v161
  %555 = vmatpush.bf16.msra.mxu0 %v160
  %556 = vmatpush.bf16.msra.mxu0 %v159
  %557 = vmatmul.bf16.gmra.mxu0 %v533
  %v558 = vpop.f32.mrf.mxu0
  %v559 = vadd.f32 0.0, %v558
  %v560 = vpop.f32.mrf.mxu0
  %v561 = vadd.f32 0.0, %v560
  %562 = vmatmul.bf16.gmra.mxu0 %v535
  %v563 = vpop.f32.mrf.mxu0
  %v564 = vadd.f32 0.0, %v563
  %v565 = vpop.f32.mrf.mxu0
  %v566 = vadd.f32 0.0, %v565
  %567 = vmatmul.bf16.gmra.mxu0 %v537
  %v568 = vpop.f32.mrf.mxu0
  %v569 = vadd.f32 0.0, %v568
  %v570 = vpop.f32.mrf.mxu0
  %v571 = vadd.f32 0.0, %v570
  %572 = vmatmul.bf16.gmra.mxu0 %v539
  %v573 = vpop.f32.mrf.mxu0
  %v574 = vadd.f32 0.0, %v573
  %v575 = vpop.f32.mrf.mxu0
  %576 = vdwg.mxu0
  %577 = vmatpush.bf16.msra.mxu0 %v174
  %578 = vmatpush.bf16.msra.mxu0 %v173
  %579 = vmatpush.bf16.msra.mxu0 %v172
  %580 = vmatpush.bf16.msra.mxu0 %v171
  %581 = vmatpush.bf16.msra.mxu0 %v170
  %582 = vmatpush.bf16.msra.mxu0 %v169
  %583 = vmatpush.bf16.msra.mxu0 %v168
  %584 = vmatpush.bf16.msra.mxu0 %v167
  %585 = vmatmul.bf16.gmra.mxu0 %v534
  %v586 = vpop.f32.mrf.mxu0
  %v587 = vadd.f32 %v559, %v586
  %v588 = vpop.f32.mrf.mxu0
  %v589 = vadd.f32 %v561, %v588
  %590 = vmatmul.bf16.gmra.mxu0 %v536
  %v591 = vpop.f32.mrf.mxu0
  %v592 = vadd.f32 %v564, %v591
  %v593 = vpop.f32.mrf.mxu0
  %v594 = vadd.f32 %v566, %v593
  %595 = vmatmul.bf16.gmra.mxu0 %v538
  %v596 = vpop.f32.mrf.mxu0
  %v597 = vadd.f32 %v569, %v596
  %v598 = vpop.f32.mrf.mxu0
  %v599 = vadd.f32 %v571, %v598
  %600 = vmatmul.bf16.gmra.mxu0 %v540
  %v601 = vpop.f32.mrf.mxu0
  %v602 = vadd.f32 %v574, %v601
  %v603 = vpop.f32.mrf.mxu0
  %604 = vdwg.mxu0
  %v605 = vmul.f32 %v587, %v248
  %v606 = vmul.f32 %v589, %v248
  %v607 = vmul.f32 %v592, %v248
  %v608 = vmul.f32 %v594, %v248
  %v609 = vmul.f32 %v597, %v248
  %v610 = vmul.f32 %v599, %v248
  %v611 = vmul.f32 %v602, %v248
  %v612 = vadd.f32 %v605, %v258
  %v613 = vadd.f32 %v606, %v258
  %v614 = vadd.f32 %v607, %v258
  %v615 = vadd.f32 %v608, %v258
  %v616 = vadd.f32 %v609, %v258
  %v617 = vadd.f32 %v610, %v258
  %v618 = vadd.f32 %v611, %v258
  %v619 = vmax.f32 %v497, %v612
  %v620 = vmax.f32 %v498, %v613
  %v621 = vmax.f32 %v499, %v614
  %v622 = vmax.f32 %v500, %v615
  %v623 = vmax.f32 %v501, %v616
  %v624 = vmax.f32 %v502, %v617
  %v625 = vmax.f32 %v503, %v618
  %v626 = vmax.f32 %v382, %v619
  %v627 = vmax.f32 %v383, %v620
  %v628 = vmax.f32 %v384, %v621
  %v629 = vmax.f32 %v385, %v622
  %v630 = vmax.f32 %v386, %v623
  %v631 = vmax.f32 %v387, %v624
  %v632 = vmax.f32 %v388, %v625
  %v633 = vmax.f32 %v626, 0.0
  %v634 = vmax.f32 %v627, 0.0
  %v635 = vmax.f32 %v628, 0.0
  %v636 = vmax.f32 %v629, 0.0
  %v637 = vmax.f32 %v630, 0.0
  %v638 = vmax.f32 %v631, 0.0
  %v639 = vmax.f32 %v632, 0.0
  %640 = vst [vmem:[%s4] sm:$0xff] %v633
  %641 = vst [vmem:[%s4 + $0x8] sm:$0xff] %v634
  %642 = vst [vmem:[%s4 + $0x10] sm:$0xff] %v635
  %643 = vst [vmem:[%s4 + $0x18] sm:$0xff] %v636
  %644 = vst [vmem:[%s4 + $0x20] sm:$0xff] %v637
  %645 = vst [vmem:[%s4 + $0x28] sm:$0xff] %v638
  %646 = vst [vmem:[%s4 + $0x30] sm:$0x3] %v639
  // Predicated region
  $region18: #{_lambda_.4} parent=0 // pred_check
    _
  $region19: #{_lambda_.4} parent=0 // pred_check_branch
    %648 = sbr.rel (0) target = $region21
  $region20: #{_lambda_.4} parent=0 // pred_region
    _
  $region21: #{_lambda_.4} parent=0 // pred_fallthru
    _
  // Predicated region
  $region22: #{_lambda_.4} parent=0 // pred_check
    _
  $region23: #{_lambda_.4} parent=0 // pred_check_branch
    %650 = sbr.rel (0) target = $region25
  $region24: #{_lambda_.4} parent=0 // pred_region
    _
  $region25: #{_lambda_.4} parent=0 // pred_fallthru
    _

// kernel: _lambda_.5
$region0: #{_lambda_.5}
  #allocation0 [shape = 'u32[]', space=smem, size = 0x4, offset = 0x4, fixed_abs, tag = 'smem constant byte address 0x4 - core index']
  #allocation1 [shape = 'u32[72,128]{1,0:T(1,128)}', space=vmem, size = 0x9000, scoped, tag = 'internal scratch']
  %s0 = inlined_call_operand.vmem [shape: bf16[2,3200], index: 0, kind: input, shape index: {}]
  %s1 = inlined_call_operand.vmem [shape: bf16[3200,128], index: 1, kind: input, shape index: {}]
  %s2 = inlined_call_operand.vmem [shape: f32[1,128], index: 2, kind: input, shape index: {}]
  %s3 = inlined_call_operand.vmem [shape: bf16[128,128], index: 3, kind: input, shape index: {}]
  %s4 = inlined_call_operand.vmem [shape: f32[1,128], index: 4, kind: input, shape index: {}]
  %s5 = inlined_call_operand.vmem [shape: bf16[128,128], index: 5, kind: input, shape index: {}]
  %s6 = inlined_call_operand.vmem [shape: f32[1,128], index: 6, kind: input, shape index: {}]
  %s7 = inlined_call_operand.hbm [shape: f32[2,128], index: 7, kind: output, shape index: {}]
  %s8 = sld [smem:[#allocation0]]
  $region38: #{_lambda_.5} parent=0
    _
  %s10 = ssub.s32 1, %s8
  %s11 = scalar_select 0, %s10, %s8
  $region1: #{_lambda_.5} parent=0
    #allocation2 [shape = 'u8[1024]{0}', space=vmem, size = 0x400, scoped, tag = 'output window, operand 0, single buffered']
    #allocation3 [shape = 's32[1]{0}', space=sflag, size = 0x4, scoped, tag = 'scoped memory for _lambda_.5']
    %12 = vsyncpa [#allocation3], 0
    // Predicated region
    $region2: #{_lambda_.5} parent=1 // pred_check
      _
    $region3: #{_lambda_.5} parent=1 // pred_check_branch
      %14 = sbr.rel (0) target = $region5
    $region4: #{_lambda_.5} parent=1 // pred_region
      _
    $region5: #{_lambda_.5} parent=1 // pred_fallthru
      _
    // Predicated region
    $region6: #{_lambda_.5} parent=1 // pred_check
      _
    $region7: #{_lambda_.5} parent=1 // pred_check_branch
      %16 = sbr.rel (0) target = $region9
    $region8: #{_lambda_.5} parent=1 // pred_region
      _
    $region9: #{_lambda_.5} parent=1 // pred_fallthru
      _
    // Predicated region
    $region10: #{_lambda_.5} parent=1 // pred_check
      _
    $region11: #{_lambda_.5} parent=1 // pred_check_branch
      %18 = sbr.rel (0) target = $region13
    $region12: #{_lambda_.5} parent=1 // pred_region
      _
    $region13: #{_lambda_.5} parent=1 // pred_fallthru
      _
    // Predicated region
    $region14: #{_lambda_.5} parent=1 // pred_check
      _
    $region15: #{_lambda_.5} parent=1 // pred_check_branch
      %20 = sbr.rel (0) target = $region17
    $region16: #{_lambda_.5} parent=1 // pred_region
      _
    $region17: #{_lambda_.5} parent=1 // pred_fallthru
      _
    // Predicated region
    $region18: #{_lambda_.5} parent=1 // pred_check
      _
    $region19: #{_lambda_.5} parent=1 // pred_check_branch
      %22 = sbr.rel (0) target = $region21
    $region20: #{_lambda_.5} parent=1 // pred_region
      _
    $region21: #{_lambda_.5} parent=1 // pred_fallthru
      _
    // Predicated region
    $region22: #{_lambda_.5} parent=1 // pred_check
      _
    $region23: #{_lambda_.5} parent=1 // pred_check_branch
      %24 = sbr.rel (0) target = $region25
    $region24: #{_lambda_.5} parent=1 // pred_region
      _
    $region25: #{_lambda_.5} parent=1 // pred_fallthru
      _
    // Predicated region
    $region26: #{_lambda_.5} parent=1 // pred_check
      _
    $region27: #{_lambda_.5} parent=1 // pred_check_branch
      %26 = sbr.rel (0) target = $region29
    $region28: #{_lambda_.5} parent=1 // pred_region
      _
    $region29: #{_lambda_.5} parent=1 // pred_fallthru
      _
    %v27 = vld [vmem:[%s0] sm:$0xff]
    %v28 = vld [vmem:[%s0 + $0x8] sm:$0xff]
    %v29 = vld [vmem:[%s0 + $0x10] sm:$0xff]
    %v30 = vld [vmem:[%s0 + $0x18] sm:$0x1]
    %v31 = vld [vmem:[%s1] sm:$0xf]
    %v32 = vld [vmem:[%s1 + $0x4] sm:$0xf]
    %v33 = vld [vmem:[%s1 + $0x8] sm:$0xf]
    %v34 = vld [vmem:[%s1 + $0xc] sm:$0xf]
    %v35 = vld [vmem:[%s1 + $0x10] sm:$0xf]
    %v36 = vld [vmem:[%s1 + $0x14] sm:$0xf]
    %v37 = vld [vmem:[%s1 + $0x18] sm:$0xf]
    %v38 = vld [vmem:[%s1 + $0x1c] sm:$0xf]
    %v39 = vld [vmem:[%s1 + $0x20] sm:$0xf]
    %v40 = vld [vmem:[%s1 + $0x24] sm:$0xf]
    %v41 = vld [vmem:[%s1 + $0x28] sm:$0xf]
    %v42 = vld [vmem:[%s1 + $0x2c] sm:$0xf]
    %v43 = vld [vmem:[%s1 + $0x30] sm:$0xf]
    %v44 = vld [vmem:[%s1 + $0x34] sm:$0xf]
    %v45 = vld [vmem:[%s1 + $0x38] sm:$0xf]
    %v46 = vld [vmem:[%s1 + $0x3c] sm:$0xf]
    %v47 = vld [vmem:[%s1 + $0x40] sm:$0xf]
    %v48 = vld [vmem:[%s1 + $0x44] sm:$0xf]
    %v49 = vld [vmem:[%s1 + $0x48] sm:$0xf]
    %v50 = vld [vmem:[%s1 + $0x4c] sm:$0xf]
    %v51 = vld [vmem:[%s1 + $0x50] sm:$0xf]
    %v52 = vld [vmem:[%s1 + $0x54] sm:$0xf]
    %v53 = vld [vmem:[%s1 + $0x58] sm:$0xf]
    %v54 = vld [vmem:[%s1 + $0x5c] sm:$0xf]
    %v55 = vld [vmem:[%s1 + $0x60] sm:$0xf]
    %v56 = vld [vmem:[%s1 + $0x64] sm:$0xf]
    %v57 = vld [vmem:[%s1 + $0x68] sm:$0xf]
    %v58 = vld [vmem:[%s1 + $0x6c] sm:$0xf]
    %v59 = vld [vmem:[%s1 + $0x70] sm:$0xf]
    %v60 = vld [vmem:[%s1 + $0x74] sm:$0xf]
    %v61 = vld [vmem:[%s1 + $0x78] sm:$0xf]
    %v62 = vld [vmem:[%s1 + $0x7c] sm:$0xf]
    %v63 = vld [vmem:[%s1 + $0x80] sm:$0xf]
    %v64 = vld [vmem:[%s1 + $0x84] sm:$0xf]
    %v65 = vld [vmem:[%s1 + $0x88] sm:$0xf]
    %v66 = vld [vmem:[%s1 + $0x8c] sm:$0xf]
    %v67 = vld [vmem:[%s1 + $0x90] sm:$0xf]
    %v68 = vld [vmem:[%s1 + $0x94] sm:$0xf]
    %v69 = vld [vmem:[%s1 + $0x98] sm:$0xf]
    %v70 = vld [vmem:[%s1 + $0x9c] sm:$0xf]
    %v71 = vld [vmem:[%s1 + $0xa0] sm:$0xf]
    %v72 = vld [vmem:[%s1 + $0xa4] sm:$0xf]
    %v73 = vld [vmem:[%s1 + $0xa8] sm:$0xf]
    %v74 = vld [vmem:[%s1 + $0xac] sm:$0xf]
    %v75 = vld [vmem:[%s1 + $0xb0] sm:$0xf]
    %v76 = vld [vmem:[%s1 + $0xb4] sm:$0xf]
    %v77 = vld [vmem:[%s1 + $0xb8] sm:$0xf]
    %v78 = vld [vmem:[%s1 + $0xbc] sm:$0xf]
    %v79 = vld [vmem:[%s1 + $0xc0] sm:$0xf]
    %v80 = vld [vmem:[%s1 + $0xc4] sm:$0xf]
    %v81 = vld [vmem:[%s1 + $0xc8] sm:$0xf]
    %v82 = vld [vmem:[%s1 + $0xcc] sm:$0xf]
    %v83 = vld [vmem:[%s1 + $0xd0] sm:$0xf]
    %v84 = vld [vmem:[%s1 + $0xd4] sm:$0xf]
    %v85 = vld [vmem:[%s1 + $0xd8] sm:$0xf]
    %v86 = vld [vmem:[%s1 + $0xdc] sm:$0xf]
    %v87 = vld [vmem:[%s1 + $0xe0] sm:$0xf]
    %v88 = vld [vmem:[%s1 + $0xe4] sm:$0xf]
    %v89 = vld [vmem:[%s1 + $0xe8] sm:$0xf]
    %v90 = vld [vmem:[%s1 + $0xec] sm:$0xf]
    %v91 = vld [vmem:[%s1 + $0xf0] sm:$0xf]
    %v92 = vld [vmem:[%s1 + $0xf4] sm:$0xf]
    %v93 = vld [vmem:[%s1 + $0xf8] sm:$0xf]
    %v94 = vld [vmem:[%s1 + $0xfc] sm:$0xf]
    %v95 = vld [vmem:[%s1 + $0x100] sm:$0xf]
    %v96 = vld [vmem:[%s1 + $0x104] sm:$0xf]
    %v97 = vld [vmem:[%s1 + $0x108] sm:$0xf]
    %v98 = vld [vmem:[%s1 + $0x10c] sm:$0xf]
    %v99 = vld [vmem:[%s1 + $0x110] sm:$0xf]
    %v100 = vld [vmem:[%s1 + $0x114] sm:$0xf]
    %v101 = vld [vmem:[%s1 + $0x118] sm:$0xf]
    %v102 = vld [vmem:[%s1 + $0x11c] sm:$0xf]
    %v103 = vld [vmem:[%s1 + $0x120] sm:$0xf]
    %v104 = vld [vmem:[%s1 + $0x124] sm:$0xf]
    %v105 = vld [vmem:[%s1 + $0x128] sm:$0xf]
    %v106 = vld [vmem:[%s1 + $0x12c] sm:$0xf]
    %v107 = vld [vmem:[%s1 + $0x130] sm:$0xf]
    %v108 = vld [vmem:[%s1 + $0x134] sm:$0xf]
    %v109 = vld [vmem:[%s1 + $0x138] sm:$0xf]
    %v110 = vld [vmem:[%s1 + $0x13c] sm:$0xf]
    %v111 = vld [vmem:[%s1 + $0x140] sm:$0xf]
    %v112 = vld [vmem:[%s1 + $0x144] sm:$0xf]
    %v113 = vld [vmem:[%s1 + $0x148] sm:$0xf]
    %v114 = vld [vmem:[%s1 + $0x14c] sm:$0xf]
    %v115 = vld [vmem:[%s1 + $0x150] sm:$0xf]
    %v116 = vld [vmem:[%s1 + $0x154] sm:$0xf]
    %v117 = vld [vmem:[%s1 + $0x158] sm:$0xf]
    %v118 = vld [vmem:[%s1 + $0x15c] sm:$0xf]
    %v119 = vld [vmem:[%s1 + $0x160] sm:$0xf]
    %v120 = vld [vmem:[%s1 + $0x164] sm:$0xf]
    %v121 = vld [vmem:[%s1 + $0x168] sm:$0xf]
    %v122 = vld [vmem:[%s1 + $0x16c] sm:$0xf]
    %v123 = vld [vmem:[%s1 + $0x170] sm:$0xf]
    %v124 = vld [vmem:[%s1 + $0x174] sm:$0xf]
    %v125 = vld [vmem:[%s1 + $0x178] sm:$0xf]
    %v126 = vld [vmem:[%s1 + $0x17c] sm:$0xf]
    %v127 = vld [vmem:[%s1 + $0x180] sm:$0xf]
    %v128 = vld [vmem:[%s1 + $0x184] sm:$0xf]
    %v129 = vld [vmem:[%s1 + $0x188] sm:$0xf]
    %v130 = vld [vmem:[%s1 + $0x18c] sm:$0xf]
    %v131 = vld [vmem:[%s1 + $0x190] sm:$0xf]
    %v132 = vld [vmem:[%s1 + $0x194] sm:$0xf]
    %v133 = vld [vmem:[%s1 + $0x198] sm:$0xf]
    %v134 = vld [vmem:[%s1 + $0x19c] sm:$0xf]
    %v135 = vld [vmem:[%s1 + $0x1a0] sm:$0xf]
    %v136 = vld [vmem:[%s1 + $0x1a4] sm:$0xf]
    %v137 = vld [vmem:[%s1 + $0x1a8] sm:$0xf]
    %v138 = vld [vmem:[%s1 + $0x1ac] sm:$0xf]
    %v139 = vld [vmem:[%s1 + $0x1b0] sm:$0xf]
    %v140 = vld [vmem:[%s1 + $0x1b4] sm:$0xf]
    %v141 = vld [vmem:[%s1 + $0x1b8] sm:$0xf]
    %v142 = vld [vmem:[%s1 + $0x1bc] sm:$0xf]
    %v143 = vld [vmem:[%s1 + $0x1c0] sm:$0xf]
    %v144 = vld [vmem:[%s1 + $0x1c4] sm:$0xf]
    %v145 = vld [vmem:[%s1 + $0x1c8] sm:$0xf]
    %v146 = vld [vmem:[%s1 + $0x1cc] sm:$0xf]
    %v147 = vld [vmem:[%s1 + $0x1d0] sm:$0xf]
    %v148 = vld [vmem:[%s1 + $0x1d4] sm:$0xf]
    %v149 = vld [vmem:[%s1 + $0x1d8] sm:$0xf]
    %v150 = vld [vmem:[%s1 + $0x1dc] sm:$0xf]
    %v151 = vld [vmem:[%s1 + $0x1e0] sm:$0xf]
    %v152 = vld [vmem:[%s1 + $0x1e4] sm:$0xf]
    %v153 = vld [vmem:[%s1 + $0x1e8] sm:$0xf]
    %v154 = vld [vmem:[%s1 + $0x1ec] sm:$0xf]
    %v155 = vld [vmem:[%s1 + $0x1f0] sm:$0xf]
    %v156 = vld [vmem:[%s1 + $0x1f4] sm:$0xf]
    %v157 = vld [vmem:[%s1 + $0x1f8] sm:$0xf]
    %v158 = vld [vmem:[%s1 + $0x1fc] sm:$0xf]
    %v159 = vld [vmem:[%s1 + $0x200] sm:$0xf]
    %v160 = vld [vmem:[%s1 + $0x204] sm:$0xf]
    %v161 = vld [vmem:[%s1 + $0x208] sm:$0xf]
    %v162 = vld [vmem:[%s1 + $0x20c] sm:$0xf]
    %v163 = vld [vmem:[%s1 + $0x210] sm:$0xf]
    %v164 = vld [vmem:[%s1 + $0x214] sm:$0xf]
    %v165 = vld [vmem:[%s1 + $0x218] sm:$0xf]
    %v166 = vld [vmem:[%s1 + $0x21c] sm:$0xf]
    %v167 = vld [vmem:[%s1 + $0x220] sm:$0xf]
    %v168 = vld [vmem:[%s1 + $0x224] sm:$0xf]
    %v169 = vld [vmem:[%s1 + $0x228] sm:$0xf]
    %v170 = vld [vmem:[%s1 + $0x22c] sm:$0xf]
    %v171 = vld [vmem:[%s1 + $0x230] sm:$0xf]
    %v172 = vld [vmem:[%s1 + $0x234] sm:$0xf]
    %v173 = vld [vmem:[%s1 + $0x238] sm:$0xf]
    %v174 = vld [vmem:[%s1 + $0x23c] sm:$0xf]
    %v175 = vld [vmem:[%s1 + $0x240] sm:$0xf]
    %v176 = vld [vmem:[%s1 + $0x244] sm:$0xf]
    %v177 = vld [vmem:[%s1 + $0x248] sm:$0xf]
    %v178 = vld [vmem:[%s1 + $0x24c] sm:$0xf]
    %v179 = vld [vmem:[%s1 + $0x250] sm:$0xf]
    %v180 = vld [vmem:[%s1 + $0x254] sm:$0xf]
    %v181 = vld [vmem:[%s1 + $0x258] sm:$0xf]
    %v182 = vld [vmem:[%s1 + $0x25c] sm:$0xf]
    %v183 = vld [vmem:[%s1 + $0x260] sm:$0xf]
    %v184 = vld [vmem:[%s1 + $0x264] sm:$0xf]
    %v185 = vld [vmem:[%s1 + $0x268] sm:$0xf]
    %v186 = vld [vmem:[%s1 + $0x26c] sm:$0xf]
    %v187 = vld [vmem:[%s1 + $0x270] sm:$0xf]
    %v188 = vld [vmem:[%s1 + $0x274] sm:$0xf]
    %v189 = vld [vmem:[%s1 + $0x278] sm:$0xf]
    %v190 = vld [vmem:[%s1 + $0x27c] sm:$0xf]
    %v191 = vld [vmem:[%s1 + $0x280] sm:$0xf]
    %v192 = vld [vmem:[%s1 + $0x284] sm:$0xf]
    %v193 = vld [vmem:[%s1 + $0x288] sm:$0xf]
    %v194 = vld [vmem:[%s1 + $0x28c] sm:$0xf]
    %v195 = vld [vmem:[%s1 + $0x290] sm:$0xf]
    %v196 = vld [vmem:[%s1 + $0x294] sm:$0xf]
    %v197 = vld [vmem:[%s1 + $0x298] sm:$0xf]
    %v198 = vld [vmem:[%s1 + $0x29c] sm:$0xf]
    %v199 = vld [vmem:[%s1 + $0x2a0] sm:$0xf]
    %v200 = vld [vmem:[%s1 + $0x2a4] sm:$0xf]
    %v201 = vld [vmem:[%s1 + $0x2a8] sm:$0xf]
    %v202 = vld [vmem:[%s1 + $0x2ac] sm:$0xf]
    %v203 = vld [vmem:[%s1 + $0x2b0] sm:$0xf]
    %v204 = vld [vmem:[%s1 + $0x2b4] sm:$0xf]
    %v205 = vld [vmem:[%s1 + $0x2b8] sm:$0xf]
    %v206 = vld [vmem:[%s1 + $0x2bc] sm:$0xf]
    %v207 = vld [vmem:[%s1 + $0x2c0] sm:$0xf]
    %v208 = vld [vmem:[%s1 + $0x2c4] sm:$0xf]
    %v209 = vld [vmem:[%s1 + $0x2c8] sm:$0xf]
    %v210 = vld [vmem:[%s1 + $0x2cc] sm:$0xf]
    %v211 = vld [vmem:[%s1 + $0x2d0] sm:$0xf]
    %v212 = vld [vmem:[%s1 + $0x2d4] sm:$0xf]
    %v213 = vld [vmem:[%s1 + $0x2d8] sm:$0xf]
    %v214 = vld [vmem:[%s1 + $0x2dc] sm:$0xf]
    %v215 = vld [vmem:[%s1 + $0x2e0] sm:$0xf]
    %v216 = vld [vmem:[%s1 + $0x2e4] sm:$0xf]
    %v217 = vld [vmem:[%s1 + $0x2e8] sm:$0xf]
    %v218 = vld [vmem:[%s1 + $0x2ec] sm:$0xf]
    %v219 = vld [vmem:[%s1 + $0x2f0] sm:$0xf]
    %v220 = vld [vmem:[%s1 + $0x2f4] sm:$0xf]
    %v221 = vld [vmem:[%s1 + $0x2f8] sm:$0xf]
    %v222 = vld [vmem:[%s1 + $0x2fc] sm:$0xf]
    %v223 = vld [vmem:[%s1 + $0x300] sm:$0xf]
    %v224 = vld [vmem:[%s1 + $0x304] sm:$0xf]
    %v225 = vld [vmem:[%s1 + $0x308] sm:$0xf]
    %v226 = vld [vmem:[%s1 + $0x30c] sm:$0xf]
    %v227 = vld [vmem:[%s1 + $0x310] sm:$0xf]
    %v228 = vld [vmem:[%s1 + $0x314] sm:$0xf]
    %v229 = vld [vmem:[%s1 + $0x318] sm:$0xf]
    %v230 = vld [vmem:[%s1 + $0x31c] sm:$0xf]
    %v231 = vld [vmem:[%s1 + $0x320] sm:$0xf]
    %v232 = vld [vmem:[%s1 + $0x324] sm:$0xf]
    %v233 = vld [vmem:[%s1 + $0x328] sm:$0xf]
    %v234 = vld [vmem:[%s1 + $0x32c] sm:$0xf]
    %v235 = vld [vmem:[%s1 + $0x330] sm:$0xf]
    %v236 = vld [vmem:[%s1 + $0x334] sm:$0xf]
    %v237 = vld [vmem:[%s1 + $0x338] sm:$0xf]
    %v238 = vld [vmem:[%s1 + $0x33c] sm:$0xf]
    %v239 = vld [vmem:[%s1 + $0x340] sm:$0xf]
    %v240 = vld [vmem:[%s1 + $0x344] sm:$0xf]
    %v241 = vld [vmem:[%s1 + $0x348] sm:$0xf]
    %v242 = vld [vmem:[%s1 + $0x34c] sm:$0xf]
    %v243 = vld [vmem:[%s1 + $0x350] sm:$0xf]
    %v244 = vld [vmem:[%s1 + $0x354] sm:$0xf]
    %v245 = vld [vmem:[%s1 + $0x358] sm:$0xf]
    %v246 = vld [vmem:[%s1 + $0x35c] sm:$0xf]
    %v247 = vld [vmem:[%s1 + $0x360] sm:$0xf]
    %v248 = vld [vmem:[%s1 + $0x364] sm:$0xf]
    %v249 = vld [vmem:[%s1 + $0x368] sm:$0xf]
    %v250 = vld [vmem:[%s1 + $0x36c] sm:$0xf]
    %v251 = vld [vmem:[%s1 + $0x370] sm:$0xf]
    %v252 = vld [vmem:[%s1 + $0x374] sm:$0xf]
    %v253 = vld [vmem:[%s1 + $0x378] sm:$0xf]
    %v254 = vld [vmem:[%s1 + $0x37c] sm:$0xf]
    %v255 = vld [vmem:[%s1 + $0x380] sm:$0xf]
    %v256 = vld [vmem:[%s1 + $0x384] sm:$0xf]
    %v257 = vld [vmem:[%s1 + $0x388] sm:$0xf]
    %v258 = vld [vmem:[%s1 + $0x38c] sm:$0xf]
    %v259 = vld [vmem:[%s1 + $0x390] sm:$0xf]
    %v260 = vld [vmem:[%s1 + $0x394] sm:$0xf]
    %v261 = vld [vmem:[%s1 + $0x398] sm:$0xf]
    %v262 = vld [vmem:[%s1 + $0x39c] sm:$0xf]
    %v263 = vld [vmem:[%s1 + $0x3a0] sm:$0xf]
    %v264 = vld [vmem:[%s1 + $0x3a4] sm:$0xf]
    %v265 = vld [vmem:[%s1 + $0x3a8] sm:$0xf]
    %v266 = vld [vmem:[%s1 + $0x3ac] sm:$0xf]
    %v267 = vld [vmem:[%s1 + $0x3b0] sm:$0xf]
    %v268 = vld [vmem:[%s1 + $0x3b4] sm:$0xf]
    %v269 = vld [vmem:[%s1 + $0x3b8] sm:$0xf]
    %v270 = vld [vmem:[%s1 + $0x3bc] sm:$0xf]
    %v271 = vld [vmem:[%s1 + $0x3c0] sm:$0xf]
    %v272 = vld [vmem:[%s1 + $0x3c4] sm:$0xf]
    %v273 = vld [vmem:[%s1 + $0x3c8] sm:$0xf]
    %v274 = vld [vmem:[%s1 + $0x3cc] sm:$0xf]
    %v275 = vld [vmem:[%s1 + $0x3d0] sm:$0xf]
    %v276 = vld [vmem:[%s1 + $0x3d4] sm:$0xf]
    %v277 = vld [vmem:[%s1 + $0x3d8] sm:$0xf]
    %v278 = vld [vmem:[%s1 + $0x3dc] sm:$0xf]
    %v279 = vld [vmem:[%s1 + $0x3e0] sm:$0xf]
    %v280 = vld [vmem:[%s1 + $0x3e4] sm:$0xf]
    %v281 = vld [vmem:[%s1 + $0x3e8] sm:$0xf]
    %v282 = vld [vmem:[%s1 + $0x3ec] sm:$0xf]
    %v283 = vld [vmem:[%s1 + $0x3f0] sm:$0xf]
    %v284 = vld [vmem:[%s1 + $0x3f4] sm:$0xf]
    %v285 = vld [vmem:[%s1 + $0x3f8] sm:$0xf]
    %v286 = vld [vmem:[%s1 + $0x3fc] sm:$0xf]
    %v287 = vld [vmem:[%s1 + $0x400] sm:$0xf]
    %v288 = vld [vmem:[%s1 + $0x404] sm:$0xf]
    %v289 = vld [vmem:[%s1 + $0x408] sm:$0xf]
    %v290 = vld [vmem:[%s1 + $0x40c] sm:$0xf]
    %v291 = vld [vmem:[%s1 + $0x410] sm:$0xf]
    %v292 = vld [vmem:[%s1 + $0x414] sm:$0xf]
    %v293 = vld [vmem:[%s1 + $0x418] sm:$0xf]
    %v294 = vld [vmem:[%s1 + $0x41c] sm:$0xf]
    %v295 = vld [vmem:[%s1 + $0x420] sm:$0xf]
    %v296 = vld [vmem:[%s1 + $0x424] sm:$0xf]
    %v297 = vld [vmem:[%s1 + $0x428] sm:$0xf]
    %v298 = vld [vmem:[%s1 + $0x42c] sm:$0xf]
    %v299 = vld [vmem:[%s1 + $0x430] sm:$0xf]
    %v300 = vld [vmem:[%s1 + $0x434] sm:$0xf]
    %v301 = vld [vmem:[%s1 + $0x438] sm:$0xf]
    %v302 = vld [vmem:[%s1 + $0x43c] sm:$0xf]
    %v303 = vld [vmem:[%s1 + $0x440] sm:$0xf]
    %v304 = vld [vmem:[%s1 + $0x444] sm:$0xf]
    %v305 = vld [vmem:[%s1 + $0x448] sm:$0xf]
    %v306 = vld [vmem:[%s1 + $0x44c] sm:$0xf]
    %v307 = vld [vmem:[%s1 + $0x450] sm:$0xf]
    %v308 = vld [vmem:[%s1 + $0x454] sm:$0xf]
    %v309 = vld [vmem:[%s1 + $0x458] sm:$0xf]
    %v310 = vld [vmem:[%s1 + $0x45c] sm:$0xf]
    %v311 = vld [vmem:[%s1 + $0x460] sm:$0xf]
    %v312 = vld [vmem:[%s1 + $0x464] sm:$0xf]
    %v313 = vld [vmem:[%s1 + $0x468] sm:$0xf]
    %v314 = vld [vmem:[%s1 + $0x46c] sm:$0xf]
    %v315 = vld [vmem:[%s1 + $0x470] sm:$0xf]
    %v316 = vld [vmem:[%s1 + $0x474] sm:$0xf]
    %v317 = vld [vmem:[%s1 + $0x478] sm:$0xf]
    %v318 = vld [vmem:[%s1 + $0x47c] sm:$0xf]
    %v319 = vld [vmem:[%s1 + $0x480] sm:$0xf]
    %v320 = vld [vmem:[%s1 + $0x484] sm:$0xf]
    %v321 = vld [vmem:[%s1 + $0x488] sm:$0xf]
    %v322 = vld [vmem:[%s1 + $0x48c] sm:$0xf]
    %v323 = vld [vmem:[%s1 + $0x490] sm:$0xf]
    %v324 = vld [vmem:[%s1 + $0x494] sm:$0xf]
    %v325 = vld [vmem:[%s1 + $0x498] sm:$0xf]
    %v326 = vld [vmem:[%s1 + $0x49c] sm:$0xf]
    %v327 = vld [vmem:[%s1 + $0x4a0] sm:$0xf]
    %v328 = vld [vmem:[%s1 + $0x4a4] sm:$0xf]
    %v329 = vld [vmem:[%s1 + $0x4a8] sm:$0xf]
    %v330 = vld [vmem:[%s1 + $0x4ac] sm:$0xf]
    %v331 = vld [vmem:[%s1 + $0x4b0] sm:$0xf]
    %v332 = vld [vmem:[%s1 + $0x4b4] sm:$0xf]
    %v333 = vld [vmem:[%s1 + $0x4b8] sm:$0xf]
    %v334 = vld [vmem:[%s1 + $0x4bc] sm:$0xf]
    %v335 = vld [vmem:[%s1 + $0x4c0] sm:$0xf]
    %v336 = vld [vmem:[%s1 + $0x4c4] sm:$0xf]
    %v337 = vld [vmem:[%s1 + $0x4c8] sm:$0xf]
    %v338 = vld [vmem:[%s1 + $0x4cc] sm:$0xf]
    %v339 = vld [vmem:[%s1 + $0x4d0] sm:$0xf]
    %v340 = vld [vmem:[%s1 + $0x4d4] sm:$0xf]
    %v341 = vld [vmem:[%s1 + $0x4d8] sm:$0xf]
    %v342 = vld [vmem:[%s1 + $0x4dc] sm:$0xf]
    %v343 = vld [vmem:[%s1 + $0x4e0] sm:$0xf]
    %v344 = vld [vmem:[%s1 + $0x4e4] sm:$0xf]
    %v345 = vld [vmem:[%s1 + $0x4e8] sm:$0xf]
    %v346 = vld [vmem:[%s1 + $0x4ec] sm:$0xf]
    %v347 = vld [vmem:[%s1 + $0x4f0] sm:$0xf]
    %v348 = vld [vmem:[%s1 + $0x4f4] sm:$0xf]
    %v349 = vld [vmem:[%s1 + $0x4f8] sm:$0xf]
    %v350 = vld [vmem:[%s1 + $0x4fc] sm:$0xf]
    %v351 = vld [vmem:[%s1 + $0x500] sm:$0xf]
    %v352 = vld [vmem:[%s1 + $0x504] sm:$0xf]
    %v353 = vld [vmem:[%s1 + $0x508] sm:$0xf]
    %v354 = vld [vmem:[%s1 + $0x50c] sm:$0xf]
    %v355 = vld [vmem:[%s1 + $0x510] sm:$0xf]
    %v356 = vld [vmem:[%s1 + $0x514] sm:$0xf]
    %v357 = vld [vmem:[%s1 + $0x518] sm:$0xf]
    %v358 = vld [vmem:[%s1 + $0x51c] sm:$0xf]
    %v359 = vld [vmem:[%s1 + $0x520] sm:$0xf]
    %v360 = vld [vmem:[%s1 + $0x524] sm:$0xf]
    %v361 = vld [vmem:[%s1 + $0x528] sm:$0xf]
    %v362 = vld [vmem:[%s1 + $0x52c] sm:$0xf]
    %v363 = vld [vmem:[%s1 + $0x530] sm:$0xf]
    %v364 = vld [vmem:[%s1 + $0x534] sm:$0xf]
    %v365 = vld [vmem:[%s1 + $0x538] sm:$0xf]
    %v366 = vld [vmem:[%s1 + $0x53c] sm:$0xf]
    %v367 = vld [vmem:[%s1 + $0x540] sm:$0xf]
    %v368 = vld [vmem:[%s1 + $0x544] sm:$0xf]
    %v369 = vld [vmem:[%s1 + $0x548] sm:$0xf]
    %v370 = vld [vmem:[%s1 + $0x54c] sm:$0xf]
    %v371 = vld [vmem:[%s1 + $0x550] sm:$0xf]
    %v372 = vld [vmem:[%s1 + $0x554] sm:$0xf]
    %v373 = vld [vmem:[%s1 + $0x558] sm:$0xf]
    %v374 = vld [vmem:[%s1 + $0x55c] sm:$0xf]
    %v375 = vld [vmem:[%s1 + $0x560] sm:$0xf]
    %v376 = vld [vmem:[%s1 + $0x564] sm:$0xf]
    %v377 = vld [vmem:[%s1 + $0x568] sm:$0xf]
    %v378 = vld [vmem:[%s1 + $0x56c] sm:$0xf]
    %v379 = vld [vmem:[%s1 + $0x570] sm:$0xf]
    %v380 = vld [vmem:[%s1 + $0x574] sm:$0xf]
    %v381 = vld [vmem:[%s1 + $0x578] sm:$0xf]
    %v382 = vld [vmem:[%s1 + $0x57c] sm:$0xf]
    %v383 = vld [vmem:[%s1 + $0x580] sm:$0xf]
    %v384 = vld [vmem:[%s1 + $0x584] sm:$0xf]
    %v385 = vld [vmem:[%s1 + $0x588] sm:$0xf]
    %v386 = vld [vmem:[%s1 + $0x58c] sm:$0xf]
    %v387 = vld [vmem:[%s1 + $0x590] sm:$0xf]
    %v388 = vld [vmem:[%s1 + $0x594] sm:$0xf]
    %v389 = vld [vmem:[%s1 + $0x598] sm:$0xf]
    %v390 = vld [vmem:[%s1 + $0x59c] sm:$0xf]
    %v391 = vld [vmem:[%s1 + $0x5a0] sm:$0xf]
    %v392 = vld [vmem:[%s1 + $0x5a4] sm:$0xf]
    %v393 = vld [vmem:[%s1 + $0x5a8] sm:$0xf]
    %v394 = vld [vmem:[%s1 + $0x5ac] sm:$0xf]
    %v395 = vld [vmem:[%s1 + $0x5b0] sm:$0xf]
    %v396 = vld [vmem:[%s1 + $0x5b4] sm:$0xf]
    %v397 = vld [vmem:[%s1 + $0x5b8] sm:$0xf]
    %v398 = vld [vmem:[%s1 + $0x5bc] sm:$0xf]
    %v399 = vld [vmem:[%s1 + $0x5c0] sm:$0xf]
    %v400 = vld [vmem:[%s1 + $0x5c4] sm:$0xf]
    %v401 = vld [vmem:[%s1 + $0x5c8] sm:$0xf]
    %v402 = vld [vmem:[%s1 + $0x5cc] sm:$0xf]
    %v403 = vld [vmem:[%s1 + $0x5d0] sm:$0xf]
    %v404 = vld [vmem:[%s1 + $0x5d4] sm:$0xf]
    %v405 = vld [vmem:[%s1 + $0x5d8] sm:$0xf]
    %v406 = vld [vmem:[%s1 + $0x5dc] sm:$0xf]
    %v407 = vld [vmem:[%s1 + $0x5e0] sm:$0xf]
    %v408 = vld [vmem:[%s1 + $0x5e4] sm:$0xf]
    %v409 = vld [vmem:[%s1 + $0x5e8] sm:$0xf]
    %v410 = vld [vmem:[%s1 + $0x5ec] sm:$0xf]
    %v411 = vld [vmem:[%s1 + $0x5f0] sm:$0xf]
    %v412 = vld [vmem:[%s1 + $0x5f4] sm:$0xf]
    %v413 = vld [vmem:[%s1 + $0x5f8] sm:$0xf]
    %v414 = vld [vmem:[%s1 + $0x5fc] sm:$0xf]
    %v415 = vld [vmem:[%s1 + $0x600] sm:$0xf]
    %v416 = vld [vmem:[%s1 + $0x604] sm:$0xf]
    %v417 = vld [vmem:[%s1 + $0x608] sm:$0xf]
    %v418 = vld [vmem:[%s1 + $0x60c] sm:$0xf]
    %v419 = vld [vmem:[%s1 + $0x610] sm:$0xf]
    %v420 = vld [vmem:[%s1 + $0x614] sm:$0xf]
    %v421 = vld [vmem:[%s1 + $0x618] sm:$0xf]
    %v422 = vld [vmem:[%s1 + $0x61c] sm:$0xf]
    %v423 = vld [vmem:[%s1 + $0x620] sm:$0xf]
    %v424 = vld [vmem:[%s1 + $0x624] sm:$0xf]
    %v425 = vld [vmem:[%s1 + $0x628] sm:$0xf]
    %v426 = vld [vmem:[%s1 + $0x62c] sm:$0xf]
    %v427 = vld [vmem:[%s1 + $0x630] sm:$0xf]
    %v428 = vld [vmem:[%s1 + $0x634] sm:$0xf]
    %v429 = vld [vmem:[%s1 + $0x638] sm:$0xf]
    %v430 = vld [vmem:[%s1 + $0x63c] sm:$0xf]
    %v431 = vld [vmem:[%s2] sm:$0x1]
    %v433 = vperm.slane %v431, 0
    %436 = vst [vmem:[#allocation1] ss:$9 sm:$0xff] %v27
    %v437 = vld [vmem:[#allocation1] sm:$0xff]
    %v438 = vld [vmem:[#allocation1 + $0x9] sm:$0xff]
    %v439 = vld [vmem:[#allocation1 + $0x12] sm:$0xff]
    %v440 = vld [vmem:[#allocation1 + $0x1b] sm:$0xff]
    %v441 = vld [vmem:[#allocation1 + $0x24] sm:$0xff]
    %v442 = vld [vmem:[#allocation1 + $0x2d] sm:$0xff]
    %v443 = vld [vmem:[#allocation1 + $0x36] sm:$0xff]
    %v444 = vld [vmem:[#allocation1 + $0x3f] sm:$0xff]
    %446 = vst [vmem:[#allocation1] ss:$9 sm:$0xff] %v28
    %v447 = vld [vmem:[#allocation1] sm:$0xff]
    %v448 = vld [vmem:[#allocation1 + $0x9] sm:$0xff]
    %v449 = vld [vmem:[#allocation1 + $0x12] sm:$0xff]
    %v450 = vld [vmem:[#allocation1 + $0x1b] sm:$0xff]
    %v451 = vld [vmem:[#allocation1 + $0x24] sm:$0xff]
    %v452 = vld [vmem:[#allocation1 + $0x2d] sm:$0xff]
    %v453 = vld [vmem:[#allocation1 + $0x36] sm:$0xff]
    %v454 = vld [vmem:[#allocation1 + $0x3f] sm:$0xff]
    %456 = vst [vmem:[#allocation1] ss:$9 sm:$0xff] %v29
    %v457 = vld [vmem:[#allocation1] sm:$0xff]
    %v458 = vld [vmem:[#allocation1 + $0x9] sm:$0xff]
    %v459 = vld [vmem:[#allocation1 + $0x12] sm:$0xff]
    %v460 = vld [vmem:[#allocation1 + $0x1b] sm:$0xff]
    %v461 = vld [vmem:[#allocation1 + $0x24] sm:$0xff]
    %v462 = vld [vmem:[#allocation1 + $0x2d] sm:$0xff]
    %v463 = vld [vmem:[#allocation1 + $0x36] sm:$0xff]
    %v464 = vld [vmem:[#allocation1 + $0x3f] sm:$0xff]
    %466 = vst [vmem:[#allocation1] ss:$9 sm:$0xff] %v30
    %v467 = vld [vmem:[#allocation1] sm:$0xff]
    %v893 = vunpack.c.l.b16 %v31
    %v894 = vunpack.c.l.b16 %v32
    %v895 = vunpack.c.l.b16 %v33
    %v896 = vunpack.c.l.b16 %v34
    %v897 = vunpack.c.l.b16 %v35
    %v898 = vunpack.c.l.b16 %v36
    %v899 = vunpack.c.l.b16 %v37
    %v900 = vunpack.c.l.b16 %v38
    %v901 = vunpack.c.l.b16 %v39
    %v902 = vunpack.c.l.b16 %v40
    %v903 = vunpack.c.l.b16 %v41
    %v904 = vunpack.c.l.b16 %v42
    %v905 = vunpack.c.l.b16 %v43
    %v906 = vunpack.c.l.b16 %v44
    %v907 = vunpack.c.l.b16 %v45
    %v908 = vunpack.c.l.b16 %v46
    %v909 = vunpack.c.l.b16 %v47
    %v910 = vunpack.c.l.b16 %v48
    %v911 = vunpack.c.l.b16 %v49
    %v912 = vunpack.c.l.b16 %v50
    %v913 = vunpack.c.l.b16 %v51
    %v914 = vunpack.c.l.b16 %v52
    %v915 = vunpack.c.l.b16 %v53
    %v916 = vunpack.c.l.b16 %v54
    %v917 = vunpack.c.l.b16 %v55
    %v918 = vunpack.c.l.b16 %v56
    %v919 = vunpack.c.l.b16 %v57
    %v920 = vunpack.c.l.b16 %v58
    %v921 = vunpack.c.l.b16 %v59
    %v922 = vunpack.c.l.b16 %v60
    %v923 = vunpack.c.l.b16 %v61
    %v924 = vunpack.c.l.b16 %v62
    %v925 = vunpack.c.l.b16 %v63
    %v926 = vunpack.c.l.b16 %v64
    %v927 = vunpack.c.l.b16 %v65
    %v928 = vunpack.c.l.b16 %v66
    %v929 = vunpack.c.l.b16 %v67
    %v930 = vunpack.c.l.b16 %v68
    %v931 = vunpack.c.l.b16 %v69
    %v932 = vunpack.c.l.b16 %v70
    %v933 = vunpack.c.l.b16 %v71
    %v934 = vunpack.c.l.b16 %v72
    %v935 = vunpack.c.l.b16 %v73
    %v936 = vunpack.c.l.b16 %v74
    %v937 = vunpack.c.l.b16 %v75
    %v938 = vunpack.c.l.b16 %v76
    %v939 = vunpack.c.l.b16 %v77
    %v940 = vunpack.c.l.b16 %v78
    %v941 = vunpack.c.l.b16 %v79
    %v942 = vunpack.c.l.b16 %v80
    %v943 = vunpack.c.l.b16 %v81
    %v944 = vunpack.c.l.b16 %v82
    %v945 = vunpack.c.l.b16 %v83
    %v946 = vunpack.c.l.b16 %v84
    %v947 = vunpack.c.l.b16 %v85
    %v948 = vunpack.c.l.b16 %v86
    %v949 = vunpack.c.l.b16 %v87
    %v950 = vunpack.c.l.b16 %v88
    %v951 = vunpack.c.l.b16 %v89
    %v952 = vunpack.c.l.b16 %v90
    %v953 = vunpack.c.l.b16 %v91
    %v954 = vunpack.c.l.b16 %v92
    %v955 = vunpack.c.l.b16 %v93
    %v956 = vunpack.c.l.b16 %v94
    %v957 = vunpack.c.l.b16 %v95
    %v958 = vunpack.c.l.b16 %v96
    %v959 = vunpack.c.l.b16 %v97
    %v960 = vunpack.c.l.b16 %v98
    %v961 = vunpack.c.l.b16 %v99
    %v962 = vunpack.c.l.b16 %v100
    %v963 = vunpack.c.l.b16 %v101
    %v964 = vunpack.c.l.b16 %v102
    %v965 = vunpack.c.l.b16 %v103
    %v966 = vunpack.c.l.b16 %v104
    %v967 = vunpack.c.l.b16 %v105
    %v968 = vunpack.c.l.b16 %v106
    %v969 = vunpack.c.l.b16 %v107
    %v970 = vunpack.c.l.b16 %v108
    %v971 = vunpack.c.l.b16 %v109
    %v972 = vunpack.c.l.b16 %v110
    %v973 = vunpack.c.l.b16 %v111
    %v974 = vunpack.c.l.b16 %v112
    %v975 = vunpack.c.l.b16 %v113
    %v976 = vunpack.c.l.b16 %v114
    %v977 = vunpack.c.l.b16 %v115
    %v978 = vunpack.c.l.b16 %v116
    %v979 = vunpack.c.l.b16 %v117
    %v980 = vunpack.c.l.b16 %v118
    %v981 = vunpack.c.l.b16 %v119
    %v982 = vunpack.c.l.b16 %v120
    %v983 = vunpack.c.l.b16 %v121
    %v984 = vunpack.c.l.b16 %v122
    %v985 = vunpack.c.l.b16 %v123
    %v986 = vunpack.c.l.b16 %v124
    %v987 = vunpack.c.l.b16 %v125
    %v988 = vunpack.c.l.b16 %v126
    %v989 = vunpack.c.l.b16 %v127
    %v990 = vunpack.c.l.b16 %v128
    %v991 = vunpack.c.l.b16 %v129
    %v992 = vunpack.c.l.b16 %v130
    %v993 = vunpack.c.l.b16 %v131
    %v994 = vunpack.c.l.b16 %v132
    %v995 = vunpack.c.l.b16 %v133
    %v996 = vunpack.c.l.b16 %v134
    %v997 = vunpack.c.l.b16 %v135
    %v998 = vunpack.c.l.b16 %v136
    %v999 = vunpack.c.l.b16 %v137
    %v1000 = vunpack.c.l.b16 %v138
    %v1001 = vunpack.c.l.b16 %v139
    %v1002 = vunpack.c.l.b16 %v140
    %v1003 = vunpack.c.l.b16 %v141
    %v1004 = vunpack.c.l.b16 %v142
    %v1005 = vunpack.c.l.b16 %v143
    %v1006 = vunpack.c.l.b16 %v144
    %v1007 = vunpack.c.l.b16 %v145
    %v1008 = vunpack.c.l.b16 %v146
    %v1009 = vunpack.c.l.b16 %v147
    %v1010 = vunpack.c.l.b16 %v148
    %v1011 = vunpack.c.l.b16 %v149
    %v1012 = vunpack.c.l.b16 %v150
    %v1013 = vunpack.c.l.b16 %v151
    %v1014 = vunpack.c.l.b16 %v152
    %v1015 = vunpack.c.l.b16 %v153
    %v1016 = vunpack.c.l.b16 %v154
    %v1017 = vunpack.c.l.b16 %v155
    %v1018 = vunpack.c.l.b16 %v156
    %v1019 = vunpack.c.l.b16 %v157
    %v1020 = vunpack.c.l.b16 %v158
    %v1021 = vunpack.c.l.b16 %v159
    %v1022 = vunpack.c.l.b16 %v160
    %v1023 = vunpack.c.l.b16 %v161
    %v1024 = vunpack.c.l.b16 %v162
    %v1025 = vunpack.c.l.b16 %v163
    %v1026 = vunpack.c.l.b16 %v164
    %v1027 = vunpack.c.l.b16 %v165
    %v1028 = vunpack.c.l.b16 %v166
    %v1029 = vunpack.c.l.b16 %v167
    %v1030 = vunpack.c.l.b16 %v168
    %v1031 = vunpack.c.l.b16 %v169
    %v1032 = vunpack.c.l.b16 %v170
    %v1033 = vunpack.c.l.b16 %v171
    %v1034 = vunpack.c.l.b16 %v172
    %v1035 = vunpack.c.l.b16 %v173
    %v1036 = vunpack.c.l.b16 %v174
    %v1037 = vunpack.c.l.b16 %v175
    %v1038 = vunpack.c.l.b16 %v176
    %v1039 = vunpack.c.l.b16 %v177
    %v1040 = vunpack.c.l.b16 %v178
    %v1041 = vunpack.c.l.b16 %v179
    %v1042 = vunpack.c.l.b16 %v180
    %v1043 = vunpack.c.l.b16 %v181
    %v1044 = vunpack.c.l.b16 %v182
    %v1045 = vunpack.c.l.b16 %v183
    %v1046 = vunpack.c.l.b16 %v184
    %v1047 = vunpack.c.l.b16 %v185
    %v1048 = vunpack.c.l.b16 %v186
    %v1049 = vunpack.c.l.b16 %v187
    %v1050 = vunpack.c.l.b16 %v188
    %v1051 = vunpack.c.l.b16 %v189
    %v1052 = vunpack.c.l.b16 %v190
    %v1053 = vunpack.c.l.b16 %v191
    %v1054 = vunpack.c.l.b16 %v192
    %v1055 = vunpack.c.l.b16 %v193
    %v1056 = vunpack.c.l.b16 %v194
    %v1057 = vunpack.c.l.b16 %v195
    %v1058 = vunpack.c.l.b16 %v196
    %v1059 = vunpack.c.l.b16 %v197
    %v1060 = vunpack.c.l.b16 %v198
    %v1061 = vunpack.c.l.b16 %v199
    %v1062 = vunpack.c.l.b16 %v200
    %v1063 = vunpack.c.l.b16 %v201
    %v1064 = vunpack.c.l.b16 %v202
    %v1065 = vunpack.c.l.b16 %v203
    %v1066 = vunpack.c.l.b16 %v204
    %v1067 = vunpack.c.l.b16 %v205
    %v1068 = vunpack.c.l.b16 %v206
    %v1069 = vunpack.c.l.b16 %v207
    %v1070 = vunpack.c.l.b16 %v208
    %v1071 = vunpack.c.l.b16 %v209
    %v1072 = vunpack.c.l.b16 %v210
    %v1073 = vunpack.c.l.b16 %v211
    %v1074 = vunpack.c.l.b16 %v212
    %v1075 = vunpack.c.l.b16 %v213
    %v1076 = vunpack.c.l.b16 %v214
    %v1077 = vunpack.c.l.b16 %v215
    %v1078 = vunpack.c.l.b16 %v216
    %v1079 = vunpack.c.l.b16 %v217
    %v1080 = vunpack.c.l.b16 %v218
    %v1081 = vunpack.c.l.b16 %v219
    %v1082 = vunpack.c.l.b16 %v220
    %v1083 = vunpack.c.l.b16 %v221
    %v1084 = vunpack.c.l.b16 %v222
    %v1085 = vunpack.c.l.b16 %v223
    %v1086 = vunpack.c.l.b16 %v224
    %v1087 = vunpack.c.l.b16 %v225
    %v1088 = vunpack.c.l.b16 %v226
    %v1089 = vunpack.c.l.b16 %v227
    %v1090 = vunpack.c.l.b16 %v228
    %v1091 = vunpack.c.l.b16 %v229
    %v1092 = vunpack.c.l.b16 %v230
    %v1093 = vunpack.c.l.b16 %v231
    %v1094 = vunpack.c.l.b16 %v232
    %v1095 = vunpack.c.l.b16 %v233
    %v1096 = vunpack.c.l.b16 %v234
    %v1097 = vunpack.c.l.b16 %v235
    %v1098 = vunpack.c.l.b16 %v236
    %v1099 = vunpack.c.l.b16 %v237
    %v1100 = vunpack.c.l.b16 %v238
    %v1101 = vunpack.c.l.b16 %v239
    %v1102 = vunpack.c.l.b16 %v240
    %v1103 = vunpack.c.l.b16 %v241
    %v1104 = vunpack.c.l.b16 %v242
    %v1105 = vunpack.c.l.b16 %v243
    %v1106 = vunpack.c.l.b16 %v244
    %v1107 = vunpack.c.l.b16 %v245
    %v1108 = vunpack.c.l.b16 %v246
    %v1109 = vunpack.c.l.b16 %v247
    %v1110 = vunpack.c.l.b16 %v248
    %v1111 = vunpack.c.l.b16 %v249
    %v1112 = vunpack.c.l.b16 %v250
    %v1113 = vunpack.c.l.b16 %v251
    %v1114 = vunpack.c.l.b16 %v252
    %v1115 = vunpack.c.l.b16 %v253
    %v1116 = vunpack.c.l.b16 %v254
    %v1117 = vunpack.c.l.b16 %v255
    %v1118 = vunpack.c.l.b16 %v256
    %v1119 = vunpack.c.l.b16 %v257
    %v1120 = vunpack.c.l.b16 %v258
    %v1121 = vunpack.c.l.b16 %v259
    %v1122 = vunpack.c.l.b16 %v260
    %v1123 = vunpack.c.l.b16 %v261
    %v1124 = vunpack.c.l.b16 %v262
    %v1125 = vunpack.c.l.b16 %v263
    %v1126 = vunpack.c.l.b16 %v264
    %v1127 = vunpack.c.l.b16 %v265
    %v1128 = vunpack.c.l.b16 %v266
    %v1129 = vunpack.c.l.b16 %v267
    %v1130 = vunpack.c.l.b16 %v268
    %v1131 = vunpack.c.l.b16 %v269
    %v1132 = vunpack.c.l.b16 %v270
    %v1133 = vunpack.c.l.b16 %v271
    %v1134 = vunpack.c.l.b16 %v272
    %v1135 = vunpack.c.l.b16 %v273
    %v1136 = vunpack.c.l.b16 %v274
    %v1137 = vunpack.c.l.b16 %v275
    %v1138 = vunpack.c.l.b16 %v276
    %v1139 = vunpack.c.l.b16 %v277
    %v1140 = vunpack.c.l.b16 %v278
    %v1141 = vunpack.c.l.b16 %v279
    %v1142 = vunpack.c.l.b16 %v280
    %v1143 = vunpack.c.l.b16 %v281
    %v1144 = vunpack.c.l.b16 %v282
    %v1145 = vunpack.c.l.b16 %v283
    %v1146 = vunpack.c.l.b16 %v284
    %v1147 = vunpack.c.l.b16 %v285
    %v1148 = vunpack.c.l.b16 %v286
    %v1149 = vunpack.c.l.b16 %v287
    %v1150 = vunpack.c.l.b16 %v288
    %v1151 = vunpack.c.l.b16 %v289
    %v1152 = vunpack.c.l.b16 %v290
    %v1153 = vunpack.c.l.b16 %v291
    %v1154 = vunpack.c.l.b16 %v292
    %v1155 = vunpack.c.l.b16 %v293
    %v1156 = vunpack.c.l.b16 %v294
    %v1157 = vunpack.c.l.b16 %v295
    %v1158 = vunpack.c.l.b16 %v296
    %v1159 = vunpack.c.l.b16 %v297
    %v1160 = vunpack.c.l.b16 %v298
    %v1161 = vunpack.c.l.b16 %v299
    %v1162 = vunpack.c.l.b16 %v300
    %v1163 = vunpack.c.l.b16 %v301
    %v1164 = vunpack.c.l.b16 %v302
    %v1165 = vunpack.c.l.b16 %v303
    %v1166 = vunpack.c.l.b16 %v304
    %v1167 = vunpack.c.l.b16 %v305
    %v1168 = vunpack.c.l.b16 %v306
    %v1169 = vunpack.c.l.b16 %v307
    %v1170 = vunpack.c.l.b16 %v308
    %v1171 = vunpack.c.l.b16 %v309
    %v1172 = vunpack.c.l.b16 %v310
    %v1173 = vunpack.c.l.b16 %v311
    %v1174 = vunpack.c.l.b16 %v312
    %v1175 = vunpack.c.l.b16 %v313
    %v1176 = vunpack.c.l.b16 %v314
    %v1177 = vunpack.c.l.b16 %v315
    %v1178 = vunpack.c.l.b16 %v316
    %v1179 = vunpack.c.l.b16 %v317
    %v1180 = vunpack.c.l.b16 %v318
    %v1181 = vunpack.c.l.b16 %v319
    %v1182 = vunpack.c.l.b16 %v320
    %v1183 = vunpack.c.l.b16 %v321
    %v1184 = vunpack.c.l.b16 %v322
    %v1185 = vunpack.c.l.b16 %v323
    %v1186 = vunpack.c.l.b16 %v324
    %v1187 = vunpack.c.l.b16 %v325
    %v1188 = vunpack.c.l.b16 %v326
    %v1189 = vunpack.c.l.b16 %v327
    %v1190 = vunpack.c.l.b16 %v328
    %v1191 = vunpack.c.l.b16 %v329
    %v1192 = vunpack.c.l.b16 %v330
    %v1193 = vunpack.c.l.b16 %v331
    %v1194 = vunpack.c.l.b16 %v332
    %v1195 = vunpack.c.l.b16 %v333
    %v1196 = vunpack.c.l.b16 %v334
    %v1197 = vunpack.c.l.b16 %v335
    %v1198 = vunpack.c.l.b16 %v336
    %v1199 = vunpack.c.l.b16 %v337
    %v1200 = vunpack.c.l.b16 %v338
    %v1201 = vunpack.c.l.b16 %v339
    %v1202 = vunpack.c.l.b16 %v340
    %v1203 = vunpack.c.l.b16 %v341
    %v1204 = vunpack.c.l.b16 %v342
    %v1205 = vunpack.c.l.b16 %v343
    %v1206 = vunpack.c.l.b16 %v344
    %v1207 = vunpack.c.l.b16 %v345
    %v1208 = vunpack.c.l.b16 %v346
    %v1209 = vunpack.c.l.b16 %v347
    %v1210 = vunpack.c.l.b16 %v348
    %v1211 = vunpack.c.l.b16 %v349
    %v1212 = vunpack.c.l.b16 %v350
    %v1213 = vunpack.c.l.b16 %v351
    %v1214 = vunpack.c.l.b16 %v352
    %v1215 = vunpack.c.l.b16 %v353
    %v1216 = vunpack.c.l.b16 %v354
    %v1217 = vunpack.c.l.b16 %v355
    %v1218 = vunpack.c.l.b16 %v356
    %v1219 = vunpack.c.l.b16 %v357
    %v1220 = vunpack.c.l.b16 %v358
    %v1221 = vunpack.c.l.b16 %v359
    %v1222 = vunpack.c.l.b16 %v360
    %v1223 = vunpack.c.l.b16 %v361
    %v1224 = vunpack.c.l.b16 %v362
    %v1225 = vunpack.c.l.b16 %v363
    %v1226 = vunpack.c.l.b16 %v364
    %v1227 = vunpack.c.l.b16 %v365
    %v1228 = vunpack.c.l.b16 %v366
    %v1229 = vunpack.c.l.b16 %v367
    %v1230 = vunpack.c.l.b16 %v368
    %v1231 = vunpack.c.l.b16 %v369
    %v1232 = vunpack.c.l.b16 %v370
    %v1233 = vunpack.c.l.b16 %v371
    %v1234 = vunpack.c.l.b16 %v372
    %v1235 = vunpack.c.l.b16 %v373
    %v1236 = vunpack.c.l.b16 %v374
    %v1237 = vunpack.c.l.b16 %v375
    %v1238 = vunpack.c.l.b16 %v376
    %v1239 = vunpack.c.l.b16 %v377
    %v1240 = vunpack.c.l.b16 %v378
    %v1241 = vunpack.c.l.b16 %v379
    %v1242 = vunpack.c.l.b16 %v380
    %v1243 = vunpack.c.l.b16 %v381
    %v1244 = vunpack.c.l.b16 %v382
    %v1245 = vunpack.c.l.b16 %v383
    %v1246 = vunpack.c.l.b16 %v384
    %v1247 = vunpack.c.l.b16 %v385
    %v1248 = vunpack.c.l.b16 %v386
    %v1249 = vunpack.c.l.b16 %v387
    %v1250 = vunpack.c.l.b16 %v388
    %v1251 = vunpack.c.l.b16 %v389
    %v1252 = vunpack.c.l.b16 %v390
    %v1253 = vunpack.c.l.b16 %v391
    %v1254 = vunpack.c.l.b16 %v392
    %v1255 = vunpack.c.l.b16 %v393
    %v1256 = vunpack.c.l.b16 %v394
    %v1257 = vunpack.c.l.b16 %v395
    %v1258 = vunpack.c.l.b16 %v396
    %v1259 = vunpack.c.l.b16 %v397
    %v1260 = vunpack.c.l.b16 %v398
    %v1261 = vunpack.c.l.b16 %v399
    %v1262 = vunpack.c.l.b16 %v400
    %v1263 = vunpack.c.l.b16 %v401
    %v1264 = vunpack.c.l.b16 %v402
    %v1265 = vunpack.c.l.b16 %v403
    %v1266 = vunpack.c.l.b16 %v404
    %v1267 = vunpack.c.l.b16 %v405
    %v1268 = vunpack.c.l.b16 %v406
    %v1269 = vunpack.c.l.b16 %v407
    %v1270 = vunpack.c.l.b16 %v408
    %v1271 = vunpack.c.l.b16 %v409
    %v1272 = vunpack.c.l.b16 %v410
    %v1273 = vunpack.c.l.b16 %v411
    %v1274 = vunpack.c.l.b16 %v412
    %v1275 = vunpack.c.l.b16 %v413
    %v1276 = vunpack.c.l.b16 %v414
    %v1277 = vunpack.c.l.b16 %v415
    %v1278 = vunpack.c.l.b16 %v416
    %v1279 = vunpack.c.l.b16 %v417
    %v1280 = vunpack.c.l.b16 %v418
    %v1281 = vunpack.c.l.b16 %v419
    %v1282 = vunpack.c.l.b16 %v420
    %v1283 = vunpack.c.l.b16 %v421
    %v1284 = vunpack.c.l.b16 %v422
    %v1285 = vunpack.c.l.b16 %v423
    %v1286 = vunpack.c.l.b16 %v424
    %v1287 = vunpack.c.l.b16 %v425
    %v1288 = vunpack.c.l.b16 %v426
    %v1289 = vunpack.c.l.b16 %v427
    %v1290 = vunpack.c.l.b16 %v428
    %v1291 = vunpack.c.l.b16 %v429
    %v1292 = vunpack.c.l.b16 %v430
    %v1293 = vpack.c.b16 %v894, %v893
    %v1294 = vpack.c.b16 %v896, %v895
    %v1295 = vpack.c.b16 %v898, %v897
    %v1296 = vpack.c.b16 %v900, %v899
    %v1297 = vpack.c.b16 %v902, %v901
    %v1298 = vpack.c.b16 %v904, %v903
    %v1299 = vpack.c.b16 %v906, %v905
    %v1300 = vpack.c.b16 %v908, %v907
    %v1301 = vpack.c.b16 %v910, %v909
    %v1302 = vpack.c.b16 %v912, %v911
    %v1303 = vpack.c.b16 %v914, %v913
    %v1304 = vpack.c.b16 %v916, %v915
    %v1305 = vpack.c.b16 %v918, %v917
    %v1306 = vpack.c.b16 %v920, %v919
    %v1307 = vpack.c.b16 %v922, %v921
    %v1308 = vpack.c.b16 %v924, %v923
    %v1309 = vpack.c.b16 %v926, %v925
    %v1310 = vpack.c.b16 %v928, %v927
    %v1311 = vpack.c.b16 %v930, %v929
    %v1312 = vpack.c.b16 %v932, %v931
    %v1313 = vpack.c.b16 %v934, %v933
    %v1314 = vpack.c.b16 %v936, %v935
    %v1315 = vpack.c.b16 %v938, %v937
    %v1316 = vpack.c.b16 %v940, %v939
    %v1317 = vpack.c.b16 %v942, %v941
    %v1318 = vpack.c.b16 %v944, %v943
    %v1319 = vpack.c.b16 %v946, %v945
    %v1320 = vpack.c.b16 %v948, %v947
    %v1321 = vpack.c.b16 %v950, %v949
    %v1322 = vpack.c.b16 %v952, %v951
    %v1323 = vpack.c.b16 %v954, %v953
    %v1324 = vpack.c.b16 %v956, %v955
    %v1325 = vpack.c.b16 %v958, %v957
    %v1326 = vpack.c.b16 %v960, %v959
    %v1327 = vpack.c.b16 %v962, %v961
    %v1328 = vpack.c.b16 %v964, %v963
    %v1329 = vpack.c.b16 %v966, %v965
    %v1330 = vpack.c.b16 %v968, %v967
    %v1331 = vpack.c.b16 %v970, %v969
    %v1332 = vpack.c.b16 %v972, %v971
    %v1333 = vpack.c.b16 %v974, %v973
    %v1334 = vpack.c.b16 %v976, %v975
    %v1335 = vpack.c.b16 %v978, %v977
    %v1336 = vpack.c.b16 %v980, %v979
    %v1337 = vpack.c.b16 %v982, %v981
    %v1338 = vpack.c.b16 %v984, %v983
    %v1339 = vpack.c.b16 %v986, %v985
    %v1340 = vpack.c.b16 %v988, %v987
    %v1341 = vpack.c.b16 %v990, %v989
    %v1342 = vpack.c.b16 %v992, %v991
    %v1343 = vpack.c.b16 %v994, %v993
    %v1344 = vpack.c.b16 %v996, %v995
    %v1345 = vpack.c.b16 %v998, %v997
    %v1346 = vpack.c.b16 %v1000, %v999
    %v1347 = vpack.c.b16 %v1002, %v1001
    %v1348 = vpack.c.b16 %v1004, %v1003
    %v1349 = vpack.c.b16 %v1006, %v1005
    %v1350 = vpack.c.b16 %v1008, %v1007
    %v1351 = vpack.c.b16 %v1010, %v1009
    %v1352 = vpack.c.b16 %v1012, %v1011
    %v1353 = vpack.c.b16 %v1014, %v1013
    %v1354 = vpack.c.b16 %v1016, %v1015
    %v1355 = vpack.c.b16 %v1018, %v1017
    %v1356 = vpack.c.b16 %v1020, %v1019
    %v1357 = vpack.c.b16 %v1022, %v1021
    %v1358 = vpack.c.b16 %v1024, %v1023
    %v1359 = vpack.c.b16 %v1026, %v1025
    %v1360 = vpack.c.b16 %v1028, %v1027
    %v1361 = vpack.c.b16 %v1030, %v1029
    %v1362 = vpack.c.b16 %v1032, %v1031
    %v1363 = vpack.c.b16 %v1034, %v1033
    %v1364 = vpack.c.b16 %v1036, %v1035
    %v1365 = vpack.c.b16 %v1038, %v1037
    %v1366 = vpack.c.b16 %v1040, %v1039
    %v1367 = vpack.c.b16 %v1042, %v1041
    %v1368 = vpack.c.b16 %v1044, %v1043
    %v1369 = vpack.c.b16 %v1046, %v1045
    %v1370 = vpack.c.b16 %v1048, %v1047
    %v1371 = vpack.c.b16 %v1050, %v1049
    %v1372 = vpack.c.b16 %v1052, %v1051
    %v1373 = vpack.c.b16 %v1054, %v1053
    %v1374 = vpack.c.b16 %v1056, %v1055
    %v1375 = vpack.c.b16 %v1058, %v1057
    %v1376 = vpack.c.b16 %v1060, %v1059
    %v1377 = vpack.c.b16 %v1062, %v1061
    %v1378 = vpack.c.b16 %v1064, %v1063
    %v1379 = vpack.c.b16 %v1066, %v1065
    %v1380 = vpack.c.b16 %v1068, %v1067
    %v1381 = vpack.c.b16 %v1070, %v1069
    %v1382 = vpack.c.b16 %v1072, %v1071
    %v1383 = vpack.c.b16 %v1074, %v1073
    %v1384 = vpack.c.b16 %v1076, %v1075
    %v1385 = vpack.c.b16 %v1078, %v1077
    %v1386 = vpack.c.b16 %v1080, %v1079
    %v1387 = vpack.c.b16 %v1082, %v1081
    %v1388 = vpack.c.b16 %v1084, %v1083
    %v1389 = vpack.c.b16 %v1086, %v1085
    %v1390 = vpack.c.b16 %v1088, %v1087
    %v1391 = vpack.c.b16 %v1090, %v1089
    %v1392 = vpack.c.b16 %v1092, %v1091
    %v1393 = vpack.c.b16 %v1094, %v1093
    %v1394 = vpack.c.b16 %v1096, %v1095
    %v1395 = vpack.c.b16 %v1098, %v1097
    %v1396 = vpack.c.b16 %v1100, %v1099
    %v1397 = vpack.c.b16 %v1102, %v1101
    %v1398 = vpack.c.b16 %v1104, %v1103
    %v1399 = vpack.c.b16 %v1106, %v1105
    %v1400 = vpack.c.b16 %v1108, %v1107
    %v1401 = vpack.c.b16 %v1110, %v1109
    %v1402 = vpack.c.b16 %v1112, %v1111
    %v1403 = vpack.c.b16 %v1114, %v1113
    %v1404 = vpack.c.b16 %v1116, %v1115
    %v1405 = vpack.c.b16 %v1118, %v1117
    %v1406 = vpack.c.b16 %v1120, %v1119
    %v1407 = vpack.c.b16 %v1122, %v1121
    %v1408 = vpack.c.b16 %v1124, %v1123
    %v1409 = vpack.c.b16 %v1126, %v1125
    %v1410 = vpack.c.b16 %v1128, %v1127
    %v1411 = vpack.c.b16 %v1130, %v1129
    %v1412 = vpack.c.b16 %v1132, %v1131
    %v1413 = vpack.c.b16 %v1134, %v1133
    %v1414 = vpack.c.b16 %v1136, %v1135
    %v1415 = vpack.c.b16 %v1138, %v1137
    %v1416 = vpack.c.b16 %v1140, %v1139
    %v1417 = vpack.c.b16 %v1142, %v1141
    %v1418 = vpack.c.b16 %v1144, %v1143
    %v1419 = vpack.c.b16 %v1146, %v1145
    %v1420 = vpack.c.b16 %v1148, %v1147
    %v1421 = vpack.c.b16 %v1150, %v1149
    %v1422 = vpack.c.b16 %v1152, %v1151
    %v1423 = vpack.c.b16 %v1154, %v1153
    %v1424 = vpack.c.b16 %v1156, %v1155
    %v1425 = vpack.c.b16 %v1158, %v1157
    %v1426 = vpack.c.b16 %v1160, %v1159
    %v1427 = vpack.c.b16 %v1162, %v1161
    %v1428 = vpack.c.b16 %v1164, %v1163
    %v1429 = vpack.c.b16 %v1166, %v1165
    %v1430 = vpack.c.b16 %v1168, %v1167
    %v1431 = vpack.c.b16 %v1170, %v1169
    %v1432 = vpack.c.b16 %v1172, %v1171
    %v1433 = vpack.c.b16 %v1174, %v1173
    %v1434 = vpack.c.b16 %v1176, %v1175
    %v1435 = vpack.c.b16 %v1178, %v1177
    %v1436 = vpack.c.b16 %v1180, %v1179
    %v1437 = vpack.c.b16 %v1182, %v1181
    %v1438 = vpack.c.b16 %v1184, %v1183
    %v1439 = vpack.c.b16 %v1186, %v1185
    %v1440 = vpack.c.b16 %v1188, %v1187
    %v1441 = vpack.c.b16 %v1190, %v1189
    %v1442 = vpack.c.b16 %v1192, %v1191
    %v1443 = vpack.c.b16 %v1194, %v1193
    %v1444 = vpack.c.b16 %v1196, %v1195
    %v1445 = vpack.c.b16 %v1198, %v1197
    %v1446 = vpack.c.b16 %v1200, %v1199
    %v1447 = vpack.c.b16 %v1202, %v1201
    %v1448 = vpack.c.b16 %v1204, %v1203
    %v1449 = vpack.c.b16 %v1206, %v1205
    %v1450 = vpack.c.b16 %v1208, %v1207
    %v1451 = vpack.c.b16 %v1210, %v1209
    %v1452 = vpack.c.b16 %v1212, %v1211
    %v1453 = vpack.c.b16 %v1214, %v1213
    %v1454 = vpack.c.b16 %v1216, %v1215
    %v1455 = vpack.c.b16 %v1218, %v1217
    %v1456 = vpack.c.b16 %v1220, %v1219
    %v1457 = vpack.c.b16 %v1222, %v1221
    %v1458 = vpack.c.b16 %v1224, %v1223
    %v1459 = vpack.c.b16 %v1226, %v1225
    %v1460 = vpack.c.b16 %v1228, %v1227
    %v1461 = vpack.c.b16 %v1230, %v1229
    %v1462 = vpack.c.b16 %v1232, %v1231
    %v1463 = vpack.c.b16 %v1234, %v1233
    %v1464 = vpack.c.b16 %v1236, %v1235
    %v1465 = vpack.c.b16 %v1238, %v1237
    %v1466 = vpack.c.b16 %v1240, %v1239
    %v1467 = vpack.c.b16 %v1242, %v1241
    %v1468 = vpack.c.b16 %v1244, %v1243
    %v1469 = vpack.c.b16 %v1246, %v1245
    %v1470 = vpack.c.b16 %v1248, %v1247
    %v1471 = vpack.c.b16 %v1250, %v1249
    %v1472 = vpack.c.b16 %v1252, %v1251
    %v1473 = vpack.c.b16 %v1254, %v1253
    %v1474 = vpack.c.b16 %v1256, %v1255
    %v1475 = vpack.c.b16 %v1258, %v1257
    %v1476 = vpack.c.b16 %v1260, %v1259
    %v1477 = vpack.c.b16 %v1262, %v1261
    %v1478 = vpack.c.b16 %v1264, %v1263
    %v1479 = vpack.c.b16 %v1266, %v1265
    %v1480 = vpack.c.b16 %v1268, %v1267
    %v1481 = vpack.c.b16 %v1270, %v1269
    %v1482 = vpack.c.b16 %v1272, %v1271
    %v1483 = vpack.c.b16 %v1274, %v1273
    %v1484 = vpack.c.b16 %v1276, %v1275
    %v1485 = vpack.c.b16 %v1278, %v1277
    %v1486 = vpack.c.b16 %v1280, %v1279
    %v1487 = vpack.c.b16 %v1282, %v1281
    %v1488 = vpack.c.b16 %v1284, %v1283
    %v1489 = vpack.c.b16 %v1286, %v1285
    %v1490 = vpack.c.b16 %v1288, %v1287
    %v1491 = vpack.c.b16 %v1290, %v1289
    %v1492 = vpack.c.b16 %v1292, %v1291
    %1693 = vmatpush.bf16.msra.mxu0 %v1300
    %1694 = vmatpush.bf16.msra.mxu0 %v1299
    %1695 = vmatpush.bf16.msra.mxu0 %v1298
    %1696 = vmatpush.bf16.msra.mxu0 %v1297
    %1697 = vmatpush.bf16.msra.mxu0 %v1296
    %1698 = vmatpush.bf16.msra.mxu0 %v1295
    %1699 = vmatpush.bf16.msra.mxu0 %v1294
    %1700 = vmatpush.bf16.msra.mxu0 %v1293
    %1701 = vmatmul.bf16.gmra.mxu0 %v437
    %v1702 = vpop.f32.mrf.mxu0
    %v1703 = vadd.f32 %v433, %v1702
    %v1704 = vpop.f32.mrf.mxu0
    %1705 = vdwg.mxu0
    %1706 = vmatpush.bf16.msra.mxu0 %v1308
    %1707 = vmatpush.bf16.msra.mxu0 %v1307
    %1708 = vmatpush.bf16.msra.mxu0 %v1306
    %1709 = vmatpush.bf16.msra.mxu0 %v1305
    %1710 = vmatpush.bf16.msra.mxu0 %v1304
    %1711 = vmatpush.bf16.msra.mxu0 %v1303
    %1712 = vmatpush.bf16.msra.mxu0 %v1302
    %1713 = vmatpush.bf16.msra.mxu0 %v1301
    %1714 = vmatmul.bf16.gmra.mxu0 %v438
    %v1715 = vpop.f32.mrf.mxu0
    %v1716 = vadd.f32 %v1703, %v1715
    %v1717 = vpop.f32.mrf.mxu0
    %1718 = vdwg.mxu0
    %1719 = vmatpush.bf16.msra.mxu0 %v1316
    %1720 = vmatpush.bf16.msra.mxu0 %v1315
    %1721 = vmatpush.bf16.msra.mxu0 %v1314
    %1722 = vmatpush.bf16.msra.mxu0 %v1313
    %1723 = vmatpush.bf16.msra.mxu0 %v1312
    %1724 = vmatpush.bf16.msra.mxu0 %v1311
    %1725 = vmatpush.bf16.msra.mxu0 %v1310
    %1726 = vmatpush.bf16.msra.mxu0 %v1309
    %1727 = vmatmul.bf16.gmra.mxu0 %v439
    %v1728 = vpop.f32.mrf.mxu0
    %v1729 = vadd.f32 %v1716, %v1728
    %v1730 = vpop.f32.mrf.mxu0
    %1731 = vdwg.mxu0
    %1732 = vmatpush.bf16.msra.mxu0 %v1324
    %1733 = vmatpush.bf16.msra.mxu0 %v1323
    %1734 = vmatpush.bf16.msra.mxu0 %v1322
    %1735 = vmatpush.bf16.msra.mxu0 %v1321
    %1736 = vmatpush.bf16.msra.mxu0 %v1320
    %1737 = vmatpush.bf16.msra.mxu0 %v1319
    %1738 = vmatpush.bf16.msra.mxu0 %v1318
    %1739 = vmatpush.bf16.msra.mxu0 %v1317
    %1740 = vmatmul.bf16.gmra.mxu0 %v440
    %v1741 = vpop.f32.mrf.mxu0
    %v1742 = vadd.f32 %v1729, %v1741
    %v1743 = vpop.f32.mrf.mxu0
    %1744 = vdwg.mxu0
    %1745 = vmatpush.bf16.msra.mxu0 %v1332
    %1746 = vmatpush.bf16.msra.mxu0 %v1331
    %1747 = vmatpush.bf16.msra.mxu0 %v1330
    %1748 = vmatpush.bf16.msra.mxu0 %v1329
    %1749 = vmatpush.bf16.msra.mxu0 %v1328
    %1750 = vmatpush.bf16.msra.mxu0 %v1327
    %1751 = vmatpush.bf16.msra.mxu0 %v1326
    %1752 = vmatpush.bf16.msra.mxu0 %v1325
    %1753 = vmatmul.bf16.gmra.mxu0 %v441
    %v1754 = vpop.f32.mrf.mxu0
    %v1755 = vadd.f32 %v1742, %v1754
    %v1756 = vpop.f32.mrf.mxu0
    %1757 = vdwg.mxu0
    %1758 = vmatpush.bf16.msra.mxu0 %v1340
    %1759 = vmatpush.bf16.msra.mxu0 %v1339
    %1760 = vmatpush.bf16.msra.mxu0 %v1338
    %1761 = vmatpush.bf16.msra.mxu0 %v1337
    %1762 = vmatpush.bf16.msra.mxu0 %v1336
    %1763 = vmatpush.bf16.msra.mxu0 %v1335
    %1764 = vmatpush.bf16.msra.mxu0 %v1334
    %1765 = vmatpush.bf16.msra.mxu0 %v1333
    %1766 = vmatmul.bf16.gmra.mxu0 %v442
    %v1767 = vpop.f32.mrf.mxu0
    %v1768 = vadd.f32 %v1755, %v1767
    %v1769 = vpop.f32.mrf.mxu0
    %1770 = vdwg.mxu0
    %1771 = vmatpush.bf16.msra.mxu0 %v1348
    %1772 = vmatpush.bf16.msra.mxu0 %v1347
    %1773 = vmatpush.bf16.msra.mxu0 %v1346
    %1774 = vmatpush.bf16.msra.mxu0 %v1345
    %1775 = vmatpush.bf16.msra.mxu0 %v1344
    %1776 = vmatpush.bf16.msra.mxu0 %v1343
    %1777 = vmatpush.bf16.msra.mxu0 %v1342
    %1778 = vmatpush.bf16.msra.mxu0 %v1341
    %1779 = vmatmul.bf16.gmra.mxu0 %v443
    %v1780 = vpop.f32.mrf.mxu0
    %v1781 = vadd.f32 %v1768, %v1780
    %v1782 = vpop.f32.mrf.mxu0
    %1783 = vdwg.mxu0
    %1784 = vmatpush.bf16.msra.mxu0 %v1356
    %1785 = vmatpush.bf16.msra.mxu0 %v1355
    %1786 = vmatpush.bf16.msra.mxu0 %v1354
    %1787 = vmatpush.bf16.msra.mxu0 %v1353
    %1788 = vmatpush.bf16.msra.mxu0 %v1352
    %1789 = vmatpush.bf16.msra.mxu0 %v1351
    %1790 = vmatpush.bf16.msra.mxu0 %v1350
    %1791 = vmatpush.bf16.msra.mxu0 %v1349
    %1792 = vmatmul.bf16.gmra.mxu0 %v444
    %v1793 = vpop.f32.mrf.mxu0
    %v1794 = vadd.f32 %v1781, %v1793
    %v1795 = vpop.f32.mrf.mxu0
    %1796 = vdwg.mxu0
    %1797 = vmatpush.bf16.msra.mxu0 %v1364
    %1798 = vmatpush.bf16.msra.mxu0 %v1363
    %1799 = vmatpush.bf16.msra.mxu0 %v1362
    %1800 = vmatpush.bf16.msra.mxu0 %v1361
    %1801 = vmatpush.bf16.msra.mxu0 %v1360
    %1802 = vmatpush.bf16.msra.mxu0 %v1359
    %1803 = vmatpush.bf16.msra.mxu0 %v1358
    %1804 = vmatpush.bf16.msra.mxu0 %v1357
    %1805 = vmatmul.bf16.gmra.mxu0 %v447
    %v1806 = vpop.f32.mrf.mxu0
    %v1807 = vadd.f32 %v1794, %v1806
    %v1808 = vpop.f32.mrf.mxu0
    %1809 = vdwg.mxu0
    %1810 = vmatpush.bf16.msra.mxu0 %v1372
    %1811 = vmatpush.bf16.msra.mxu0 %v1371
    %1812 = vmatpush.bf16.msra.mxu0 %v1370
    %1813 = vmatpush.bf16.msra.mxu0 %v1369
    %1814 = vmatpush.bf16.msra.mxu0 %v1368
    %1815 = vmatpush.bf16.msra.mxu0 %v1367
    %1816 = vmatpush.bf16.msra.mxu0 %v1366
    %1817 = vmatpush.bf16.msra.mxu0 %v1365
    %1818 = vmatmul.bf16.gmra.mxu0 %v448
    %v1819 = vpop.f32.mrf.mxu0
    %v1820 = vadd.f32 %v1807, %v1819
    %v1821 = vpop.f32.mrf.mxu0
    %1822 = vdwg.mxu0
    %1823 = vmatpush.bf16.msra.mxu0 %v1380
    %1824 = vmatpush.bf16.msra.mxu0 %v1379
    %1825 = vmatpush.bf16.msra.mxu0 %v1378
    %1826 = vmatpush.bf16.msra.mxu0 %v1377
    %1827 = vmatpush.bf16.msra.mxu0 %v1376
    %1828 = vmatpush.bf16.msra.mxu0 %v1375
    %1829 = vmatpush.bf16.msra.mxu0 %v1374
    %1830 = vmatpush.bf16.msra.mxu0 %v1373
    %1831 = vmatmul.bf16.gmra.mxu0 %v449
    %v1832 = vpop.f32.mrf.mxu0
    %v1833 = vadd.f32 %v1820, %v1832
    %v1834 = vpop.f32.mrf.mxu0
    %1835 = vdwg.mxu0
    %1836 = vmatpush.bf16.msra.mxu0 %v1388
    %1837 = vmatpush.bf16.msra.mxu0 %v1387
    %1838 = vmatpush.bf16.msra.mxu0 %v1386
    %1839 = vmatpush.bf16.msra.mxu0 %v1385
    %1840 = vmatpush.bf16.msra.mxu0 %v1384
    %1841 = vmatpush.bf16.msra.mxu0 %v1383
    %1842 = vmatpush.bf16.msra.mxu0 %v1382
    %1843 = vmatpush.bf16.msra.mxu0 %v1381
    %1844 = vmatmul.bf16.gmra.mxu0 %v450
    %v1845 = vpop.f32.mrf.mxu0
    %v1846 = vadd.f32 %v1833, %v1845
    %v1847 = vpop.f32.mrf.mxu0
    %1848 = vdwg.mxu0
    %1849 = vmatpush.bf16.msra.mxu0 %v1396
    %1850 = vmatpush.bf16.msra.mxu0 %v1395
    %1851 = vmatpush.bf16.msra.mxu0 %v1394
    %1852 = vmatpush.bf16.msra.mxu0 %v1393
    %1853 = vmatpush.bf16.msra.mxu0 %v1392
    %1854 = vmatpush.bf16.msra.mxu0 %v1391
    %1855 = vmatpush.bf16.msra.mxu0 %v1390
    %1856 = vmatpush.bf16.msra.mxu0 %v1389
    %1857 = vmatmul.bf16.gmra.mxu0 %v451
    %v1858 = vpop.f32.mrf.mxu0
    %v1859 = vadd.f32 %v1846, %v1858
    %v1860 = vpop.f32.mrf.mxu0
    %1861 = vdwg.mxu0
    %1862 = vmatpush.bf16.msra.mxu0 %v1404
    %1863 = vmatpush.bf16.msra.mxu0 %v1403
    %1864 = vmatpush.bf16.msra.mxu0 %v1402
    %1865 = vmatpush.bf16.msra.mxu0 %v1401
    %1866 = vmatpush.bf16.msra.mxu0 %v1400
    %1867 = vmatpush.bf16.msra.mxu0 %v1399
    %1868 = vmatpush.bf16.msra.mxu0 %v1398
    %1869 = vmatpush.bf16.msra.mxu0 %v1397
    %1870 = vmatmul.bf16.gmra.mxu0 %v452
    %v1871 = vpop.f32.mrf.mxu0
    %v1872 = vadd.f32 %v1859, %v1871
    %v1873 = vpop.f32.mrf.mxu0
    %1874 = vdwg.mxu0
    %1875 = vmatpush.bf16.msra.mxu0 %v1412
    %1876 = vmatpush.bf16.msra.mxu0 %v1411
    %1877 = vmatpush.bf16.msra.mxu0 %v1410
    %1878 = vmatpush.bf16.msra.mxu0 %v1409
    %1879 = vmatpush.bf16.msra.mxu0 %v1408
    %1880 = vmatpush.bf16.msra.mxu0 %v1407
    %1881 = vmatpush.bf16.msra.mxu0 %v1406
    %1882 = vmatpush.bf16.msra.mxu0 %v1405
    %1883 = vmatmul.bf16.gmra.mxu0 %v453
    %v1884 = vpop.f32.mrf.mxu0
    %v1885 = vadd.f32 %v1872, %v1884
    %v1886 = vpop.f32.mrf.mxu0
    %1887 = vdwg.mxu0
    %1888 = vmatpush.bf16.msra.mxu0 %v1420
    %1889 = vmatpush.bf16.msra.mxu0 %v1419
    %1890 = vmatpush.bf16.msra.mxu0 %v1418
    %1891 = vmatpush.bf16.msra.mxu0 %v1417
    %1892 = vmatpush.bf16.msra.mxu0 %v1416
    %1893 = vmatpush.bf16.msra.mxu0 %v1415
    %1894 = vmatpush.bf16.msra.mxu0 %v1414
    %1895 = vmatpush.bf16.msra.mxu0 %v1413
    %1896 = vmatmul.bf16.gmra.mxu0 %v454
    %v1897 = vpop.f32.mrf.mxu0
    %v1898 = vadd.f32 %v1885, %v1897
    %v1899 = vpop.f32.mrf.mxu0
    %1900 = vdwg.mxu0
    %1901 = vmatpush.bf16.msra.mxu0 %v1428
    %1902 = vmatpush.bf16.msra.mxu0 %v1427
    %1903 = vmatpush.bf16.msra.mxu0 %v1426
    %1904 = vmatpush.bf16.msra.mxu0 %v1425
    %1905 = vmatpush.bf16.msra.mxu0 %v1424
    %1906 = vmatpush.bf16.msra.mxu0 %v1423
    %1907 = vmatpush.bf16.msra.mxu0 %v1422
    %1908 = vmatpush.bf16.msra.mxu0 %v1421
    %1909 = vmatmul.bf16.gmra.mxu0 %v457
    %v1910 = vpop.f32.mrf.mxu0
    %v1911 = vadd.f32 %v1898, %v1910
    %v1912 = vpop.f32.mrf.mxu0
    %1913 = vdwg.mxu0
    %1914 = vmatpush.bf16.msra.mxu0 %v1436
    %1915 = vmatpush.bf16.msra.mxu0 %v1435
    %1916 = vmatpush.bf16.msra.mxu0 %v1434
    %1917 = vmatpush.bf16.msra.mxu0 %v1433
    %1918 = vmatpush.bf16.msra.mxu0 %v1432
    %1919 = vmatpush.bf16.msra.mxu0 %v1431
    %1920 = vmatpush.bf16.msra.mxu0 %v1430
    %1921 = vmatpush.bf16.msra.mxu0 %v1429
    %1922 = vmatmul.bf16.gmra.mxu0 %v458
    %v1923 = vpop.f32.mrf.mxu0
    %v1924 = vadd.f32 %v1911, %v1923
    %v1925 = vpop.f32.mrf.mxu0
    %1926 = vdwg.mxu0
    %1927 = vmatpush.bf16.msra.mxu0 %v1444
    %1928 = vmatpush.bf16.msra.mxu0 %v1443
    %1929 = vmatpush.bf16.msra.mxu0 %v1442
    %1930 = vmatpush.bf16.msra.mxu0 %v1441
    %1931 = vmatpush.bf16.msra.mxu0 %v1440
    %1932 = vmatpush.bf16.msra.mxu0 %v1439
    %1933 = vmatpush.bf16.msra.mxu0 %v1438
    %1934 = vmatpush.bf16.msra.mxu0 %v1437
    %1935 = vmatmul.bf16.gmra.mxu0 %v459
    %v1936 = vpop.f32.mrf.mxu0
    %v1937 = vadd.f32 %v1924, %v1936
    %v1938 = vpop.f32.mrf.mxu0
    %1939 = vdwg.mxu0
    %1940 = vmatpush.bf16.msra.mxu0 %v1452
    %1941 = vmatpush.bf16.msra.mxu0 %v1451
    %1942 = vmatpush.bf16.msra.mxu0 %v1450
    %1943 = vmatpush.bf16.msra.mxu0 %v1449
    %1944 = vmatpush.bf16.msra.mxu0 %v1448
    %1945 = vmatpush.bf16.msra.mxu0 %v1447
    %1946 = vmatpush.bf16.msra.mxu0 %v1446
    %1947 = vmatpush.bf16.msra.mxu0 %v1445
    %1948 = vmatmul.bf16.gmra.mxu0 %v460
    %v1949 = vpop.f32.mrf.mxu0
    %v1950 = vadd.f32 %v1937, %v1949
    %v1951 = vpop.f32.mrf.mxu0
    %1952 = vdwg.mxu0
    %1953 = vmatpush.bf16.msra.mxu0 %v1460
    %1954 = vmatpush.bf16.msra.mxu0 %v1459
    %1955 = vmatpush.bf16.msra.mxu0 %v1458
    %1956 = vmatpush.bf16.msra.mxu0 %v1457
    %1957 = vmatpush.bf16.msra.mxu0 %v1456
    %1958 = vmatpush.bf16.msra.mxu0 %v1455
    %1959 = vmatpush.bf16.msra.mxu0 %v1454
    %1960 = vmatpush.bf16.msra.mxu0 %v1453
    %1961 = vmatmul.bf16.gmra.mxu0 %v461
    %v1962 = vpop.f32.mrf.mxu0
    %v1963 = vadd.f32 %v1950, %v1962
    %v1964 = vpop.f32.mrf.mxu0
    %1965 = vdwg.mxu0
    %1966 = vmatpush.bf16.msra.mxu0 %v1468
    %1967 = vmatpush.bf16.msra.mxu0 %v1467
    %1968 = vmatpush.bf16.msra.mxu0 %v1466
    %1969 = vmatpush.bf16.msra.mxu0 %v1465
    %1970 = vmatpush.bf16.msra.mxu0 %v1464
    %1971 = vmatpush.bf16.msra.mxu0 %v1463
    %1972 = vmatpush.bf16.msra.mxu0 %v1462
    %1973 = vmatpush.bf16.msra.mxu0 %v1461
    %1974 = vmatmul.bf16.gmra.mxu0 %v462
    %v1975 = vpop.f32.mrf.mxu0
    %v1976 = vadd.f32 %v1963, %v1975
    %v1977 = vpop.f32.mrf.mxu0
    %1978 = vdwg.mxu0
    %1979 = vmatpush.bf16.msra.mxu0 %v1476
    %1980 = vmatpush.bf16.msra.mxu0 %v1475
    %1981 = vmatpush.bf16.msra.mxu0 %v1474
    %1982 = vmatpush.bf16.msra.mxu0 %v1473
    %1983 = vmatpush.bf16.msra.mxu0 %v1472
    %1984 = vmatpush.bf16.msra.mxu0 %v1471
    %1985 = vmatpush.bf16.msra.mxu0 %v1470
    %1986 = vmatpush.bf16.msra.mxu0 %v1469
    %1987 = vmatmul.bf16.gmra.mxu0 %v463
    %v1988 = vpop.f32.mrf.mxu0
    %v1989 = vadd.f32 %v1976, %v1988
    %v1990 = vpop.f32.mrf.mxu0
    %1991 = vdwg.mxu0
    %1992 = vmatpush.bf16.msra.mxu0 %v1484
    %1993 = vmatpush.bf16.msra.mxu0 %v1483
    %1994 = vmatpush.bf16.msra.mxu0 %v1482
    %1995 = vmatpush.bf16.msra.mxu0 %v1481
    %1996 = vmatpush.bf16.msra.mxu0 %v1480
    %1997 = vmatpush.bf16.msra.mxu0 %v1479
    %1998 = vmatpush.bf16.msra.mxu0 %v1478
    %1999 = vmatpush.bf16.msra.mxu0 %v1477
    %2000 = vmatmul.bf16.gmra.mxu0 %v464
    %v2001 = vpop.f32.mrf.mxu0
    %v2002 = vadd.f32 %v1989, %v2001
    %v2003 = vpop.f32.mrf.mxu0
    %2004 = vdwg.mxu0
    %2005 = vmatpush.bf16.msra.mxu0 %v1492
    %2006 = vmatpush.bf16.msra.mxu0 %v1491
    %2007 = vmatpush.bf16.msra.mxu0 %v1490
    %2008 = vmatpush.bf16.msra.mxu0 %v1489
    %2009 = vmatpush.bf16.msra.mxu0 %v1488
    %2010 = vmatpush.bf16.msra.mxu0 %v1487
    %2011 = vmatpush.bf16.msra.mxu0 %v1486
    %2012 = vmatpush.bf16.msra.mxu0 %v1485
    %2013 = vmatmul.bf16.gmra.mxu0 %v467
    %v2014 = vpop.f32.mrf.mxu0
    %v2015 = vadd.f32 %v2002, %v2014
    %v2016 = vpop.f32.mrf.mxu0
    %2017 = vdwg.mxu0
    %v2018 = vmax.f32 %v2015, 0.0
    %v2019 = vpack.c.bf16 %v2018, %v2018
    %v2020 = vld [vmem:[%s3] sm:$0xf]
    %v2021 = vld [vmem:[%s3 + $0x4] sm:$0xf]
    %v2022 = vld [vmem:[%s3 + $0x8] sm:$0xf]
    %v2023 = vld [vmem:[%s3 + $0xc] sm:$0xf]
    %v2024 = vld [vmem:[%s3 + $0x10] sm:$0xf]
    %v2025 = vld [vmem:[%s3 + $0x14] sm:$0xf]
    %v2026 = vld [vmem:[%s3 + $0x18] sm:$0xf]
    %v2027 = vld [vmem:[%s3 + $0x1c] sm:$0xf]
    %v2028 = vld [vmem:[%s3 + $0x20] sm:$0xf]
    %v2029 = vld [vmem:[%s3 + $0x24] sm:$0xf]
    %v2030 = vld [vmem:[%s3 + $0x28] sm:$0xf]
    %v2031 = vld [vmem:[%s3 + $0x2c] sm:$0xf]
    %v2032 = vld [vmem:[%s3 + $0x30] sm:$0xf]
    %v2033 = vld [vmem:[%s3 + $0x34] sm:$0xf]
    %v2034 = vld [vmem:[%s3 + $0x38] sm:$0xf]
    %v2035 = vld [vmem:[%s3 + $0x3c] sm:$0xf]
    %v2036 = vld [vmem:[%s4] sm:$0x1]
    %v2038 = vperm.slane %v2036, 0
    %v2056 = vunpack.c.l.b16 %v2020
    %v2057 = vunpack.c.l.b16 %v2021
    %v2058 = vunpack.c.l.b16 %v2022
    %v2059 = vunpack.c.l.b16 %v2023
    %v2060 = vunpack.c.l.b16 %v2024
    %v2061 = vunpack.c.l.b16 %v2025
    %v2062 = vunpack.c.l.b16 %v2026
    %v2063 = vunpack.c.l.b16 %v2027
    %v2064 = vunpack.c.l.b16 %v2028
    %v2065 = vunpack.c.l.b16 %v2029
    %v2066 = vunpack.c.l.b16 %v2030
    %v2067 = vunpack.c.l.b16 %v2031
    %v2068 = vunpack.c.l.b16 %v2032
    %v2069 = vunpack.c.l.b16 %v2033
    %v2070 = vunpack.c.l.b16 %v2034
    %v2071 = vunpack.c.l.b16 %v2035
    %v2072 = vpack.c.b16 %v2057, %v2056
    %v2073 = vpack.c.b16 %v2059, %v2058
    %v2074 = vpack.c.b16 %v2061, %v2060
    %v2075 = vpack.c.b16 %v2063, %v2062
    %v2076 = vpack.c.b16 %v2065, %v2064
    %v2077 = vpack.c.b16 %v2067, %v2066
    %v2078 = vpack.c.b16 %v2069, %v2068
    %v2079 = vpack.c.b16 %v2071, %v2070
    %2088 = vmatpush.bf16.msra.mxu0 %v2079
    %2089 = vmatpush.bf16.msra.mxu0 %v2078
    %2090 = vmatpush.bf16.msra.mxu0 %v2077
    %2091 = vmatpush.bf16.msra.mxu0 %v2076
    %2092 = vmatpush.bf16.msra.mxu0 %v2075
    %2093 = vmatpush.bf16.msra.mxu0 %v2074
    %2094 = vmatpush.bf16.msra.mxu0 %v2073
    %2095 = vmatpush.bf16.msra.mxu0 %v2072
    %2096 = vmatmul.bf16.gmra.mxu0 %v2019
    %v2097 = vpop.f32.mrf.mxu0
    %v2098 = vadd.f32 %v2038, %v2097
    %v2099 = vpop.f32.mrf.mxu0
    %2100 = vdwg.mxu0
    %v2101 = vmax.f32 %v2098, 0.0
    %v2102 = vpack.c.bf16 %v2101, %v2101
    %v2103 = vld [vmem:[%s5] sm:$0xf]
    %v2104 = vld [vmem:[%s5 + $0x4] sm:$0xf]
    %v2105 = vld [vmem:[%s5 + $0x8] sm:$0xf]
    %v2106 = vld [vmem:[%s5 + $0xc] sm:$0xf]
    %v2107 = vld [vmem:[%s5 + $0x10] sm:$0xf]
    %v2108 = vld [vmem:[%s5 + $0x14] sm:$0xf]
    %v2109 = vld [vmem:[%s5 + $0x18] sm:$0xf]
    %v2110 = vld [vmem:[%s5 + $0x1c] sm:$0xf]
    %v2111 = vld [vmem:[%s5 + $0x20] sm:$0xf]
    %v2112 = vld [vmem:[%s5 + $0x24] sm:$0xf]
    %v2113 = vld [vmem:[%s5 + $0x28] sm:$0xf]
    %v2114 = vld [vmem:[%s5 + $0x2c] sm:$0xf]
    %v2115 = vld [vmem:[%s5 + $0x30] sm:$0xf]
    %v2116 = vld [vmem:[%s5 + $0x34] sm:$0xf]
    %v2117 = vld [vmem:[%s5 + $0x38] sm:$0xf]
    %v2118 = vld [vmem:[%s5 + $0x3c] sm:$0xf]
    %v2119 = vld [vmem:[%s6] sm:$0x1]
    %v2121 = vperm.slane %v2119, 0
    %v2139 = vunpack.c.l.b16 %v2103
    %v2140 = vunpack.c.l.b16 %v2104
    %v2141 = vunpack.c.l.b16 %v2105
    %v2142 = vunpack.c.l.b16 %v2106
    %v2143 = vunpack.c.l.b16 %v2107
    %v2144 = vunpack.c.l.b16 %v2108
    %v2145 = vunpack.c.l.b16 %v2109
    %v2146 = vunpack.c.l.b16 %v2110
    %v2147 = vunpack.c.l.b16 %v2111
    %v2148 = vunpack.c.l.b16 %v2112
    %v2149 = vunpack.c.l.b16 %v2113
    %v2150 = vunpack.c.l.b16 %v2114
    %v2151 = vunpack.c.l.b16 %v2115
    %v2152 = vunpack.c.l.b16 %v2116
    %v2153 = vunpack.c.l.b16 %v2117
    %v2154 = vunpack.c.l.b16 %v2118
    %v2155 = vpack.c.b16 %v2140, %v2139
    %v2156 = vpack.c.b16 %v2142, %v2141
    %v2157 = vpack.c.b16 %v2144, %v2143
    %v2158 = vpack.c.b16 %v2146, %v2145
    %v2159 = vpack.c.b16 %v2148, %v2147
    %v2160 = vpack.c.b16 %v2150, %v2149
    %v2161 = vpack.c.b16 %v2152, %v2151
    %v2162 = vpack.c.b16 %v2154, %v2153
    %2171 = vmatpush.bf16.msra.mxu0 %v2162
    %2172 = vmatpush.bf16.msra.mxu0 %v2161
    %2173 = vmatpush.bf16.msra.mxu0 %v2160
    %2174 = vmatpush.bf16.msra.mxu0 %v2159
    %2175 = vmatpush.bf16.msra.mxu0 %v2158
    %2176 = vmatpush.bf16.msra.mxu0 %v2157
    %2177 = vmatpush.bf16.msra.mxu0 %v2156
    %2178 = vmatpush.bf16.msra.mxu0 %v2155
    %2179 = vmatmul.bf16.gmra.mxu0 %v2102
    %v2180 = vpop.f32.mrf.mxu0
    %v2181 = vadd.f32 %v2121, %v2180
    %v2182 = vpop.f32.mrf.mxu0
    %2183 = vdwg.mxu0
    %2184 = vst [vmem:[#allocation2] sm:$0x3] %v2181
    // Predicated region
    $region30: #{_lambda_.5} parent=1 // pred_check
      _
    $region31: #{_lambda_.5} parent=1 // pred_check_branch
      %2186 = sbr.rel (0) target = $region33
    $region32: #{_lambda_.5} parent=1 // pred_region
      %2188 = vsyncadd [#allocation3], 0
      %s2190 = sshll.u32 [#allocation2], 4
      %s2191 = int_to_ptr.vmem [resolvable:$true] %s2190
      %s2192 = sshll.u32 %s7, 4
      %s2193 = int_to_ptr.hbm [resolvable:$true] %s2192
      %2195 = dma.vmem_to_hbm [thread:$0]  %s2191, 32, %s2193, [#allocation3]
    $region33: #{_lambda_.5} parent=1 // pred_fallthru
      _
    // Predicated region
    $region34: #{_lambda_.5} parent=1 // pred_check
      _
    $region35: #{_lambda_.5} parent=1 // pred_check_branch
      %2197 = sbr.rel (0) target = $region37
    $region36: #{_lambda_.5} parent=1 // pred_region
      %2199 = dma.done [#allocation3], 32
    $region37: #{_lambda_.5} parent=1 // pred_fallthru
      _
    %2200 = vsyncpa [#allocation3], 1

</llo_original>
